<compile_context>
chip_gen: v6e
topology: v6e:2x2x1
jax: 0.10.0
libtpu: 0.0.40
codegen_flags: <defaults>
</compile_context>

<pallas_src>
import functools

import jax
import jax.numpy as jnp
from jax.experimental import pallas as pl
from jax.experimental.pallas import tpu as pltpu

LN_EPS = 1e-5                       # nn.LayerNorm default
VMEM_LIMIT = 64 * 1024 * 1024       # raised scoped-VMEM limit (safe on v5e..v7x)


# ---------------------------------------------------------------------------
# In-kernel helpers (all f32 elementwise math)
# ---------------------------------------------------------------------------
def _layer_norm(x, gamma, beta):
    # x: (N, C); gamma/beta: (1, C). Biased variance, matching PyTorch LN.
    mean = jnp.mean(x, axis=-1, keepdims=True)
    var = jnp.mean(jnp.square(x - mean), axis=-1, keepdims=True)
    return (x - mean) * jax.lax.rsqrt(var + LN_EPS) * gamma + beta


def _gelu_tanh(x):
    # tanh-approx GELU (jax.nn.gelu approximate=True). tanh runs on the EUP
    # slot instead of a ~10-op VPU polynomial; differs from torch's exact
    # erf-GELU at the ~1e-3 level (within the bf16-matmul tolerance band).
    c = 0.7978845608028654  # sqrt(2/pi)
    return 0.5 * x * (1.0 + jnp.tanh(c * (x + 0.044715 * x * x * x)))


# ---------------------------------------------------------------------------
# Kernels
# ---------------------------------------------------------------------------
def ln_qkv_kernel(x_ref, g_ref, b_ref, w_ref, bias_ref, q_ref, k_ref, v_ref):
    """LayerNorm1 + fused QKV projection; emits q/k/v in head-concat layout."""
    C = x_ref.shape[-1]
    x = x_ref[0]                                              # (tn, C) f32
    xn = _layer_norm(x, g_ref[...], b_ref[...])
    y = (jnp.dot(xn.astype(jnp.bfloat16), w_ref[...],        # bf16 x bf16 MXU
                 preferred_element_type=jnp.float32)
         + bias_ref[...])                                     # (tn, 3C) f32
    q_ref[0] = y[:, :C].astype(jnp.bfloat16)
    k_ref[0] = y[:, C:2 * C].astype(jnp.bfloat16)
    v_ref[0] = y[:, 2 * C:].astype(jnp.bfloat16)


def attn_kernel(q_ref, k_ref, v_ref, o_ref, *, heads, scale):
    """Scaled dot-product attention for `heads` heads per grid step.

    Output is written directly in the head-merged (.., heads*hd) layout, so no
    XLA-side merge transpose is needed.
    """
    hd = q_ref.shape[-1] // heads
    qb = q_ref[0]                                             # (N, heads*hd) bf16
    kb = k_ref[0]
    vb = v_ref[0]
    outs = []
    for i in range(heads):                                    # static unroll
        sl = slice(i * hd, (i + 1) * hd)
        # q @ k^T without explicit transpose (contract last dims), f32 acc.
        s = jax.lax.dot_general(qb[:, sl], kb[:, sl],
                                (((1,), (1,)), ((), ())),
                                preferred_element_type=jnp.float32)   # (N, N)
        s = s * scale
        s = s - jnp.max(s, axis=-1, keepdims=True)
        p = jnp.exp(s)
        p = p * pl.reciprocal(jnp.sum(p, axis=-1, keepdims=True), approx=True)
        outs.append(jnp.dot(p.astype(jnp.bfloat16), vb[:, sl],
                            preferred_element_type=jnp.float32))      # (N, hd)
    o = outs[0] if heads == 1 else jnp.concatenate(outs, axis=-1)
    o_ref[0] = o.astype(jnp.bfloat16)                         # single wide store


def proj_mlp_kernel(o_ref, res_ref, pw_ref, pb_ref, g_ref, b_ref,
                    w1_ref, b1_ref, w2_ref, b2_ref, out_ref):
    """proj -> +residual -> LN2 -> fc1 -> GELU -> fc2 -> +residual, fused."""
    x1 = (jnp.dot(o_ref[0], pw_ref[...],                      # bf16 x bf16 MXU
                  preferred_element_type=jnp.float32)
          + pb_ref[...] + res_ref[0])                         # (tn, C) f32
    xn = _layer_norm(x1, g_ref[...], b_ref[...])
    h = (jnp.dot(xn.astype(jnp.bfloat16), w1_ref[...],
                 preferred_element_type=jnp.float32) + b1_ref[...])
    h = _gelu_tanh(h)
    y = (jnp.dot(h.astype(jnp.bfloat16), w2_ref[...],
                 preferred_element_type=jnp.float32) + b2_ref[...])
    out_ref[0] = x1 + y


# ---------------------------------------------------------------------------
# Wrappers (pallas_call plumbing)
# ---------------------------------------------------------------------------
def _replicated(arr):
    # whole-array block, replicated across the grid (index_map grid-rank agnostic)
    return pl.BlockSpec(arr.shape, lambda *_: (0,) * arr.ndim)


def _pick_n_tile(n):
    for t in (512, 256, 128, 64, 32, 16):
        if n % t == 0:
            return t
    return n


def _heads_per_step(num_heads, head_dim):
    # Smallest head group whose lane width is a multiple of 128 (full vreg
    # lanes -> unmasked stores, legal block slicing); otherwise fall back to
    # all heads per step (block spans the full last dim).
    for hp in range(1, num_heads):
        if num_heads % hp == 0 and (hp * head_dim) % 128 == 0:
            return hp
    return num_heads


def ln_qkv(x, gamma, beta, w, bias, n_tile):
    B, N, C = x.shape
    x_spec = pl.BlockSpec((1, n_tile, C), lambda b, n: (b, n, 0))
    out_spec = pl.BlockSpec((1, n_tile, C), lambda b, n: (b, n, 0))
    out_sds = jax.ShapeDtypeStruct((B, N, C), jnp.bfloat16)
    return pl.pallas_call(
        ln_qkv_kernel,
        out_shape=(out_sds, out_sds, out_sds),
        grid=(B, N // n_tile),
        in_specs=[x_spec, _replicated(gamma), _replicated(beta),
                  _replicated(w), _replicated(bias)],
        out_specs=(out_spec, out_spec, out_spec),
        compiler_params=pltpu.CompilerParams(
            dimension_semantics=("parallel", "parallel"),
            vmem_limit_bytes=VMEM_LIMIT),
    )(x, gamma, beta, w, bias)


def attention(q, k, v, num_heads, scale):
    B, N, C = q.shape
    hd = C // num_heads
    hp = _heads_per_step(num_heads, hd)
    blk = hp * hd
    spec = pl.BlockSpec((1, N, blk), lambda b, h: (b, 0, h))
    return pl.pallas_call(
        functools.partial(attn_kernel, heads=hp, scale=scale),
        out_shape=jax.ShapeDtypeStruct((B, N, C), jnp.bfloat16),
        grid=(B, num_heads // hp),
        in_specs=[spec, spec, spec],
        out_specs=spec,
        compiler_params=pltpu.CompilerParams(
            dimension_semantics=("parallel", "parallel"),
            vmem_limit_bytes=VMEM_LIMIT),
    )(q, k, v)


def proj_mlp(o, shortcut, pw, pb, g, b, w1, b1, w2, b2, n_tile):
    B, N, C = shortcut.shape
    tile_spec = pl.BlockSpec((1, n_tile, C), lambda bb, n: (bb, n, 0))
    return pl.pallas_call(
        proj_mlp_kernel,
        out_shape=jax.ShapeDtypeStruct((B, N, C), jnp.float32),
        grid=(B, N // n_tile),
        in_specs=[tile_spec, tile_spec,
                  _replicated(pw), _replicated(pb),
                  _replicated(g), _replicated(b),
                  _replicated(w1), _replicated(b1),
                  _replicated(w2), _replicated(b2)],
        out_specs=tile_spec,
        compiler_params=pltpu.CompilerParams(
            dimension_semantics=("parallel", "parallel"),
            vmem_limit_bytes=VMEM_LIMIT),
    )(o, shortcut, pw, pb, g, b, w1, b1, w2, b2)


# ---------------------------------------------------------------------------
# Full Block forward
# ---------------------------------------------------------------------------
def block_forward(x, params, num_heads, n_tile=None):
    """x: (B, H, W, C) float32 -> (B, H, W, C) float32."""
    B, H, W, C = x.shape
    N = H * W
    hd = C // num_heads
    scale = hd ** -0.5
    if n_tile is None:
        n_tile = _pick_n_tile(N)
    bf16 = jnp.bfloat16

    shortcut = x.reshape(B, N, C)

    # norm1 + qkv projection (q/k/v already in head-concatenated layout)
    q, k, v = ln_qkv(shortcut, params["ln1_g"], params["ln1_b"],
                     params["qkv_w"].astype(bf16), params["qkv_b"], n_tile)

    # multi-head attention; output lands directly in head-merged (B, N, C)
    o = attention(q, k, v, num_heads, scale)

    # proj + residual + norm2 + MLP + residual, fused (drop_path is identity)
    out = proj_mlp(o, shortcut,
                   params["proj_w"].astype(bf16), params["proj_b"],
                   params["ln2_g"], params["ln2_b"],
                   params["fc1_w"].astype(bf16), params["fc1_b"],
                   params["fc2_w"].astype(bf16), params["fc2_b"], n_tile)

    return out.reshape(B, H, W, C)


# ---------------------------------------------------------------------------
# Parameter init (deterministic, synthetic)
# ---------------------------------------------------------------------------
def init_params(key, dim, mlp_ratio=4.0):
    hidden = int(dim * mlp_ratio)
    ks = jax.random.split(key, 8)
    norm = lambda k, s: (0.02 * jax.random.normal(k, s)).astype(jnp.float32)
    return {
        "ln1_g": jnp.ones((1, dim), jnp.float32),
        "ln1_b": jnp.zeros((1, dim), jnp.float32),
        "qkv_w": norm(ks[0], (dim, 3 * dim)),       # transposed vs PyTorch (out,in)
        "qkv_b": norm(ks[1], (1, 3 * dim)),
        "proj_w": norm(ks[2], (dim, dim)),
        "proj_b": norm(ks[3], (1, dim)),
        "ln2_g": jnp.ones((1, dim), jnp.float32),
        "ln2_b": jnp.zeros((1, dim), jnp.float32),
        "fc1_w": norm(ks[4], (dim, hidden)),
        "fc1_b": norm(ks[5], (1, hidden)),
        "fc2_w": norm(ks[6], (hidden, dim)),
        "fc2_b": norm(ks[7], (1, dim)),
    }


if __name__ == "__main__":
    B, H, W, dim = 2, 8, 8, 32
    num_heads = 4

    key = jax.random.PRNGKey(0)
    k_x, k_p = jax.random.split(key)
    x = jax.random.normal(k_x, (B, H, W, dim), dtype=jnp.float32)
    params = init_params(k_p, dim)

    fwd = jax.jit(functools.partial(block_forward, num_heads=num_heads))
    out = jax.block_until_ready(fwd(x, params))
    assert out.shape == (B, H, W, dim) and out.dtype == jnp.float32
    assert bool(jnp.all(jnp.isfinite(out)))
    print("KERNEL_OK")
</pallas_src>

<mosaic_0001>
module attributes {stable_mosaic.version = 11 : i64} {
  func.func @ln_qkv_kernel(%arg0: i32, %arg1: i32, %arg2: memref<1x64x32xf32, #tpu.memory_space<vmem>>, %arg3: memref<1x32xf32, #tpu.memory_space<vmem>>, %arg4: memref<1x32xf32, #tpu.memory_space<vmem>>, %arg5: memref<32x96xbf16, #tpu.memory_space<vmem>>, %arg6: memref<1x96xf32, #tpu.memory_space<vmem>>, %arg7: memref<1x64x32xbf16, #tpu.memory_space<vmem>>, %arg8: memref<1x64x32xbf16, #tpu.memory_space<vmem>>, %arg9: memref<1x64x32xbf16, #tpu.memory_space<vmem>>) attributes {dimension_semantics = [#tpu.dimension_semantics<parallel>, #tpu.dimension_semantics<parallel>], iteration_bounds = array<i64: 2, 1>, scalar_prefetch = 0 : i64, scratch_operands = 0 : i64, tpu.core_type = #tpu.core_type<tc>, window_params = [{transform_indices = @transform_0, window_bounds = array<i64: 1, 64, 32>}, {pipeline_mode = #tpu.pipeline_mode<synchronous>, transform_indices = @transform_1, window_bounds = array<i64: 1, 32>}, {pipeline_mode = #tpu.pipeline_mode<synchronous>, transform_indices = @transform_2, window_bounds = array<i64: 1, 32>}, {pipeline_mode = #tpu.pipeline_mode<synchronous>, transform_indices = @transform_3, window_bounds = array<i64: 32, 96>}, {pipeline_mode = #tpu.pipeline_mode<synchronous>, transform_indices = @transform_4, window_bounds = array<i64: 1, 96>}, {transform_indices = @transform_5, window_bounds = array<i64: 1, 64, 32>}, {transform_indices = @transform_6, window_bounds = array<i64: 1, 64, 32>}, {transform_indices = @transform_7, window_bounds = array<i64: 1, 64, 32>}]} {
    %c0 = arith.constant 0 : index
    %c0_0 = arith.constant 0 : index
    %c0_1 = arith.constant 0 : index
    %0 = vector.load %arg2[%c0, %c0_0, %c0_1] : memref<1x64x32xf32, #tpu.memory_space<vmem>>, vector<1x64x32xf32>
    %1 = vector.shape_cast %0 : vector<1x64x32xf32> to vector<64x32xf32>
    %c0_2 = arith.constant 0 : index
    %c0_3 = arith.constant 0 : index
    %2 = vector.load %arg3[%c0_2, %c0_3] : memref<1x32xf32, #tpu.memory_space<vmem>>, vector<1x32xf32>
    %c0_4 = arith.constant 0 : index
    %c0_5 = arith.constant 0 : index
    %3 = vector.load %arg4[%c0_4, %c0_5] : memref<1x32xf32, #tpu.memory_space<vmem>>, vector<1x32xf32>
    %cst = arith.constant dense<0.000000e+00> : vector<64xf32>
    %4 = vector.multi_reduction <add>, %1, %cst [1] : vector<64x32xf32> to vector<64xf32>
    %5 = vector.shape_cast %4 : vector<64xf32> to vector<64x1xf32>
    %cst_6 = arith.constant 3.200000e+01 : f32
    %6 = vector.broadcast %cst_6 : f32 to vector<64x1xf32>
    %7 = arith.divf %5, %6 : vector<64x1xf32>
    %8 = vector.broadcast %7 : vector<64x1xf32> to vector<64x32xf32>
    %9 = arith.subf %1, %8 : vector<64x32xf32>
    %10 = arith.mulf %9, %9 : vector<64x32xf32>
    %cst_7 = arith.constant dense<0.000000e+00> : vector<64xf32>
    %11 = vector.multi_reduction <add>, %10, %cst_7 [1] : vector<64x32xf32> to vector<64xf32>
    %12 = vector.shape_cast %11 : vector<64xf32> to vector<64x1xf32>
    %cst_8 = arith.constant 3.200000e+01 : f32
    %13 = vector.broadcast %cst_8 : f32 to vector<64x1xf32>
    %14 = arith.divf %12, %13 : vector<64x1xf32>
    %15 = vector.broadcast %7 : vector<64x1xf32> to vector<64x32xf32>
    %16 = arith.subf %1, %15 : vector<64x32xf32>
    %cst_9 = arith.constant 9.99999974E-6 : f32
    %17 = vector.broadcast %cst_9 : f32 to vector<64x1xf32>
    %18 = arith.addf %14, %17 : vector<64x1xf32>
    %19 = math.rsqrt %18 : vector<64x1xf32>
    %20 = vector.broadcast %19 : vector<64x1xf32> to vector<64x32xf32>
    %21 = arith.mulf %16, %20 : vector<64x32xf32>
    %22 = vector.broadcast %2 : vector<1x32xf32> to vector<64x32xf32>
    %23 = arith.mulf %21, %22 : vector<64x32xf32>
    %24 = vector.broadcast %3 : vector<1x32xf32> to vector<64x32xf32>
    %25 = arith.addf %23, %24 : vector<64x32xf32>
    %26 = arith.truncf %25 : vector<64x32xf32> to vector<64x32xbf16>
    %c0_10 = arith.constant 0 : index
    %c0_11 = arith.constant 0 : index
    %27 = vector.load %arg5[%c0_10, %c0_11] : memref<32x96xbf16, #tpu.memory_space<vmem>>, vector<32x96xbf16>
    %cst_12 = arith.constant dense<0.000000e+00> : vector<64x96xf32>
    %28 = tpu.matmul %26, %27, %cst_12 {dimension_numbers = #tpu.dot_dimension_numbers<[1], [0], [0], [1], [0, 0, 1, 1], [], []>} : vector<64x32xbf16>, vector<32x96xbf16>, vector<64x96xf32> -> vector<64x96xf32>
    %c0_13 = arith.constant 0 : index
    %c0_14 = arith.constant 0 : index
    %29 = vector.load %arg6[%c0_13, %c0_14] : memref<1x96xf32, #tpu.memory_space<vmem>>, vector<1x96xf32>
    %30 = vector.broadcast %29 : vector<1x96xf32> to vector<64x96xf32>
    %31 = arith.addf %28, %30 : vector<64x96xf32>
    %32 = vector.extract_strided_slice %31 {offsets = [0, 0], sizes = [64, 32], strides = [1, 1]} : vector<64x96xf32> to vector<64x32xf32>
    %33 = arith.truncf %32 : vector<64x32xf32> to vector<64x32xbf16>
    %c0_15 = arith.constant 0 : index
    %c0_16 = arith.constant 0 : index
    %c0_17 = arith.constant 0 : index
    %34 = vector.load %arg7[%c0_15, %c0_16, %c0_17] : memref<1x64x32xbf16, #tpu.memory_space<vmem>>, vector<1x64x32xbf16>
    %35 = vector.shape_cast %34 : vector<1x64x32xbf16> to vector<64x32xbf16>
    %36 = vector.shape_cast %33 : vector<64x32xbf16> to vector<1x64x32xbf16>
    tpu.vector_store %arg7[%c0_15, %c0_16, %c0_17], %36 {strides = array<i32>} : memref<1x64x32xbf16, #tpu.memory_space<vmem>>, vector<1x64x32xbf16>,
    %37 = vector.extract_strided_slice %31 {offsets = [0, 32], sizes = [64, 32], strides = [1, 1]} : vector<64x96xf32> to vector<64x32xf32>
    %38 = arith.truncf %37 : vector<64x32xf32> to vector<64x32xbf16>
    %c0_18 = arith.constant 0 : index
    %c0_19 = arith.constant 0 : index
    %c0_20 = arith.constant 0 : index
    %39 = vector.load %arg8[%c0_18, %c0_19, %c0_20] : memref<1x64x32xbf16, #tpu.memory_space<vmem>>, vector<1x64x32xbf16>
    %40 = vector.shape_cast %39 : vector<1x64x32xbf16> to vector<64x32xbf16>
    %41 = vector.shape_cast %38 : vector<64x32xbf16> to vector<1x64x32xbf16>
    tpu.vector_store %arg8[%c0_18, %c0_19, %c0_20], %41 {strides = array<i32>} : memref<1x64x32xbf16, #tpu.memory_space<vmem>>, vector<1x64x32xbf16>,
    %42 = vector.extract_strided_slice %31 {offsets = [0, 64], sizes = [64, 32], strides = [1, 1]} : vector<64x96xf32> to vector<64x32xf32>
    %43 = arith.truncf %42 : vector<64x32xf32> to vector<64x32xbf16>
    %c0_21 = arith.constant 0 : index
    %c0_22 = arith.constant 0 : index
    %c0_23 = arith.constant 0 : index
    %44 = vector.load %arg9[%c0_21, %c0_22, %c0_23] : memref<1x64x32xbf16, #tpu.memory_space<vmem>>, vector<1x64x32xbf16>
    %45 = vector.shape_cast %44 : vector<1x64x32xbf16> to vector<64x32xbf16>
    %46 = vector.shape_cast %43 : vector<64x32xbf16> to vector<1x64x32xbf16>
    tpu.vector_store %arg9[%c0_21, %c0_22, %c0_23], %46 {strides = array<i32>} : memref<1x64x32xbf16, #tpu.memory_space<vmem>>, vector<1x64x32xbf16>,
    return
  }
  func.func @transform_0(%arg0: i32, %arg1: i32) -> (i32, i32, i32) {
    %c0_i32 = arith.constant 0 : i32
    %c0_i32_0 = arith.constant 0 : i32
    return %arg0, %arg1, %c0_i32 : i32, i32, i32
  }
  func.func @transform_1(%arg0: i32, %arg1: i32) -> (i32, i32) {
    %c0_i32 = arith.constant 0 : i32
    %c0_i32_0 = arith.constant 0 : i32
    %c0_i32_1 = arith.constant 0 : i32
    return %c0_i32, %c0_i32_0 : i32, i32
  }
  func.func @transform_2(%arg0: i32, %arg1: i32) -> (i32, i32) {
    %c0_i32 = arith.constant 0 : i32
    %c0_i32_0 = arith.constant 0 : i32
    %c0_i32_1 = arith.constant 0 : i32
    return %c0_i32, %c0_i32_0 : i32, i32
  }
  func.func @transform_3(%arg0: i32, %arg1: i32) -> (i32, i32) {
    %c0_i32 = arith.constant 0 : i32
    %c0_i32_0 = arith.constant 0 : i32
    %c0_i32_1 = arith.constant 0 : i32
    return %c0_i32, %c0_i32_0 : i32, i32
  }
  func.func @transform_4(%arg0: i32, %arg1: i32) -> (i32, i32) {
    %c0_i32 = arith.constant 0 : i32
    %c0_i32_0 = arith.constant 0 : i32
    %c0_i32_1 = arith.constant 0 : i32
    return %c0_i32, %c0_i32_0 : i32, i32
  }
  func.func @transform_5(%arg0: i32, %arg1: i32) -> (i32, i32, i32) {
    %c0_i32 = arith.constant 0 : i32
    %c0_i32_0 = arith.constant 0 : i32
    return %arg0, %arg1, %c0_i32 : i32, i32, i32
  }
  func.func @transform_6(%arg0: i32, %arg1: i32) -> (i32, i32, i32) {
    %c0_i32 = arith.constant 0 : i32
    %c0_i32_0 = arith.constant 0 : i32
    return %arg0, %arg1, %c0_i32 : i32, i32, i32
  }
  func.func @transform_7(%arg0: i32, %arg1: i32) -> (i32, i32, i32) {
    %c0_i32 = arith.constant 0 : i32
    %c0_i32_0 = arith.constant 0 : i32
    return %arg0, %arg1, %c0_i32 : i32, i32, i32
  }
}

module attributes {stable_mosaic.version = 11 : i64} {
  func.func @attn_kernel(%arg0: i32, %arg1: i32, %arg2: memref<1x64x32xbf16, #tpu.memory_space<vmem>>, %arg3: memref<1x64x32xbf16, #tpu.memory_space<vmem>>, %arg4: memref<1x64x32xbf16, #tpu.memory_space<vmem>>, %arg5: memref<1x64x32xbf16, #tpu.memory_space<vmem>>) attributes {dimension_semantics = [#tpu.dimension_semantics<parallel>, #tpu.dimension_semantics<parallel>], iteration_bounds = array<i64: 2, 1>, scalar_prefetch = 0 : i64, scratch_operands = 0 : i64, tpu.core_type = #tpu.core_type<tc>, window_params = [{transform_indices = @transform_0, window_bounds = array<i64: 1, 64, 32>}, {transform_indices = @transform_1, window_bounds = array<i64: 1, 64, 32>}, {transform_indices = @transform_2, window_bounds = array<i64: 1, 64, 32>}, {transform_indices = @transform_3, window_bounds = array<i64: 1, 64, 32>}]} {
    %c0 = arith.constant 0 : index
    %c0_0 = arith.constant 0 : index
    %c0_1 = arith.constant 0 : index
    %0 = vector.load %arg2[%c0, %c0_0, %c0_1] : memref<1x64x32xbf16, #tpu.memory_space<vmem>>, vector<1x64x32xbf16>
    %1 = vector.shape_cast %0 : vector<1x64x32xbf16> to vector<64x32xbf16>
    %c0_2 = arith.constant 0 : index
    %c0_3 = arith.constant 0 : index
    %c0_4 = arith.constant 0 : index
    %2 = vector.load %arg3[%c0_2, %c0_3, %c0_4] : memref<1x64x32xbf16, #tpu.memory_space<vmem>>, vector<1x64x32xbf16>
    %3 = vector.shape_cast %2 : vector<1x64x32xbf16> to vector<64x32xbf16>
    %c0_5 = arith.constant 0 : index
    %c0_6 = arith.constant 0 : index
    %c0_7 = arith.constant 0 : index
    %4 = vector.load %arg4[%c0_5, %c0_6, %c0_7] : memref<1x64x32xbf16, #tpu.memory_space<vmem>>, vector<1x64x32xbf16>
    %5 = vector.shape_cast %4 : vector<1x64x32xbf16> to vector<64x32xbf16>
    %6 = vector.extract_strided_slice %1 {offsets = [0, 0], sizes = [64, 8], strides = [1, 1]} : vector<64x32xbf16> to vector<64x8xbf16>
    %7 = vector.extract_strided_slice %3 {offsets = [0, 0], sizes = [64, 8], strides = [1, 1]} : vector<64x32xbf16> to vector<64x8xbf16>
    %cst = arith.constant dense<0.000000e+00> : vector<64x64xf32>
    %8 = tpu.matmul %6, %7, %cst {dimension_numbers = #tpu.dot_dimension_numbers<[1], [1], [0], [0], [0, 0, 1, 0], [], []>} : vector<64x8xbf16>, vector<64x8xbf16>, vector<64x64xf32> -> vector<64x64xf32>
    %cst_8 = arith.constant 0.353553385 : f32
    %9 = vector.broadcast %cst_8 : f32 to vector<64x64xf32>
    %10 = arith.mulf %8, %9 : vector<64x64xf32>
    %cst_9 = arith.constant dense<0xFF800000> : vector<64xf32>
    %11 = vector.multi_reduction <maximumf>, %10, %cst_9 [1] : vector<64x64xf32> to vector<64xf32>
    %12 = vector.shape_cast %11 : vector<64xf32> to vector<64x1xf32>
    %13 = vector.broadcast %12 : vector<64x1xf32> to vector<64x64xf32>
    %14 = arith.subf %10, %13 : vector<64x64xf32>
    %15 = math.exp %14 : vector<64x64xf32>
    %cst_10 = arith.constant dense<0.000000e+00> : vector<64xf32>
    %16 = vector.multi_reduction <add>, %15, %cst_10 [1] : vector<64x64xf32> to vector<64xf32>
    %17 = vector.shape_cast %16 : vector<64xf32> to vector<64x1xf32>
    %18 = tpu.reciprocal %17 {approx = true} : vector<64x1xf32> -> vector<64x1xf32>
    %19 = vector.broadcast %18 : vector<64x1xf32> to vector<64x64xf32>
    %20 = arith.mulf %15, %19 : vector<64x64xf32>
    %21 = arith.truncf %20 : vector<64x64xf32> to vector<64x64xbf16>
    %22 = vector.extract_strided_slice %5 {offsets = [0, 0], sizes = [64, 8], strides = [1, 1]} : vector<64x32xbf16> to vector<64x8xbf16>
    %cst_11 = arith.constant dense<0.000000e+00> : vector<64x8xf32>
    %23 = tpu.matmul %21, %22, %cst_11 {dimension_numbers = #tpu.dot_dimension_numbers<[1], [0], [0], [1], [0, 0, 1, 1], [], []>} : vector<64x64xbf16>, vector<64x8xbf16>, vector<64x8xf32> -> vector<64x8xf32>
    %24 = vector.extract_strided_slice %1 {offsets = [0, 8], sizes = [64, 8], strides = [1, 1]} : vector<64x32xbf16> to vector<64x8xbf16>
    %25 = vector.extract_strided_slice %3 {offsets = [0, 8], sizes = [64, 8], strides = [1, 1]} : vector<64x32xbf16> to vector<64x8xbf16>
    %cst_12 = arith.constant dense<0.000000e+00> : vector<64x64xf32>
    %26 = tpu.matmul %24, %25, %cst_12 {dimension_numbers = #tpu.dot_dimension_numbers<[1], [1], [0], [0], [0, 0, 1, 0], [], []>} : vector<64x8xbf16>, vector<64x8xbf16>, vector<64x64xf32> -> vector<64x64xf32>
    %cst_13 = arith.constant 0.353553385 : f32
    %27 = vector.broadcast %cst_13 : f32 to vector<64x64xf32>
    %28 = arith.mulf %26, %27 : vector<64x64xf32>
    %cst_14 = arith.constant dense<0xFF800000> : vector<64xf32>
    %29 = vector.multi_reduction <maximumf>, %28, %cst_14 [1] : vector<64x64xf32> to vector<64xf32>
    %30 = vector.shape_cast %29 : vector<64xf32> to vector<64x1xf32>
    %31 = vector.broadcast %30 : vector<64x1xf32> to vector<64x64xf32>
    %32 = arith.subf %28, %31 : vector<64x64xf32>
    %33 = math.exp %32 : vector<64x64xf32>
    %cst_15 = arith.constant dense<0.000000e+00> : vector<64xf32>
    %34 = vector.multi_reduction <add>, %33, %cst_15 [1] : vector<64x64xf32> to vector<64xf32>
    %35 = vector.shape_cast %34 : vector<64xf32> to vector<64x1xf32>
    %36 = tpu.reciprocal %35 {approx = true} : vector<64x1xf32> -> vector<64x1xf32>
    %37 = vector.broadcast %36 : vector<64x1xf32> to vector<64x64xf32>
    %38 = arith.mulf %33, %37 : vector<64x64xf32>
    %39 = arith.truncf %38 : vector<64x64xf32> to vector<64x64xbf16>
    %40 = vector.extract_strided_slice %5 {offsets = [0, 8], sizes = [64, 8], strides = [1, 1]} : vector<64x32xbf16> to vector<64x8xbf16>
    %cst_16 = arith.constant dense<0.000000e+00> : vector<64x8xf32>
    %41 = tpu.matmul %39, %40, %cst_16 {dimension_numbers = #tpu.dot_dimension_numbers<[1], [0], [0], [1], [0, 0, 1, 1], [], []>} : vector<64x64xbf16>, vector<64x8xbf16>, vector<64x8xf32> -> vector<64x8xf32>
    %42 = vector.extract_strided_slice %1 {offsets = [0, 16], sizes = [64, 8], strides = [1, 1]} : vector<64x32xbf16> to vector<64x8xbf16>
    %43 = vector.extract_strided_slice %3 {offsets = [0, 16], sizes = [64, 8], strides = [1, 1]} : vector<64x32xbf16> to vector<64x8xbf16>
    %cst_17 = arith.constant dense<0.000000e+00> : vector<64x64xf32>
    %44 = tpu.matmul %42, %43, %cst_17 {dimension_numbers = #tpu.dot_dimension_numbers<[1], [1], [0], [0], [0, 0, 1, 0], [], []>} : vector<64x8xbf16>, vector<64x8xbf16>, vector<64x64xf32> -> vector<64x64xf32>
    %cst_18 = arith.constant 0.353553385 : f32
    %45 = vector.broadcast %cst_18 : f32 to vector<64x64xf32>
    %46 = arith.mulf %44, %45 : vector<64x64xf32>
    %cst_19 = arith.constant dense<0xFF800000> : vector<64xf32>
    %47 = vector.multi_reduction <maximumf>, %46, %cst_19 [1] : vector<64x64xf32> to vector<64xf32>
    %48 = vector.shape_cast %47 : vector<64xf32> to vector<64x1xf32>
    %49 = vector.broadcast %48 : vector<64x1xf32> to vector<64x64xf32>
    %50 = arith.subf %46, %49 : vector<64x64xf32>
    %51 = math.exp %50 : vector<64x64xf32>
    %cst_20 = arith.constant dense<0.000000e+00> : vector<64xf32>
    %52 = vector.multi_reduction <add>, %51, %cst_20 [1] : vector<64x64xf32> to vector<64xf32>
    %53 = vector.shape_cast %52 : vector<64xf32> to vector<64x1xf32>
    %54 = tpu.reciprocal %53 {approx = true} : vector<64x1xf32> -> vector<64x1xf32>
    %55 = vector.broadcast %54 : vector<64x1xf32> to vector<64x64xf32>
    %56 = arith.mulf %51, %55 : vector<64x64xf32>
    %57 = arith.truncf %56 : vector<64x64xf32> to vector<64x64xbf16>
    %58 = vector.extract_strided_slice %5 {offsets = [0, 16], sizes = [64, 8], strides = [1, 1]} : vector<64x32xbf16> to vector<64x8xbf16>
    %cst_21 = arith.constant dense<0.000000e+00> : vector<64x8xf32>
    %59 = tpu.matmul %57, %58, %cst_21 {dimension_numbers = #tpu.dot_dimension_numbers<[1], [0], [0], [1], [0, 0, 1, 1], [], []>} : vector<64x64xbf16>, vector<64x8xbf16>, vector<64x8xf32> -> vector<64x8xf32>
    %60 = vector.extract_strided_slice %1 {offsets = [0, 24], sizes = [64, 8], strides = [1, 1]} : vector<64x32xbf16> to vector<64x8xbf16>
    %61 = vector.extract_strided_slice %3 {offsets = [0, 24], sizes = [64, 8], strides = [1, 1]} : vector<64x32xbf16> to vector<64x8xbf16>
    %cst_22 = arith.constant dense<0.000000e+00> : vector<64x64xf32>
    %62 = tpu.matmul %60, %61, %cst_22 {dimension_numbers = #tpu.dot_dimension_numbers<[1], [1], [0], [0], [0, 0, 1, 0], [], []>} : vector<64x8xbf16>, vector<64x8xbf16>, vector<64x64xf32> -> vector<64x64xf32>
    %cst_23 = arith.constant 0.353553385 : f32
    %63 = vector.broadcast %cst_23 : f32 to vector<64x64xf32>
    %64 = arith.mulf %62, %63 : vector<64x64xf32>
    %cst_24 = arith.constant dense<0xFF800000> : vector<64xf32>
    %65 = vector.multi_reduction <maximumf>, %64, %cst_24 [1] : vector<64x64xf32> to vector<64xf32>
    %66 = vector.shape_cast %65 : vector<64xf32> to vector<64x1xf32>
    %67 = vector.broadcast %66 : vector<64x1xf32> to vector<64x64xf32>
    %68 = arith.subf %64, %67 : vector<64x64xf32>
    %69 = math.exp %68 : vector<64x64xf32>
    %cst_25 = arith.constant dense<0.000000e+00> : vector<64xf32>
    %70 = vector.multi_reduction <add>, %69, %cst_25 [1] : vector<64x64xf32> to vector<64xf32>
    %71 = vector.shape_cast %70 : vector<64xf32> to vector<64x1xf32>
    %72 = tpu.reciprocal %71 {approx = true} : vector<64x1xf32> -> vector<64x1xf32>
    %73 = vector.broadcast %72 : vector<64x1xf32> to vector<64x64xf32>
    %74 = arith.mulf %69, %73 : vector<64x64xf32>
    %75 = arith.truncf %74 : vector<64x64xf32> to vector<64x64xbf16>
    %76 = vector.extract_strided_slice %5 {offsets = [0, 24], sizes = [64, 8], strides = [1, 1]} : vector<64x32xbf16> to vector<64x8xbf16>
    %cst_26 = arith.constant dense<0.000000e+00> : vector<64x8xf32>
    %77 = tpu.matmul %75, %76, %cst_26 {dimension_numbers = #tpu.dot_dimension_numbers<[1], [0], [0], [1], [0, 0, 1, 1], [], []>} : vector<64x64xbf16>, vector<64x8xbf16>, vector<64x8xf32> -> vector<64x8xf32>
    %78 = tpu.concatenate %23, %41, %59, %77 in 1 : vector<64x8xf32>, vector<64x8xf32>, vector<64x8xf32>, vector<64x8xf32> -> vector<64x32xf32>
    %79 = arith.truncf %78 : vector<64x32xf32> to vector<64x32xbf16>
    %c0_27 = arith.constant 0 : index
    %c0_28 = arith.constant 0 : index
    %c0_29 = arith.constant 0 : index
    %80 = vector.load %arg5[%c0_27, %c0_28, %c0_29] : memref<1x64x32xbf16, #tpu.memory_space<vmem>>, vector<1x64x32xbf16>
    %81 = vector.shape_cast %80 : vector<1x64x32xbf16> to vector<64x32xbf16>
    %82 = vector.shape_cast %79 : vector<64x32xbf16> to vector<1x64x32xbf16>
    tpu.vector_store %arg5[%c0_27, %c0_28, %c0_29], %82 {strides = array<i32>} : memref<1x64x32xbf16, #tpu.memory_space<vmem>>, vector<1x64x32xbf16>,
    return
  }
  func.func @transform_0(%arg0: i32, %arg1: i32) -> (i32, i32, i32) {
    %c0_i32 = arith.constant 0 : i32
    %c0_i32_0 = arith.constant 0 : i32
    return %arg0, %c0_i32, %arg1 : i32, i32, i32
  }
  func.func @transform_1(%arg0: i32, %arg1: i32) -> (i32, i32, i32) {
    %c0_i32 = arith.constant 0 : i32
    %c0_i32_0 = arith.constant 0 : i32
    return %arg0, %c0_i32, %arg1 : i32, i32, i32
  }
  func.func @transform_2(%arg0: i32, %arg1: i32) -> (i32, i32, i32) {
    %c0_i32 = arith.constant 0 : i32
    %c0_i32_0 = arith.constant 0 : i32
    return %arg0, %c0_i32, %arg1 : i32, i32, i32
  }
  func.func @transform_3(%arg0: i32, %arg1: i32) -> (i32, i32, i32) {
    %c0_i32 = arith.constant 0 : i32
    %c0_i32_0 = arith.constant 0 : i32
    return %arg0, %c0_i32, %arg1 : i32, i32, i32
  }
}

module attributes {stable_mosaic.version = 11 : i64} {
  func.func @proj_mlp_kernel(%arg0: i32, %arg1: i32, %arg2: memref<1x64x32xbf16, #tpu.memory_space<vmem>>, %arg3: memref<1x64x32xf32, #tpu.memory_space<vmem>>, %arg4: memref<32x32xbf16, #tpu.memory_space<vmem>>, %arg5: memref<1x32xf32, #tpu.memory_space<vmem>>, %arg6: memref<1x32xf32, #tpu.memory_space<vmem>>, %arg7: memref<1x32xf32, #tpu.memory_space<vmem>>, %arg8: memref<32x128xbf16, #tpu.memory_space<vmem>>, %arg9: memref<1x128xf32, #tpu.memory_space<vmem>>, %arg10: memref<128x32xbf16, #tpu.memory_space<vmem>>, %arg11: memref<1x32xf32, #tpu.memory_space<vmem>>, %arg12: memref<1x64x32xf32, #tpu.memory_space<vmem>>) attributes {dimension_semantics = [#tpu.dimension_semantics<parallel>, #tpu.dimension_semantics<parallel>], iteration_bounds = array<i64: 2, 1>, scalar_prefetch = 0 : i64, scratch_operands = 0 : i64, tpu.core_type = #tpu.core_type<tc>, window_params = [{transform_indices = @transform_0, window_bounds = array<i64: 1, 64, 32>}, {transform_indices = @transform_1, window_bounds = array<i64: 1, 64, 32>}, {pipeline_mode = #tpu.pipeline_mode<synchronous>, transform_indices = @transform_2, window_bounds = array<i64: 32, 32>}, {pipeline_mode = #tpu.pipeline_mode<synchronous>, transform_indices = @transform_3, window_bounds = array<i64: 1, 32>}, {pipeline_mode = #tpu.pipeline_mode<synchronous>, transform_indices = @transform_4, window_bounds = array<i64: 1, 32>}, {pipeline_mode = #tpu.pipeline_mode<synchronous>, transform_indices = @transform_5, window_bounds = array<i64: 1, 32>}, {pipeline_mode = #tpu.pipeline_mode<synchronous>, transform_indices = @transform_6, window_bounds = array<i64: 32, 128>}, {pipeline_mode = #tpu.pipeline_mode<synchronous>, transform_indices = @transform_7, window_bounds = array<i64: 1, 128>}, {pipeline_mode = #tpu.pipeline_mode<synchronous>, transform_indices = @transform_8, window_bounds = array<i64: 128, 32>}, {pipeline_mode = #tpu.pipeline_mode<synchronous>, transform_indices = @transform_9, window_bounds = array<i64: 1, 32>}, {transform_indices = @transform_10, window_bounds = array<i64: 1, 64, 32>}]} {
    %c0 = arith.constant 0 : index
    %c0_0 = arith.constant 0 : index
    %c0_1 = arith.constant 0 : index
    %0 = vector.load %arg2[%c0, %c0_0, %c0_1] : memref<1x64x32xbf16, #tpu.memory_space<vmem>>, vector<1x64x32xbf16>
    %1 = vector.shape_cast %0 : vector<1x64x32xbf16> to vector<64x32xbf16>
    %c0_2 = arith.constant 0 : index
    %c0_3 = arith.constant 0 : index
    %2 = vector.load %arg4[%c0_2, %c0_3] : memref<32x32xbf16, #tpu.memory_space<vmem>>, vector<32x32xbf16>
    %cst = arith.constant dense<0.000000e+00> : vector<64x32xf32>
    %3 = tpu.matmul %1, %2, %cst {dimension_numbers = #tpu.dot_dimension_numbers<[1], [0], [0], [1], [0, 0, 1, 1], [], []>} : vector<64x32xbf16>, vector<32x32xbf16>, vector<64x32xf32> -> vector<64x32xf32>
    %c0_4 = arith.constant 0 : index
    %c0_5 = arith.constant 0 : index
    %4 = vector.load %arg5[%c0_4, %c0_5] : memref<1x32xf32, #tpu.memory_space<vmem>>, vector<1x32xf32>
    %5 = vector.broadcast %4 : vector<1x32xf32> to vector<64x32xf32>
    %6 = arith.addf %3, %5 : vector<64x32xf32>
    %c0_6 = arith.constant 0 : index
    %c0_7 = arith.constant 0 : index
    %c0_8 = arith.constant 0 : index
    %7 = vector.load %arg3[%c0_6, %c0_7, %c0_8] : memref<1x64x32xf32, #tpu.memory_space<vmem>>, vector<1x64x32xf32>
    %8 = vector.shape_cast %7 : vector<1x64x32xf32> to vector<64x32xf32>
    %9 = arith.addf %6, %8 : vector<64x32xf32>
    %c0_9 = arith.constant 0 : index
    %c0_10 = arith.constant 0 : index
    %10 = vector.load %arg6[%c0_9, %c0_10] : memref<1x32xf32, #tpu.memory_space<vmem>>, vector<1x32xf32>
    %c0_11 = arith.constant 0 : index
    %c0_12 = arith.constant 0 : index
    %11 = vector.load %arg7[%c0_11, %c0_12] : memref<1x32xf32, #tpu.memory_space<vmem>>, vector<1x32xf32>
    %cst_13 = arith.constant dense<0.000000e+00> : vector<64xf32>
    %12 = vector.multi_reduction <add>, %9, %cst_13 [1] : vector<64x32xf32> to vector<64xf32>
    %13 = vector.shape_cast %12 : vector<64xf32> to vector<64x1xf32>
    %cst_14 = arith.constant 3.200000e+01 : f32
    %14 = vector.broadcast %cst_14 : f32 to vector<64x1xf32>
    %15 = arith.divf %13, %14 : vector<64x1xf32>
    %16 = vector.broadcast %15 : vector<64x1xf32> to vector<64x32xf32>
    %17 = arith.subf %9, %16 : vector<64x32xf32>
    %18 = arith.mulf %17, %17 : vector<64x32xf32>
    %cst_15 = arith.constant dense<0.000000e+00> : vector<64xf32>
    %19 = vector.multi_reduction <add>, %18, %cst_15 [1] : vector<64x32xf32> to vector<64xf32>
    %20 = vector.shape_cast %19 : vector<64xf32> to vector<64x1xf32>
    %cst_16 = arith.constant 3.200000e+01 : f32
    %21 = vector.broadcast %cst_16 : f32 to vector<64x1xf32>
    %22 = arith.divf %20, %21 : vector<64x1xf32>
    %23 = vector.broadcast %15 : vector<64x1xf32> to vector<64x32xf32>
    %24 = arith.subf %9, %23 : vector<64x32xf32>
    %cst_17 = arith.constant 9.99999974E-6 : f32
    %25 = vector.broadcast %cst_17 : f32 to vector<64x1xf32>
    %26 = arith.addf %22, %25 : vector<64x1xf32>
    %27 = math.rsqrt %26 : vector<64x1xf32>
    %28 = vector.broadcast %27 : vector<64x1xf32> to vector<64x32xf32>
    %29 = arith.mulf %24, %28 : vector<64x32xf32>
    %30 = vector.broadcast %10 : vector<1x32xf32> to vector<64x32xf32>
    %31 = arith.mulf %29, %30 : vector<64x32xf32>
    %32 = vector.broadcast %11 : vector<1x32xf32> to vector<64x32xf32>
    %33 = arith.addf %31, %32 : vector<64x32xf32>
    %34 = arith.truncf %33 : vector<64x32xf32> to vector<64x32xbf16>
    %c0_18 = arith.constant 0 : index
    %c0_19 = arith.constant 0 : index
    %35 = vector.load %arg8[%c0_18, %c0_19] : memref<32x128xbf16, #tpu.memory_space<vmem>>, vector<32x128xbf16>
    %cst_20 = arith.constant dense<0.000000e+00> : vector<64x128xf32>
    %36 = tpu.matmul %34, %35, %cst_20 {dimension_numbers = #tpu.dot_dimension_numbers<[1], [0], [0], [1], [0, 0, 1, 1], [], []>} : vector<64x32xbf16>, vector<32x128xbf16>, vector<64x128xf32> -> vector<64x128xf32>
    %c0_21 = arith.constant 0 : index
    %c0_22 = arith.constant 0 : index
    %37 = vector.load %arg9[%c0_21, %c0_22] : memref<1x128xf32, #tpu.memory_space<vmem>>, vector<1x128xf32>
    %38 = vector.broadcast %37 : vector<1x128xf32> to vector<64x128xf32>
    %39 = arith.addf %36, %38 : vector<64x128xf32>
    %cst_23 = arith.constant 5.000000e-01 : f32
    %40 = vector.broadcast %cst_23 : f32 to vector<64x128xf32>
    %41 = arith.mulf %40, %39 : vector<64x128xf32>
    %cst_24 = arith.constant 4.471500e-02 : f32
    %42 = vector.broadcast %cst_24 : f32 to vector<64x128xf32>
    %43 = arith.mulf %42, %39 : vector<64x128xf32>
    %44 = arith.mulf %43, %39 : vector<64x128xf32>
    %45 = arith.mulf %44, %39 : vector<64x128xf32>
    %46 = arith.addf %39, %45 : vector<64x128xf32>
    %cst_25 = arith.constant 0.797884583 : f32
    %47 = vector.broadcast %cst_25 : f32 to vector<64x128xf32>
    %48 = arith.mulf %47, %46 : vector<64x128xf32>
    %49 = math.tanh %48 : vector<64x128xf32>
    %cst_26 = arith.constant 1.000000e+00 : f32
    %50 = vector.broadcast %cst_26 : f32 to vector<64x128xf32>
    %51 = arith.addf %50, %49 : vector<64x128xf32>
    %52 = arith.mulf %41, %51 : vector<64x128xf32>
    %53 = arith.truncf %52 : vector<64x128xf32> to vector<64x128xbf16>
    %c0_27 = arith.constant 0 : index
    %c0_28 = arith.constant 0 : index
    %54 = vector.load %arg10[%c0_27, %c0_28] : memref<128x32xbf16, #tpu.memory_space<vmem>>, vector<128x32xbf16>
    %cst_29 = arith.constant dense<0.000000e+00> : vector<64x32xf32>
    %55 = tpu.matmul %53, %54, %cst_29 {dimension_numbers = #tpu.dot_dimension_numbers<[1], [0], [0], [1], [0, 0, 1, 1], [], []>} : vector<64x128xbf16>, vector<128x32xbf16>, vector<64x32xf32> -> vector<64x32xf32>
    %c0_30 = arith.constant 0 : index
    %c0_31 = arith.constant 0 : index
    %56 = vector.load %arg11[%c0_30, %c0_31] : memref<1x32xf32, #tpu.memory_space<vmem>>, vector<1x32xf32>
    %57 = vector.broadcast %56 : vector<1x32xf32> to vector<64x32xf32>
    %58 = arith.addf %55, %57 : vector<64x32xf32>
    %59 = arith.addf %9, %58 : vector<64x32xf32>
    %c0_32 = arith.constant 0 : index
    %c0_33 = arith.constant 0 : index
    %c0_34 = arith.constant 0 : index
    %60 = vector.load %arg12[%c0_32, %c0_33, %c0_34] : memref<1x64x32xf32, #tpu.memory_space<vmem>>, vector<1x64x32xf32>
    %61 = vector.shape_cast %60 : vector<1x64x32xf32> to vector<64x32xf32>
    %62 = vector.shape_cast %59 : vector<64x32xf32> to vector<1x64x32xf32>
    tpu.vector_store %arg12[%c0_32, %c0_33, %c0_34], %62 {strides = array<i32>} : memref<1x64x32xf32, #tpu.memory_space<vmem>>, vector<1x64x32xf32>,
    return
  }
  func.func @transform_0(%arg0: i32, %arg1: i32) -> (i32, i32, i32) {
    %c0_i32 = arith.constant 0 : i32
    %c0_i32_0 = arith.constant 0 : i32
    return %arg0, %arg1, %c0_i32 : i32, i32, i32
  }
  func.func @transform_1(%arg0: i32, %arg1: i32) -> (i32, i32, i32) {
    %c0_i32 = arith.constant 0 : i32
    %c0_i32_0 = arith.constant 0 : i32
    return %arg0, %arg1, %c0_i32 : i32, i32, i32
  }
  func.func @transform_2(%arg0: i32, %arg1: i32) -> (i32, i32) {
    %c0_i32 = arith.constant 0 : i32
    %c0_i32_0 = arith.constant 0 : i32
    %c0_i32_1 = arith.constant 0 : i32
    return %c0_i32, %c0_i32_0 : i32, i32
  }
  func.func @transform_3(%arg0: i32, %arg1: i32) -> (i32, i32) {
    %c0_i32 = arith.constant 0 : i32
    %c0_i32_0 = arith.constant 0 : i32
    %c0_i32_1 = arith.constant 0 : i32
    return %c0_i32, %c0_i32_0 : i32, i32
  }
  func.func @transform_4(%arg0: i32, %arg1: i32) -> (i32, i32) {
    %c0_i32 = arith.constant 0 : i32
    %c0_i32_0 = arith.constant 0 : i32
    %c0_i32_1 = arith.constant 0 : i32
    return %c0_i32, %c0_i32_0 : i32, i32
  }
  func.func @transform_5(%arg0: i32, %arg1: i32) -> (i32, i32) {
    %c0_i32 = arith.constant 0 : i32
    %c0_i32_0 = arith.constant 0 : i32
    %c0_i32_1 = arith.constant 0 : i32
    return %c0_i32, %c0_i32_0 : i32, i32
  }
  func.func @transform_6(%arg0: i32, %arg1: i32) -> (i32, i32) {
    %c0_i32 = arith.constant 0 : i32
    %c0_i32_0 = arith.constant 0 : i32
    %c0_i32_1 = arith.constant 0 : i32
    return %c0_i32, %c0_i32_0 : i32, i32
  }
  func.func @transform_7(%arg0: i32, %arg1: i32) -> (i32, i32) {
    %c0_i32 = arith.constant 0 : i32
    %c0_i32_0 = arith.constant 0 : i32
    %c0_i32_1 = arith.constant 0 : i32
    return %c0_i32, %c0_i32_0 : i32, i32
  }
  func.func @transform_8(%arg0: i32, %arg1: i32) -> (i32, i32) {
    %c0_i32 = arith.constant 0 : i32
    %c0_i32_0 = arith.constant 0 : i32
    %c0_i32_1 = arith.constant 0 : i32
    return %c0_i32, %c0_i32_0 : i32, i32
  }
  func.func @transform_9(%arg0: i32, %arg1: i32) -> (i32, i32) {
    %c0_i32 = arith.constant 0 : i32
    %c0_i32_0 = arith.constant 0 : i32
    %c0_i32_1 = arith.constant 0 : i32
    return %c0_i32, %c0_i32_0 : i32, i32
  }
  func.func @transform_10(%arg0: i32, %arg1: i32) -> (i32, i32, i32) {
    %c0_i32 = arith.constant 0 : i32
    %c0_i32_0 = arith.constant 0 : i32
    return %arg0, %arg1, %c0_i32 : i32, i32, i32
  }
}

</mosaic_0001>

<llo_original>
// kernel: block_forward.3
$region0: #{block_forward.3}
  #allocation0 [shape = 'u32[]', space=smem, size = 0x4, offset = 0x4, fixed_abs, tag = 'smem constant byte address 0x4 - core index']
  #allocation1 [shape = 'u32[144,128]{1,0:T(1,128)}', space=vmem, size = 0x12000, scoped, tag = 'internal scratch']
  %s0 = inlined_call_operand.hbm [shape: f32[2,64,32], index: 0, kind: input, shape index: {}]
  %s1 = inlined_call_operand.vmem [shape: f32[1,32], index: 1, kind: input, shape index: {}]
  %s2 = inlined_call_operand.vmem [shape: f32[1,32], index: 2, kind: input, shape index: {}]
  %s3 = inlined_call_operand.vmem [shape: bf16[32,96], index: 3, kind: input, shape index: {}]
  %s4 = inlined_call_operand.vmem [shape: f32[1,96], index: 4, kind: input, shape index: {}]
  %s5 = inlined_call_operand.vmem [shape: bf16[2,64,32], index: 5, kind: output, shape index: {0}]
  %s6 = inlined_call_operand.vmem [shape: bf16[2,64,32], index: 6, kind: output, shape index: {1}]
  %s7 = inlined_call_operand.vmem [shape: bf16[2,64,32], index: 7, kind: output, shape index: {2}]
  %8 = xla_tuple %s5, %s6, %s7
  %s9 = sld [smem:[#allocation0]]
  $region73: #{block_forward.3} parent=0
    _
  %s11 = ssub.s32 1, %s9
  %s12 = scalar_select 0, %s11, %s9
  $region1: #{block_forward.3} parent=0
    #allocation2 [shape = 'u8[65536]{0}', space=vmem, size = 0x10000, scoped, tag = 'input window, operand 0']
    #allocation3 [shape = 's32[2]{0}', space=sflag, size = 0x8, scoped, tag = 'scoped memory for block_forward.3']
    %13 = vsyncpa [#allocation3], 0
    %s14 = scalar_lea.sflag [#allocation3], 1
    %15 = vsyncpa %s14, 0
    loop: start=0, step=1, limit=4
    $region2: #{block_forward.3} parent=1 // loop_pre_header
      _
    $region3: #{block_forward.3} parent=1 // loop_header
      %s17 = sphi 0, %s21
      %p18 = scmp.ge.s32.totalorder %s17, 4
      %s24 = sphi 0, %s36
      %s25 = sphi 0, %s32
      %s26 = sphi 0, %s24
      %s27 = sphi 0, %s25
      %s28 = sphi 0, %s26
      %s29 = sphi 0, %s27
      %s41 = sphi 0, %s43
      %s44 = sphi 0, %s41
      %s45 = sphi 0, %s44
      %s61 = sphi 0, %s45
      %s65 = sphi 0, %s65
      %s67 = sphi 0, %s65
      %s68 = sphi 0, %s67
      %s82 = sphi 0, %s68
      %s86 = sphi 0, %s86
      %s88 = sphi 0, %s86
      %s89 = sphi 0, %s88
      %s103 = sphi 0, %s89
      %s107 = sphi 0, %s107
      %s109 = sphi 0, %s107
      %s110 = sphi 0, %s109
      %s124 = sphi 0, %s110
      %s128 = sphi 0, %s128
      %s130 = sphi 0, %s128
      %s131 = sphi 0, %s130
      %s145 = sphi 0, %s131
      %s153 = sphi 0, %s155
      %s156 = sphi 0, %s153
      %s157 = sphi 0, %s156
      %s173 = sphi 0, %s157
      %s181 = sphi 0, %s183
      %s184 = sphi 0, %s181
      %s185 = sphi 0, %s184
      %s201 = sphi 0, %s185
      %s209 = sphi 0, %s211
      %s212 = sphi 0, %s209
      %s213 = sphi 0, %s212
      %s229 = sphi 0, %s213
    $region4: #{block_forward.3} parent=1 // loop_header_branch
      %20 = sbr.rel (%p18) target = $region8
    $region5: #{block_forward.3} parent=1 // loop_body
      %s22 = ssub.s32 %s17, 1
      %s23 = ssub.s32 %s17, 2
      %s30 = sadd.s32 1, %s25
      %p31 = scmp.ge.s32.totalorder %s30, 1
      %s32 = scalar_select %p31, 0, %s30
      %s33 = sadd.s32 1, %s24
      %s34 = scalar_select %p31, %s33, %s24
      %p35 = scmp.ge.s32.totalorder %s34, 2
      %s36 = scalar_select %p35, 0, %s34
      %s37 = ssub.s32 %s24, %s36
      %s38 = ssub.s32 %s25, %s32
      %s39 = sor.u32 %s37, %s38
      %p40 = scmp.eq.s32.totalorder %s39, 0
      %s42 = sadd.s32 %s41, 1
      %s43 = scalar_select %p40, %s41, %s42
      %p46 = pneg %p40
      %p47 = scmp.eq.s32.totalorder %s17, 1
      %p48 = por %p46, %p47
      %p49 = scmp.ne.s32.totalorder %s41, %s44
      %p50 = scmp.eq.s32.totalorder %s17, 0
      %p51 = por %p49, %p50
      %p52 = scmp.ne.s32.totalorder %s41, %s44
      %p53 = scmp.eq.s32.totalorder %s22, 1
      %p54 = por %p52, %p53
      %p55 = scmp.ne.s32.totalorder %s44, %s45
      %p56 = scmp.eq.s32.totalorder %s22, 0
      %p57 = por %p55, %p56
      %p58 = scmp.ne.s32.totalorder %s44, %s45
      %p59 = scmp.eq.s32.totalorder %s23, 1
      %p60 = por %p58, %p59
      %p62 = scmp.ne.s32.totalorder %s45, %s61
      %p63 = scmp.eq.s32.totalorder %s23, 0
      %p64 = por %p62, %p63
      %s66 = sadd.s32 %s65, 1
      %p69 = scmp.eq.s32.totalorder %s17, 1
      %p70 = scmp.ne.s32.totalorder %s65, %s67
      %p71 = scmp.eq.s32.totalorder %s17, 0
      %p72 = por %p70, %p71
      %p73 = scmp.ne.s32.totalorder %s65, %s67
      %p74 = scmp.eq.s32.totalorder %s22, 1
      %p75 = por %p73, %p74
      %p76 = scmp.ne.s32.totalorder %s67, %s68
      %p77 = scmp.eq.s32.totalorder %s22, 0
      %p78 = por %p76, %p77
      %p79 = scmp.ne.s32.totalorder %s67, %s68
      %p80 = scmp.eq.s32.totalorder %s23, 1
      %p81 = por %p79, %p80
      %p83 = scmp.ne.s32.totalorder %s68, %s82
      %p84 = scmp.eq.s32.totalorder %s23, 0
      %p85 = por %p83, %p84
      %s87 = sadd.s32 %s86, 1
      %p90 = scmp.eq.s32.totalorder %s17, 1
      %p91 = scmp.ne.s32.totalorder %s86, %s88
      %p92 = scmp.eq.s32.totalorder %s17, 0
      %p93 = por %p91, %p92
      %p94 = scmp.ne.s32.totalorder %s86, %s88
      %p95 = scmp.eq.s32.totalorder %s22, 1
      %p96 = por %p94, %p95
      %p97 = scmp.ne.s32.totalorder %s88, %s89
      %p98 = scmp.eq.s32.totalorder %s22, 0
      %p99 = por %p97, %p98
      %p100 = scmp.ne.s32.totalorder %s88, %s89
      %p101 = scmp.eq.s32.totalorder %s23, 1
      %p102 = por %p100, %p101
      %p104 = scmp.ne.s32.totalorder %s89, %s103
      %p105 = scmp.eq.s32.totalorder %s23, 0
      %p106 = por %p104, %p105
      %s108 = sadd.s32 %s107, 1
      %p111 = scmp.eq.s32.totalorder %s17, 1
      %p112 = scmp.ne.s32.totalorder %s107, %s109
      %p113 = scmp.eq.s32.totalorder %s17, 0
      %p114 = por %p112, %p113
      %p115 = scmp.ne.s32.totalorder %s107, %s109
      %p116 = scmp.eq.s32.totalorder %s22, 1
      %p117 = por %p115, %p116
      %p118 = scmp.ne.s32.totalorder %s109, %s110
      %p119 = scmp.eq.s32.totalorder %s22, 0
      %p120 = por %p118, %p119
      %p121 = scmp.ne.s32.totalorder %s109, %s110
      %p122 = scmp.eq.s32.totalorder %s23, 1
      %p123 = por %p121, %p122
      %p125 = scmp.ne.s32.totalorder %s110, %s124
      %p126 = scmp.eq.s32.totalorder %s23, 0
      %p127 = por %p125, %p126
      %s129 = sadd.s32 %s128, 1
      %p132 = scmp.eq.s32.totalorder %s17, 1
      %p133 = scmp.ne.s32.totalorder %s128, %s130
      %p134 = scmp.eq.s32.totalorder %s17, 0
      %p135 = por %p133, %p134
      %p136 = scmp.ne.s32.totalorder %s128, %s130
      %p137 = scmp.eq.s32.totalorder %s22, 1
      %p138 = por %p136, %p137
      %p139 = scmp.ne.s32.totalorder %s130, %s131
      %p140 = scmp.eq.s32.totalorder %s22, 0
      %p141 = por %p139, %p140
      %p142 = scmp.ne.s32.totalorder %s130, %s131
      %p143 = scmp.eq.s32.totalorder %s23, 1
      %p144 = por %p142, %p143
      %p146 = scmp.ne.s32.totalorder %s131, %s145
      %p147 = scmp.eq.s32.totalorder %s23, 0
      %p148 = por %p146, %p147
      %s149 = ssub.s32 %s24, %s36
      %s150 = ssub.s32 %s25, %s32
      %s151 = sor.u32 %s149, %s150
      %p152 = scmp.eq.s32.totalorder %s151, 0
      %s154 = sadd.s32 %s153, 1
      %s155 = scalar_select %p152, %s153, %s154
      %p158 = pneg %p152
      %p159 = scmp.eq.s32.totalorder %s17, 1
      %p160 = por %p158, %p159
      %p161 = scmp.ne.s32.totalorder %s153, %s156
      %p162 = scmp.eq.s32.totalorder %s17, 0
      %p163 = por %p161, %p162
      %p164 = scmp.ne.s32.totalorder %s153, %s156
      %p165 = scmp.eq.s32.totalorder %s22, 1
      %p166 = por %p164, %p165
      %p167 = scmp.ne.s32.totalorder %s156, %s157
      %p168 = scmp.eq.s32.totalorder %s22, 0
      %p169 = por %p167, %p168
      %p170 = scmp.ne.s32.totalorder %s156, %s157
      %p171 = scmp.eq.s32.totalorder %s23, 1
      %p172 = por %p170, %p171
      %p174 = scmp.ne.s32.totalorder %s157, %s173
      %p175 = scmp.eq.s32.totalorder %s23, 0
      %p176 = por %p174, %p175
      %s177 = ssub.s32 %s24, %s36
      %s178 = ssub.s32 %s25, %s32
      %s179 = sor.u32 %s177, %s178
      %p180 = scmp.eq.s32.totalorder %s179, 0
      %s182 = sadd.s32 %s181, 1
      %s183 = scalar_select %p180, %s181, %s182
      %p186 = pneg %p180
      %p187 = scmp.eq.s32.totalorder %s17, 1
      %p188 = por %p186, %p187
      %p189 = scmp.ne.s32.totalorder %s181, %s184
      %p190 = scmp.eq.s32.totalorder %s17, 0
      %p191 = por %p189, %p190
      %p192 = scmp.ne.s32.totalorder %s181, %s184
      %p193 = scmp.eq.s32.totalorder %s22, 1
      %p194 = por %p192, %p193
      %p195 = scmp.ne.s32.totalorder %s184, %s185
      %p196 = scmp.eq.s32.totalorder %s22, 0
      %p197 = por %p195, %p196
      %p198 = scmp.ne.s32.totalorder %s184, %s185
      %p199 = scmp.eq.s32.totalorder %s23, 1
      %p200 = por %p198, %p199
      %p202 = scmp.ne.s32.totalorder %s185, %s201
      %p203 = scmp.eq.s32.totalorder %s23, 0
      %p204 = por %p202, %p203
      %s205 = ssub.s32 %s24, %s36
      %s206 = ssub.s32 %s25, %s32
      %s207 = sor.u32 %s205, %s206
      %p208 = scmp.eq.s32.totalorder %s207, 0
      %s210 = sadd.s32 %s209, 1
      %s211 = scalar_select %p208, %s209, %s210
      %p214 = pneg %p208
      %p215 = scmp.eq.s32.totalorder %s17, 1
      %p216 = por %p214, %p215
      %p217 = scmp.ne.s32.totalorder %s209, %s212
      %p218 = scmp.eq.s32.totalorder %s17, 0
      %p219 = por %p217, %p218
      %p220 = scmp.ne.s32.totalorder %s209, %s212
      %p221 = scmp.eq.s32.totalorder %s22, 1
      %p222 = por %p220, %p221
      %p223 = scmp.ne.s32.totalorder %s212, %s213
      %p224 = scmp.eq.s32.totalorder %s22, 0
      %p225 = por %p223, %p224
      %p226 = scmp.ne.s32.totalorder %s212, %s213
      %p227 = scmp.eq.s32.totalorder %s23, 1
      %p228 = por %p226, %p227
      %p230 = scmp.ne.s32.totalorder %s213, %s229
      %p231 = scmp.eq.s32.totalorder %s23, 0
      %p232 = por %p230, %p231
      %p233 = scmp.le.s32.totalorder 1, %s17
      %p234 = scmp.lt.s32.totalorder %s17, 3
      %p235 = pnand %p233, %p234
      %p236 = pneg %p235
      // Predicated region
      $region9: #{block_forward.3} parent=5 // pred_check
        _
      $region10: #{block_forward.3} parent=5 // pred_check_branch
        %238 = sbr.rel (%p235) target = $region12
      $region11: #{block_forward.3} parent=5 // pred_region
        %s239 = ssub.s32 %s17, 1
        // Predicated region
        $region13: #{block_forward.3} parent=11 // pred_check
          %p240 = pneg %p78
        $region14: #{block_forward.3} parent=11 // pred_check_branch
          %242 = sbr.rel (%p240) target = $region16
        $region15: #{block_forward.3} parent=11 // pred_region
          _
        $region16: #{block_forward.3} parent=11 // pred_fallthru
          _
        // Predicated region
        $region17: #{block_forward.3} parent=11 // pred_check
          %p243 = pneg %p99
        $region18: #{block_forward.3} parent=11 // pred_check_branch
          %245 = sbr.rel (%p243) target = $region20
        $region19: #{block_forward.3} parent=11 // pred_region
          _
        $region20: #{block_forward.3} parent=11 // pred_fallthru
          _
        // Predicated region
        $region21: #{block_forward.3} parent=11 // pred_check
          %p246 = pneg %p120
        $region22: #{block_forward.3} parent=11 // pred_check_branch
          %248 = sbr.rel (%p246) target = $region24
        $region23: #{block_forward.3} parent=11 // pred_region
          _
        $region24: #{block_forward.3} parent=11 // pred_fallthru
          _
        // Predicated region
        $region25: #{block_forward.3} parent=11 // pred_check
          %p249 = pneg %p141
        $region26: #{block_forward.3} parent=11 // pred_check_branch
          %251 = sbr.rel (%p249) target = $region28
        $region27: #{block_forward.3} parent=11 // pred_region
          _
        $region28: #{block_forward.3} parent=11 // pred_fallthru
          _
      $region12: #{block_forward.3} parent=5 // pred_fallthru
        _
      %p252 = scmp.lt.s32.totalorder %s17, 2
      // Predicated region
      $region29: #{block_forward.3} parent=5 // pred_check
        %p253 = pneg %p252
      $region30: #{block_forward.3} parent=5 // pred_check_branch
        %255 = sbr.rel (%p253) target = $region32
      $region31: #{block_forward.3} parent=5 // pred_region
        // Predicated region
        $region33: #{block_forward.3} parent=31 // pred_check
          %p256 = pneg %p51
        $region34: #{block_forward.3} parent=31 // pred_check_branch
          %258 = sbr.rel (%p256) target = $region36
        $region35: #{block_forward.3} parent=31 // pred_region
          %s259 = sand.u32 %s41, 1
          %s260 = scalar_lea.sflag [#allocation3], %s259
          %s261 = sand.u32 %s41, 1
          %s262 = smul.addr %s261, 64
          %s263 = scalar_lea.vmem [#allocation2], %s262
          %s264 = smul.u32 8, %s25
          %s266 = ssub.s32 1024, 1024
          %267 = vsyncadd %s260, %s266
          %s268 = smul.addr %s24, 8
          %s269 = sadd.s32 %s264, %s268
          %s270 = smul.addr %s269, 128
          %s271 = scalar_lea.hbm %s0, %s270
          %s272 = sshll.u32 %s263, 4
          %s273 = int_to_ptr.vmem [resolvable:$true] %s272
          %278 = dma.hbm_to_vmem [thread:$0]  %s271, 1024, %s273, %s260, 128, 128, 8
        $region36: #{block_forward.3} parent=31 // pred_fallthru
          _
      $region32: #{block_forward.3} parent=5 // pred_fallthru
        _
      %p279 = scmp.le.s32.totalorder 1, %s17
      %p280 = scmp.lt.s32.totalorder %s17, 3
      %p281 = pnand %p279, %p280
      %p282 = pneg %p281
      // Predicated region
      $region37: #{block_forward.3} parent=5 // pred_check
        _
      $region38: #{block_forward.3} parent=5 // pred_check_branch
        %284 = sbr.rel (%p281) target = $region40
      $region39: #{block_forward.3} parent=5 // pred_region
        %s285 = ssub.s32 %s17, 1
        %s286 = sand.u32 %s44, 1
        %s287 = scalar_lea.sflag [#allocation3], %s286
        %s288 = sand.u32 %s44, 1
        %s289 = smul.addr %s288, 64
        %s290 = scalar_lea.vmem [#allocation2], %s289
        // Predicated region
        $region41: #{block_forward.3} parent=39 // pred_check
          %p291 = pneg %p57
        $region42: #{block_forward.3} parent=39 // pred_check_branch
          %293 = sbr.rel (%p291) target = $region44
        $region43: #{block_forward.3} parent=39 // pred_region
          %294 = dma.done %s287, 1024
        $region44: #{block_forward.3} parent=39 // pred_fallthru
          _
        %s295 = sand.u32 %s44, 1
        %s296 = scalar_lea.sflag [#allocation3], %s295
        %s297 = sand.u32 %s44, 1
        %s298 = smul.addr %s297, 64
        %s299 = scalar_lea.vmem [#allocation2], %s298
        %p300 = pneg %p57
        %p301 = pneg %p54
        %p302 = pneg %p78
        %p303 = pneg %p75
        %p304 = pneg %p99
        %p305 = pneg %p96
        %p306 = pneg %p120
        %p307 = pneg %p117
        %p308 = pneg %p141
        %p309 = pneg %p138
        %p310 = pneg %p169
        %p311 = pneg %p166
        %s312 = smul.u32 8, %s27
        %p313 = scmp.lt.s32.totalorder %s26, 1
        %s314 = scalar_select %p313, %s26, 1
        %p315 = scmp.lt.s32.totalorder %s312, 7
        %s316 = scalar_select %p315, %s312, 7
        %s317 = smul.addr %s314, 8
        %s318 = sadd.s32 %s316, %s317
        %s319 = smul.addr %s318, 4
        %s320 = scalar_lea.vmem %s5, %s319
        %p321 = pneg %p197
        %p322 = pneg %p194
        %s323 = smul.u32 8, %s27
        %p324 = scmp.lt.s32.totalorder %s26, 1
        %s325 = scalar_select %p324, %s26, 1
        %p326 = scmp.lt.s32.totalorder %s323, 7
        %s327 = scalar_select %p326, %s323, 7
        %s328 = smul.addr %s325, 8
        %s329 = sadd.s32 %s327, %s328
        %s330 = smul.addr %s329, 4
        %s331 = scalar_lea.vmem %s6, %s330
        %p332 = pneg %p225
        %p333 = pneg %p222
        %s334 = smul.u32 8, %s27
        %p335 = scmp.lt.s32.totalorder %s26, 1
        %s336 = scalar_select %p335, %s26, 1
        %p337 = scmp.lt.s32.totalorder %s334, 7
        %s338 = scalar_select %p337, %s334, 7
        %s339 = smul.addr %s336, 8
        %s340 = sadd.s32 %s338, %s339
        %s341 = smul.addr %s340, 4
        %s342 = scalar_lea.vmem %s7, %s341
        %s343 = smul.u32 8, %s27
        %s344 = smul.u32 8, %s27
        %p345 = scmp.lt.s32.totalorder %s26, 1
        %s346 = scalar_select %p345, %s26, 1
        %p347 = scmp.lt.s32.totalorder %s344, 7
        %s348 = scalar_select %p347, %s344, 7
        %s349 = smul.addr %s346, 8
        %s350 = sadd.s32 %s348, %s349
        %s351 = smul.addr %s350, 4
        %s352 = scalar_lea.vmem %s5, %s351
        %s353 = smul.u32 8, %s27
        %s354 = smul.u32 8, %s27
        %p355 = scmp.lt.s32.totalorder %s26, 1
        %s356 = scalar_select %p355, %s26, 1
        %p357 = scmp.lt.s32.totalorder %s354, 7
        %s358 = scalar_select %p357, %s354, 7
        %s359 = smul.addr %s356, 8
        %s360 = sadd.s32 %s358, %s359
        %s361 = smul.addr %s360, 4
        %s362 = scalar_lea.vmem %s6, %s361
        %s363 = smul.u32 8, %s27
        %s364 = smul.u32 8, %s27
        %p365 = scmp.lt.s32.totalorder %s26, 1
        %s366 = scalar_select %p365, %s26, 1
        %p367 = scmp.lt.s32.totalorder %s364, 7
        %s368 = scalar_select %p367, %s364, 7
        %s369 = smul.addr %s366, 8
        %s370 = sadd.s32 %s368, %s369
        %s371 = smul.addr %s370, 4
        %s372 = scalar_lea.vmem %s7, %s371
        %s373 = smul.u32 8, %s27
        %v375 = vld [vmem:[%s290] sm:$0xff]
        %v376 = vld [vmem:[%s290 + $0x8] sm:$0xff]
        %v377 = vld [vmem:[%s290 + $0x10] sm:$0xff]
        %v378 = vld [vmem:[%s290 + $0x18] sm:$0xff]
        %v379 = vld [vmem:[%s290 + $0x20] sm:$0xff]
        %v380 = vld [vmem:[%s290 + $0x28] sm:$0xff]
        %v381 = vld [vmem:[%s290 + $0x30] sm:$0xff]
        %v382 = vld [vmem:[%s290 + $0x38] sm:$0xff]
        %v383 = vld [vmem:[%s1] sm:$0x1]
        %v384 = vld [vmem:[%s2] sm:$0x1]
        %vm385 = vcmask 261120
        %v386 = vsel %vm385, %v375, 0.0
        %387 = vadd.xlane.f32.xlu0 %v386
        %v388 = vpop.xlane.xlu0 %387
        %v389 = vsel %vm385, %v376, 0.0
        %390 = vadd.xlane.f32.xlu0 %v389
        %v391 = vpop.xlane.xlu0 %390
        %v392 = vsel %vm385, %v377, 0.0
        %393 = vadd.xlane.f32.xlu0 %v392
        %v394 = vpop.xlane.xlu0 %393
        %v395 = vsel %vm385, %v378, 0.0
        %396 = vadd.xlane.f32.xlu0 %v395
        %v397 = vpop.xlane.xlu0 %396
        %v398 = vsel %vm385, %v379, 0.0
        %399 = vadd.xlane.f32.xlu0 %v398
        %v400 = vpop.xlane.xlu0 %399
        %v401 = vsel %vm385, %v380, 0.0
        %402 = vadd.xlane.f32.xlu0 %v401
        %v403 = vpop.xlane.xlu0 %402
        %v404 = vsel %vm385, %v381, 0.0
        %405 = vadd.xlane.f32.xlu0 %v404
        %v406 = vpop.xlane.xlu0 %405
        %v407 = vsel %vm385, %v382, 0.0
        %408 = vadd.xlane.f32.xlu0 %v407
        %v409 = vpop.xlane.xlu0 %408
        %v410 = vrcp.pop 32.0
        %v411 = vmul.f32 %v388, %v410
        %v412 = vmul.f32 %v391, %v410
        %v413 = vmul.f32 %v394, %v410
        %v414 = vmul.f32 %v397, %v410
        %v415 = vmul.f32 %v400, %v410
        %v416 = vmul.f32 %v403, %v410
        %v417 = vmul.f32 %v406, %v410
        %v418 = vmul.f32 %v409, %v410
        %v419 = vsub.f32 %v375, %v411
        %v420 = vsub.f32 %v376, %v412
        %v421 = vsub.f32 %v377, %v413
        %v422 = vsub.f32 %v378, %v414
        %v423 = vsub.f32 %v379, %v415
        %v424 = vsub.f32 %v380, %v416
        %v425 = vsub.f32 %v381, %v417
        %v426 = vsub.f32 %v382, %v418
        %v427 = vmul.f32 %v419, %v419
        %v428 = vmul.f32 %v420, %v420
        %v429 = vmul.f32 %v421, %v421
        %v430 = vmul.f32 %v422, %v422
        %v431 = vmul.f32 %v423, %v423
        %v432 = vmul.f32 %v424, %v424
        %v433 = vmul.f32 %v425, %v425
        %v434 = vmul.f32 %v426, %v426
        %v435 = vsel %vm385, %v427, 0.0
        %436 = vadd.xlane.f32.xlu0 %v435
        %v437 = vpop.xlane.xlu0 %436
        %v438 = vsel %vm385, %v428, 0.0
        %439 = vadd.xlane.f32.xlu0 %v438
        %v440 = vpop.xlane.xlu0 %439
        %v441 = vsel %vm385, %v429, 0.0
        %442 = vadd.xlane.f32.xlu0 %v441
        %v443 = vpop.xlane.xlu0 %442
        %v444 = vsel %vm385, %v430, 0.0
        %445 = vadd.xlane.f32.xlu0 %v444
        %v446 = vpop.xlane.xlu0 %445
        %v447 = vsel %vm385, %v431, 0.0
        %448 = vadd.xlane.f32.xlu0 %v447
        %v449 = vpop.xlane.xlu0 %448
        %v450 = vsel %vm385, %v432, 0.0
        %451 = vadd.xlane.f32.xlu0 %v450
        %v452 = vpop.xlane.xlu0 %451
        %v453 = vsel %vm385, %v433, 0.0
        %454 = vadd.xlane.f32.xlu0 %v453
        %v455 = vpop.xlane.xlu0 %454
        %v456 = vsel %vm385, %v434, 0.0
        %457 = vadd.xlane.f32.xlu0 %v456
        %v458 = vpop.xlane.xlu0 %457
        %v459 = vmul.f32 %v437, %v410
        %v460 = vmul.f32 %v440, %v410
        %v461 = vmul.f32 %v443, %v410
        %v462 = vmul.f32 %v446, %v410
        %v463 = vmul.f32 %v449, %v410
        %v464 = vmul.f32 %v452, %v410
        %v465 = vmul.f32 %v455, %v410
        %v466 = vmul.f32 %v458, %v410
        %v467 = vadd.f32 %v459, 1e-05
        %v468 = vadd.f32 %v460, 1e-05
        %v469 = vadd.f32 %v461, 1e-05
        %v470 = vadd.f32 %v462, 1e-05
        %v471 = vadd.f32 %v463, 1e-05
        %v472 = vadd.f32 %v464, 1e-05
        %v473 = vadd.f32 %v465, 1e-05
        %v474 = vadd.f32 %v466, 1e-05
        %v475 = vrsqrt.pop %v467
        %v476 = vrsqrt.pop %v468
        %v477 = vrsqrt.pop %v469
        %v478 = vrsqrt.pop %v470
        %v479 = vrsqrt.pop %v471
        %v480 = vrsqrt.pop %v472
        %v481 = vrsqrt.pop %v473
        %v482 = vrsqrt.pop %v474
        %v483 = vmul.f32 %v419, %v475
        %v484 = vmul.f32 %v420, %v476
        %v485 = vmul.f32 %v421, %v477
        %v486 = vmul.f32 %v422, %v478
        %v487 = vmul.f32 %v423, %v479
        %v488 = vmul.f32 %v424, %v480
        %v489 = vmul.f32 %v425, %v481
        %v490 = vmul.f32 %v426, %v482
        %v492 = vlaneseq
        %v493 = vshrl.u32 %v492, 7
        %v494 = vsub.s32 0, %v493
        %v495 = vrot.slane %v383, %v494
        %v497 = vmul.f32 %v483, %v495
        %v498 = vmul.f32 %v484, %v495
        %v499 = vmul.f32 %v485, %v495
        %v500 = vmul.f32 %v486, %v495
        %v501 = vmul.f32 %v487, %v495
        %v502 = vmul.f32 %v488, %v495
        %v503 = vmul.f32 %v489, %v495
        %v504 = vmul.f32 %v490, %v495
        %v506 = vlaneseq
        %v507 = vshrl.u32 %v506, 7
        %v508 = vsub.s32 0, %v507
        %v509 = vrot.slane %v384, %v508
        %v511 = vadd.f32 %v497, %v509
        %v512 = vadd.f32 %v498, %v509
        %v513 = vadd.f32 %v499, %v509
        %v514 = vadd.f32 %v500, %v509
        %v515 = vadd.f32 %v501, %v509
        %v516 = vadd.f32 %v502, %v509
        %v517 = vadd.f32 %v503, %v509
        %v518 = vadd.f32 %v504, %v509
        %v519 = vpack.c.bf16 %v512, %v511
        %v520 = vpack.c.bf16 %v514, %v513
        %v521 = vpack.c.bf16 %v516, %v515
        %v522 = vpack.c.bf16 %v518, %v517
        %v523 = vld [vmem:[%s3] sm:$0xf]
        %v524 = vld [vmem:[%s3 + $0x4] sm:$0xf]
        %v525 = vld [vmem:[%s3 + $0x8] sm:$0xf]
        %v526 = vld [vmem:[%s3 + $0xc] sm:$0xf]
        %v527 = vld [vmem:[%s4] sm:$0x1]
        %v529 = vlaneseq
        %v530 = vshrl.u32 %v529, 7
        %v531 = vsub.s32 0, %v530
        %v532 = vrot.slane %v527, %v531
        %v538 = vunpack.c.l.b16 %v523
        %v539 = vunpack.c.l.b16 %v524
        %v540 = vunpack.c.l.b16 %v525
        %v541 = vunpack.c.l.b16 %v526
        %v542 = vpack.c.b16 %v539, %v538
        %v543 = vpack.c.b16 %v541, %v540
        %v547 = vsel %vm385, %v519, 0
        %v550 = vsel %vm385, %v520, 0
        %v553 = vsel %vm385, %v521, 0
        %v556 = vsel %vm385, %v522, 0
        %558 = vmatprep.subr.bf16.mxu0 0
        %559 = vmatpush1.bf16.msra.mxu0 0
        %560 = vmatprep.subr.bf16.mxu0 0
        %561 = vmatpush1.bf16.msra.mxu0 0
        %562 = vmatprep.subr.bf16.mxu0 0
        %563 = vmatpush1.bf16.msra.mxu0 0
        %564 = vmatprep.subr.bf16.mxu0 0
        %565 = vmatpush1.bf16.msra.mxu0 0
        %566 = vmatprep.subr.bf16.mxu0 0
        %567 = vmatpush1.bf16.msra.mxu0 0
        %568 = vmatprep.subr.bf16.mxu0 0
        %569 = vmatpush1.bf16.msra.mxu0 0
        %570 = vmatprep.subr.bf16.mxu0 0
        %571 = vmatpush1.bf16.msra.mxu0 %v543
        %572 = vmatprep.subr.bf16.mxu0 0
        %573 = vmatpush1.bf16.msra.mxu0 %v542
        %574 = vmatprep.subr.bf16.mxu0 0
        %575 = vmatpush2.bf16.msra.mxu0 0
        %576 = vmatprep.subr.bf16.mxu0 0
        %577 = vmatpush2.bf16.msra.mxu0 0
        %578 = vmatprep.subr.bf16.mxu0 0
        %579 = vmatpush2.bf16.msra.mxu0 0
        %580 = vmatprep.subr.bf16.mxu0 0
        %581 = vmatpush2.bf16.msra.mxu0 0
        %582 = vmatprep.subr.bf16.mxu0 0
        %583 = vmatpush2.bf16.msra.mxu0 0
        %584 = vmatprep.subr.bf16.mxu0 0
        %585 = vmatpush2.bf16.msra.mxu0 0
        %586 = vmatprep.subr.bf16.mxu0 0
        %587 = vmatpush2.bf16.msra.mxu0 0
        %588 = vmatprep.subr.bf16.mxu0 0
        %589 = vmatpush2.bf16.msra.mxu0 0
        %590 = vmatprep.mubr.bf16.mxu0 0
        %591 = vmatmul.mubr.bf16.gmra.mxu0 %v547
        %v592 = vpop.f32.mrf.mxu0
        %v593 = vadd.f32 %v532, %v592
        %v594 = vpop.f32.mrf.mxu0
        %v595 = vpop.f32.mrf.mxu0
        %v596 = vadd.f32 %v532, %v595
        %v597 = vpop.f32.mrf.mxu0
        %598 = vmatprep.mubr.bf16.mxu0 0
        %599 = vmatmul.mubr.bf16.gmra.mxu0 %v550
        %v600 = vpop.f32.mrf.mxu0
        %v601 = vadd.f32 %v532, %v600
        %v602 = vpop.f32.mrf.mxu0
        %v603 = vpop.f32.mrf.mxu0
        %v604 = vadd.f32 %v532, %v603
        %v605 = vpop.f32.mrf.mxu0
        %606 = vmatprep.mubr.bf16.mxu0 0
        %607 = vmatmul.mubr.bf16.gmra.mxu0 %v553
        %v608 = vpop.f32.mrf.mxu0
        %v609 = vadd.f32 %v532, %v608
        %v610 = vpop.f32.mrf.mxu0
        %v611 = vpop.f32.mrf.mxu0
        %v612 = vadd.f32 %v532, %v611
        %v613 = vpop.f32.mrf.mxu0
        %614 = vmatprep.mubr.bf16.mxu0 0
        %615 = vmatmul.mubr.bf16.gmra.mxu0 %v556
        %v616 = vpop.f32.mrf.mxu0
        %v617 = vadd.f32 %v532, %v616
        %v618 = vpop.f32.mrf.mxu0
        %v619 = vpop.f32.mrf.mxu0
        %v620 = vadd.f32 %v532, %v619
        %v621 = vpop.f32.mrf.mxu0
        %622 = vdwg.mxu0
        %v623 = vpack.c.bf16 %v596, %v593
        %v624 = vpack.c.bf16 %v604, %v601
        %v625 = vpack.c.bf16 %v612, %v609
        %v626 = vpack.c.bf16 %v620, %v617
        %v631 = vunpack.c.l.b16 %v623
        %v632 = vunpack.c.h.b16 %v623
        %v633 = vunpack.c.l.b16 %v624
        %v634 = vunpack.c.h.b16 %v624
        %v635 = vunpack.c.l.b16 %v625
        %v636 = vunpack.c.h.b16 %v625
        %v637 = vunpack.c.l.b16 %v626
        %v638 = vunpack.c.h.b16 %v626
        %v639 = vpack.c.b16 %v631, %v631
        %v640 = vpack.c.b16 %v632, %v632
        %v641 = vpack.c.b16 %v633, %v633
        %v642 = vpack.c.b16 %v634, %v634
        %v643 = vpack.c.b16 %v635, %v635
        %v644 = vpack.c.b16 %v636, %v636
        %v645 = vpack.c.b16 %v637, %v637
        %v646 = vpack.c.b16 %v638, %v638
        %vm655 = vcmask 257024
        %656 = vst.msk [vmem:[%s352] sm:$0xf] %vm655, %v639
        %657 = vst.msk [vmem:[%s352 + $0x4] sm:$0xf] %vm655, %v640
        %658 = vst.msk [vmem:[%s352 + $0x8] sm:$0xf] %vm655, %v641
        %659 = vst.msk [vmem:[%s352 + $0xc] sm:$0xf] %vm655, %v642
        %660 = vst.msk [vmem:[%s352 + $0x10] sm:$0xf] %vm655, %v643
        %661 = vst.msk [vmem:[%s352 + $0x14] sm:$0xf] %vm655, %v644
        %662 = vst.msk [vmem:[%s352 + $0x18] sm:$0xf] %vm655, %v645
        %663 = vst.msk [vmem:[%s352 + $0x1c] sm:$0xf] %vm655, %v646
        %664 = vrot.lane.b32.xlu0 %v639, 96
        %v665 = vpop.permute.xlu0 %664
        %666 = vrot.lane.b32.xlu0 %v640, 96
        %v667 = vpop.permute.xlu0 %666
        %668 = vrot.lane.b32.xlu0 %v641, 96
        %v669 = vpop.permute.xlu0 %668
        %670 = vrot.lane.b32.xlu0 %v642, 96
        %v671 = vpop.permute.xlu0 %670
        %672 = vrot.lane.b32.xlu0 %v643, 96
        %v673 = vpop.permute.xlu0 %672
        %674 = vrot.lane.b32.xlu0 %v644, 96
        %v675 = vpop.permute.xlu0 %674
        %676 = vrot.lane.b32.xlu0 %v645, 96
        %v677 = vpop.permute.xlu0 %676
        %678 = vrot.lane.b32.xlu0 %v646, 96
        %v679 = vpop.permute.xlu0 %678
        %688 = vst.msk [vmem:[%s362] sm:$0xf] %vm655, %v665
        %689 = vst.msk [vmem:[%s362 + $0x4] sm:$0xf] %vm655, %v667
        %690 = vst.msk [vmem:[%s362 + $0x8] sm:$0xf] %vm655, %v669
        %691 = vst.msk [vmem:[%s362 + $0xc] sm:$0xf] %vm655, %v671
        %692 = vst.msk [vmem:[%s362 + $0x10] sm:$0xf] %vm655, %v673
        %693 = vst.msk [vmem:[%s362 + $0x14] sm:$0xf] %vm655, %v675
        %694 = vst.msk [vmem:[%s362 + $0x18] sm:$0xf] %vm655, %v677
        %695 = vst.msk [vmem:[%s362 + $0x1c] sm:$0xf] %vm655, %v679
        %696 = vrot.lane.b32.xlu0 %v639, 64
        %v697 = vpop.permute.xlu0 %696
        %698 = vrot.lane.b32.xlu0 %v640, 64
        %v699 = vpop.permute.xlu0 %698
        %700 = vrot.lane.b32.xlu0 %v641, 64
        %v701 = vpop.permute.xlu0 %700
        %702 = vrot.lane.b32.xlu0 %v642, 64
        %v703 = vpop.permute.xlu0 %702
        %704 = vrot.lane.b32.xlu0 %v643, 64
        %v705 = vpop.permute.xlu0 %704
        %706 = vrot.lane.b32.xlu0 %v644, 64
        %v707 = vpop.permute.xlu0 %706
        %708 = vrot.lane.b32.xlu0 %v645, 64
        %v709 = vpop.permute.xlu0 %708
        %710 = vrot.lane.b32.xlu0 %v646, 64
        %v711 = vpop.permute.xlu0 %710
        %720 = vst.msk [vmem:[%s372] sm:$0xf] %vm655, %v697
        %721 = vst.msk [vmem:[%s372 + $0x4] sm:$0xf] %vm655, %v699
        %722 = vst.msk [vmem:[%s372 + $0x8] sm:$0xf] %vm655, %v701
        %723 = vst.msk [vmem:[%s372 + $0xc] sm:$0xf] %vm655, %v703
        %724 = vst.msk [vmem:[%s372 + $0x10] sm:$0xf] %vm655, %v705
        %725 = vst.msk [vmem:[%s372 + $0x14] sm:$0xf] %vm655, %v707
        %726 = vst.msk [vmem:[%s372 + $0x18] sm:$0xf] %vm655, %v709
        %727 = vst.msk [vmem:[%s372 + $0x1c] sm:$0xf] %vm655, %v711
        %s728 = smul.u32 8, %s27
        %p729 = scmp.lt.s32.totalorder %s26, 1
        %s730 = scalar_select %p729, %s26, 1
        %p731 = scmp.lt.s32.totalorder %s728, 7
        %s732 = scalar_select %p731, %s728, 7
        %s733 = smul.addr %s730, 8
        %s734 = sadd.s32 %s732, %s733
        %s735 = smul.addr %s734, 4
        %s736 = scalar_lea.vmem %s5, %s735
        %s737 = smul.u32 8, %s27
        %p738 = scmp.lt.s32.totalorder %s26, 1
        %s739 = scalar_select %p738, %s26, 1
        %p740 = scmp.lt.s32.totalorder %s737, 7
        %s741 = scalar_select %p740, %s737, 7
        %s742 = smul.addr %s739, 8
        %s743 = sadd.s32 %s741, %s742
        %s744 = smul.addr %s743, 4
        %s745 = scalar_lea.vmem %s6, %s744
        %s746 = smul.u32 8, %s27
        %p747 = scmp.lt.s32.totalorder %s26, 1
        %s748 = scalar_select %p747, %s26, 1
        %p749 = scmp.lt.s32.totalorder %s746, 7
        %s750 = scalar_select %p749, %s746, 7
        %s751 = smul.addr %s748, 8
        %s752 = sadd.s32 %s750, %s751
        %s753 = smul.addr %s752, 4
        %s754 = scalar_lea.vmem %s7, %s753
        // Predicated region
        $region45: #{block_forward.3} parent=39 // pred_check
          %p755 = pneg %p166
        $region46: #{block_forward.3} parent=39 // pred_check_branch
          %757 = sbr.rel (%p755) target = $region48
        $region47: #{block_forward.3} parent=39 // pred_region
          %s758 = smul.u32 8, %s27
        $region48: #{block_forward.3} parent=39 // pred_fallthru
          _
        // Predicated region
        $region49: #{block_forward.3} parent=39 // pred_check
          %p759 = pneg %p194
        $region50: #{block_forward.3} parent=39 // pred_check_branch
          %761 = sbr.rel (%p759) target = $region52
        $region51: #{block_forward.3} parent=39 // pred_region
          %s762 = smul.u32 8, %s27
        $region52: #{block_forward.3} parent=39 // pred_fallthru
          _
        // Predicated region
        $region53: #{block_forward.3} parent=39 // pred_check
          %p763 = pneg %p222
        $region54: #{block_forward.3} parent=39 // pred_check_branch
          %765 = sbr.rel (%p763) target = $region56
        $region55: #{block_forward.3} parent=39 // pred_region
          %s766 = smul.u32 8, %s27
        $region56: #{block_forward.3} parent=39 // pred_fallthru
          _
      $region40: #{block_forward.3} parent=5 // pred_fallthru
        _
      %p767 = scmp.le.s32.totalorder 2, %s17
      // Predicated region
      $region57: #{block_forward.3} parent=5 // pred_check
        %p768 = pneg %p767
      $region58: #{block_forward.3} parent=5 // pred_check_branch
        %770 = sbr.rel (%p768) target = $region60
      $region59: #{block_forward.3} parent=5 // pred_region
        %s771 = ssub.s32 %s17, 2
        // Predicated region
        $region61: #{block_forward.3} parent=59 // pred_check
          %p772 = pneg %p172
        $region62: #{block_forward.3} parent=59 // pred_check_branch
          %774 = sbr.rel (%p772) target = $region64
        $region63: #{block_forward.3} parent=59 // pred_region
          %s775 = smul.u32 8, %s29
          %p776 = scmp.lt.s32.totalorder %s28, 1
          %s777 = scalar_select %p776, %s28, 1
          %p778 = scmp.lt.s32.totalorder %s775, 7
          %s779 = scalar_select %p778, %s775, 7
          %s780 = smul.addr %s777, 8
          %s781 = sadd.s32 %s779, %s780
          %s782 = smul.addr %s781, 4
          %s783 = scalar_lea.vmem %s5, %s782
        $region64: #{block_forward.3} parent=59 // pred_fallthru
          _
        // Predicated region
        $region65: #{block_forward.3} parent=59 // pred_check
          %p784 = pneg %p200
        $region66: #{block_forward.3} parent=59 // pred_check_branch
          %786 = sbr.rel (%p784) target = $region68
        $region67: #{block_forward.3} parent=59 // pred_region
          %s787 = smul.u32 8, %s29
          %p788 = scmp.lt.s32.totalorder %s28, 1
          %s789 = scalar_select %p788, %s28, 1
          %p790 = scmp.lt.s32.totalorder %s787, 7
          %s791 = scalar_select %p790, %s787, 7
          %s792 = smul.addr %s789, 8
          %s793 = sadd.s32 %s791, %s792
          %s794 = smul.addr %s793, 4
          %s795 = scalar_lea.vmem %s6, %s794
        $region68: #{block_forward.3} parent=59 // pred_fallthru
          _
        // Predicated region
        $region69: #{block_forward.3} parent=59 // pred_check
          %p796 = pneg %p228
        $region70: #{block_forward.3} parent=59 // pred_check_branch
          %798 = sbr.rel (%p796) target = $region72
        $region71: #{block_forward.3} parent=59 // pred_region
          %s799 = smul.u32 8, %s29
          %p800 = scmp.lt.s32.totalorder %s28, 1
          %s801 = scalar_select %p800, %s28, 1
          %p802 = scmp.lt.s32.totalorder %s799, 7
          %s803 = scalar_select %p802, %s799, 7
          %s804 = smul.addr %s801, 8
          %s805 = sadd.s32 %s803, %s804
          %s806 = smul.addr %s805, 4
          %s807 = scalar_lea.vmem %s7, %s806
        $region72: #{block_forward.3} parent=59 // pred_fallthru
          _
      $region60: #{block_forward.3} parent=5 // pred_fallthru
        _
    $region6: #{block_forward.3} parent=1 // loop_footer
      %s21 = sadd.s32 1, %s17
    $region7: #{block_forward.3} parent=1 // loop_footer_branch
      %16 = sbr.rel target = $region3
    $region8: #{block_forward.3} parent=1 // loop_exit
      _
    %808 = vsyncpa [#allocation3], 1
    %s809 = scalar_lea.sflag [#allocation3], 1
    %810 = vsyncpa %s809, 1

// kernel: block_forward.4
$region0: #{block_forward.4}
  #allocation0 [shape = 'u32[]', space=smem, size = 0x4, offset = 0x4, fixed_abs, tag = 'smem constant byte address 0x4 - core index']
  #allocation1 [shape = 'u32[144,128]{1,0:T(1,128)}', space=vmem, size = 0x12000, scoped, tag = 'internal scratch']
  %s0 = inlined_call_operand.vmem [shape: bf16[2,64,32], index: 0, kind: input, shape index: {}]
  %s1 = inlined_call_operand.vmem [shape: bf16[2,64,32], index: 1, kind: input, shape index: {}]
  %s2 = inlined_call_operand.vmem [shape: bf16[2,64,32], index: 2, kind: input, shape index: {}]
  %s3 = inlined_call_operand.vmem [shape: bf16[2,64,32], index: 3, kind: output, shape index: {}]
  %s4 = sld [smem:[#allocation0]]
  $region45: #{block_forward.4} parent=0
    _
  %s6 = ssub.s32 1, %s4
  %s7 = scalar_select 0, %s6, %s4
  loop: start=0, step=1, limit=4
  $region2: #{block_forward.4} parent=0 // loop_pre_header
    _
  $region3: #{block_forward.4} parent=0 // loop_header
    %s9 = sphi 0, %s13
    %p10 = scmp.ge.s32.totalorder %s9, 4
    %s16 = sphi 0, %s28
    %s17 = sphi 0, %s24
    %s18 = sphi 0, %s16
    %s19 = sphi 0, %s17
    %s20 = sphi 0, %s18
    %s21 = sphi 0, %s19
    %s33 = sphi 0, %s35
    %s36 = sphi 0, %s33
    %s37 = sphi 0, %s36
    %s53 = sphi 0, %s37
    %s61 = sphi 0, %s63
    %s64 = sphi 0, %s61
    %s65 = sphi 0, %s64
    %s81 = sphi 0, %s65
    %s89 = sphi 0, %s91
    %s92 = sphi 0, %s89
    %s93 = sphi 0, %s92
    %s109 = sphi 0, %s93
    %s117 = sphi 0, %s119
    %s120 = sphi 0, %s117
    %s121 = sphi 0, %s120
    %s137 = sphi 0, %s121
  $region4: #{block_forward.4} parent=0 // loop_header_branch
    %12 = sbr.rel (%p10) target = $region8
  $region5: #{block_forward.4} parent=0 // loop_body
    %s14 = ssub.s32 %s9, 1
    %s15 = ssub.s32 %s9, 2
    %s22 = sadd.s32 1, %s17
    %p23 = scmp.ge.s32.totalorder %s22, 1
    %s24 = scalar_select %p23, 0, %s22
    %s25 = sadd.s32 1, %s16
    %s26 = scalar_select %p23, %s25, %s16
    %p27 = scmp.ge.s32.totalorder %s26, 2
    %s28 = scalar_select %p27, 0, %s26
    %s29 = ssub.s32 %s16, %s28
    %s30 = ssub.s32 %s17, %s24
    %s31 = sor.u32 %s29, %s30
    %p32 = scmp.eq.s32.totalorder %s31, 0
    %s34 = sadd.s32 %s33, 1
    %s35 = scalar_select %p32, %s33, %s34
    %p38 = pneg %p32
    %p39 = scmp.eq.s32.totalorder %s9, 1
    %p40 = por %p38, %p39
    %p41 = scmp.ne.s32.totalorder %s33, %s36
    %p42 = scmp.eq.s32.totalorder %s9, 0
    %p43 = por %p41, %p42
    %p44 = scmp.ne.s32.totalorder %s33, %s36
    %p45 = scmp.eq.s32.totalorder %s14, 1
    %p46 = por %p44, %p45
    %p47 = scmp.ne.s32.totalorder %s36, %s37
    %p48 = scmp.eq.s32.totalorder %s14, 0
    %p49 = por %p47, %p48
    %p50 = scmp.ne.s32.totalorder %s36, %s37
    %p51 = scmp.eq.s32.totalorder %s15, 1
    %p52 = por %p50, %p51
    %p54 = scmp.ne.s32.totalorder %s37, %s53
    %p55 = scmp.eq.s32.totalorder %s15, 0
    %p56 = por %p54, %p55
    %s57 = ssub.s32 %s16, %s28
    %s58 = ssub.s32 %s17, %s24
    %s59 = sor.u32 %s57, %s58
    %p60 = scmp.eq.s32.totalorder %s59, 0
    %s62 = sadd.s32 %s61, 1
    %s63 = scalar_select %p60, %s61, %s62
    %p66 = pneg %p60
    %p67 = scmp.eq.s32.totalorder %s9, 1
    %p68 = por %p66, %p67
    %p69 = scmp.ne.s32.totalorder %s61, %s64
    %p70 = scmp.eq.s32.totalorder %s9, 0
    %p71 = por %p69, %p70
    %p72 = scmp.ne.s32.totalorder %s61, %s64
    %p73 = scmp.eq.s32.totalorder %s14, 1
    %p74 = por %p72, %p73
    %p75 = scmp.ne.s32.totalorder %s64, %s65
    %p76 = scmp.eq.s32.totalorder %s14, 0
    %p77 = por %p75, %p76
    %p78 = scmp.ne.s32.totalorder %s64, %s65
    %p79 = scmp.eq.s32.totalorder %s15, 1
    %p80 = por %p78, %p79
    %p82 = scmp.ne.s32.totalorder %s65, %s81
    %p83 = scmp.eq.s32.totalorder %s15, 0
    %p84 = por %p82, %p83
    %s85 = ssub.s32 %s16, %s28
    %s86 = ssub.s32 %s17, %s24
    %s87 = sor.u32 %s85, %s86
    %p88 = scmp.eq.s32.totalorder %s87, 0
    %s90 = sadd.s32 %s89, 1
    %s91 = scalar_select %p88, %s89, %s90
    %p94 = pneg %p88
    %p95 = scmp.eq.s32.totalorder %s9, 1
    %p96 = por %p94, %p95
    %p97 = scmp.ne.s32.totalorder %s89, %s92
    %p98 = scmp.eq.s32.totalorder %s9, 0
    %p99 = por %p97, %p98
    %p100 = scmp.ne.s32.totalorder %s89, %s92
    %p101 = scmp.eq.s32.totalorder %s14, 1
    %p102 = por %p100, %p101
    %p103 = scmp.ne.s32.totalorder %s92, %s93
    %p104 = scmp.eq.s32.totalorder %s14, 0
    %p105 = por %p103, %p104
    %p106 = scmp.ne.s32.totalorder %s92, %s93
    %p107 = scmp.eq.s32.totalorder %s15, 1
    %p108 = por %p106, %p107
    %p110 = scmp.ne.s32.totalorder %s93, %s109
    %p111 = scmp.eq.s32.totalorder %s15, 0
    %p112 = por %p110, %p111
    %s113 = ssub.s32 %s16, %s28
    %s114 = ssub.s32 %s17, %s24
    %s115 = sor.u32 %s113, %s114
    %p116 = scmp.eq.s32.totalorder %s115, 0
    %s118 = sadd.s32 %s117, 1
    %s119 = scalar_select %p116, %s117, %s118
    %p122 = pneg %p116
    %p123 = scmp.eq.s32.totalorder %s9, 1
    %p124 = por %p122, %p123
    %p125 = scmp.ne.s32.totalorder %s117, %s120
    %p126 = scmp.eq.s32.totalorder %s9, 0
    %p127 = por %p125, %p126
    %p128 = scmp.ne.s32.totalorder %s117, %s120
    %p129 = scmp.eq.s32.totalorder %s14, 1
    %p130 = por %p128, %p129
    %p131 = scmp.ne.s32.totalorder %s120, %s121
    %p132 = scmp.eq.s32.totalorder %s14, 0
    %p133 = por %p131, %p132
    %p134 = scmp.ne.s32.totalorder %s120, %s121
    %p135 = scmp.eq.s32.totalorder %s15, 1
    %p136 = por %p134, %p135
    %p138 = scmp.ne.s32.totalorder %s121, %s137
    %p139 = scmp.eq.s32.totalorder %s15, 0
    %p140 = por %p138, %p139
    %p141 = scmp.le.s32.totalorder 1, %s9
    %p142 = scmp.lt.s32.totalorder %s9, 3
    %p143 = pnand %p141, %p142
    %p144 = pneg %p143
    // Predicated region
    $region9: #{block_forward.4} parent=5 // pred_check
      _
    $region10: #{block_forward.4} parent=5 // pred_check_branch
      %146 = sbr.rel (%p143) target = $region12
    $region11: #{block_forward.4} parent=5 // pred_region
      %s147 = ssub.s32 %s9, 1
    $region12: #{block_forward.4} parent=5 // pred_fallthru
      _
    %p148 = scmp.lt.s32.totalorder %s9, 2
    // Predicated region
    $region13: #{block_forward.4} parent=5 // pred_check
      %p149 = pneg %p148
    $region14: #{block_forward.4} parent=5 // pred_check_branch
      %151 = sbr.rel (%p149) target = $region16
    $region15: #{block_forward.4} parent=5 // pred_region
      // Predicated region
      $region17: #{block_forward.4} parent=15 // pred_check
        %p152 = pneg %p43
      $region18: #{block_forward.4} parent=15 // pred_check_branch
        %154 = sbr.rel (%p152) target = $region20
      $region19: #{block_forward.4} parent=15 // pred_region
        %p155 = scmp.lt.s32.totalorder %s16, 1
        %s156 = scalar_select %p155, %s16, 1
        %p157 = scmp.lt.s32.totalorder %s17, 0
        %s158 = scalar_select %p157, %s17, 0
        %s159 = smul.addr %s156, 8
        %s160 = sadd.s32 %s158, %s159
        %s161 = smul.addr %s160, 4
        %s162 = scalar_lea.vmem %s0, %s161
      $region20: #{block_forward.4} parent=15 // pred_fallthru
        _
      // Predicated region
      $region21: #{block_forward.4} parent=15 // pred_check
        %p163 = pneg %p71
      $region22: #{block_forward.4} parent=15 // pred_check_branch
        %165 = sbr.rel (%p163) target = $region24
      $region23: #{block_forward.4} parent=15 // pred_region
        %p166 = scmp.lt.s32.totalorder %s16, 1
        %s167 = scalar_select %p166, %s16, 1
        %p168 = scmp.lt.s32.totalorder %s17, 0
        %s169 = scalar_select %p168, %s17, 0
        %s170 = smul.addr %s167, 8
        %s171 = sadd.s32 %s169, %s170
        %s172 = smul.addr %s171, 4
        %s173 = scalar_lea.vmem %s1, %s172
      $region24: #{block_forward.4} parent=15 // pred_fallthru
        _
      // Predicated region
      $region25: #{block_forward.4} parent=15 // pred_check
        %p174 = pneg %p99
      $region26: #{block_forward.4} parent=15 // pred_check_branch
        %176 = sbr.rel (%p174) target = $region28
      $region27: #{block_forward.4} parent=15 // pred_region
        %p177 = scmp.lt.s32.totalorder %s16, 1
        %s178 = scalar_select %p177, %s16, 1
        %p179 = scmp.lt.s32.totalorder %s17, 0
        %s180 = scalar_select %p179, %s17, 0
        %s181 = smul.addr %s178, 8
        %s182 = sadd.s32 %s180, %s181
        %s183 = smul.addr %s182, 4
        %s184 = scalar_lea.vmem %s2, %s183
      $region28: #{block_forward.4} parent=15 // pred_fallthru
        _
    $region16: #{block_forward.4} parent=5 // pred_fallthru
      _
    %p185 = scmp.le.s32.totalorder 1, %s9
    %p186 = scmp.lt.s32.totalorder %s9, 3
    %p187 = pnand %p185, %p186
    %p188 = pneg %p187
    // Predicated region
    $region29: #{block_forward.4} parent=5 // pred_check
      _
    $region30: #{block_forward.4} parent=5 // pred_check_branch
      %190 = sbr.rel (%p187) target = $region32
    $region31: #{block_forward.4} parent=5 // pred_region
      %s191 = ssub.s32 %s9, 1
      %p192 = scmp.lt.s32.totalorder %s18, 1
      %s193 = scalar_select %p192, %s18, 1
      %p194 = scmp.lt.s32.totalorder %s19, 0
      %s195 = scalar_select %p194, %s19, 0
      %s196 = smul.addr %s193, 8
      %s197 = sadd.s32 %s195, %s196
      %s198 = smul.addr %s197, 4
      %s199 = scalar_lea.vmem %s0, %s198
      %p200 = pneg %p49
      %p201 = pneg %p46
      %p202 = scmp.lt.s32.totalorder %s18, 1
      %s203 = scalar_select %p202, %s18, 1
      %p204 = scmp.lt.s32.totalorder %s19, 0
      %s205 = scalar_select %p204, %s19, 0
      %s206 = smul.addr %s203, 8
      %s207 = sadd.s32 %s205, %s206
      %s208 = smul.addr %s207, 4
      %s209 = scalar_lea.vmem %s1, %s208
      %p210 = pneg %p77
      %p211 = pneg %p74
      %p212 = scmp.lt.s32.totalorder %s18, 1
      %s213 = scalar_select %p212, %s18, 1
      %p214 = scmp.lt.s32.totalorder %s19, 0
      %s215 = scalar_select %p214, %s19, 0
      %s216 = smul.addr %s213, 8
      %s217 = sadd.s32 %s215, %s216
      %s218 = smul.addr %s217, 4
      %s219 = scalar_lea.vmem %s2, %s218
      %p220 = pneg %p105
      %p221 = pneg %p102
      %p222 = pneg %p133
      %p223 = pneg %p130
      %p224 = scmp.lt.s32.totalorder %s18, 1
      %s225 = scalar_select %p224, %s18, 1
      %p226 = scmp.lt.s32.totalorder %s19, 0
      %s227 = scalar_select %p226, %s19, 0
      %s228 = smul.addr %s225, 8
      %s229 = sadd.s32 %s227, %s228
      %s230 = smul.addr %s229, 4
      %s231 = scalar_lea.vmem %s3, %s230
      %p232 = scmp.lt.s32.totalorder %s18, 1
      %s233 = scalar_select %p232, %s18, 1
      %p234 = scmp.lt.s32.totalorder %s19, 0
      %s235 = scalar_select %p234, %s19, 0
      %s236 = smul.addr %s233, 8
      %s237 = sadd.s32 %s235, %s236
      %s238 = smul.addr %s237, 4
      %s239 = scalar_lea.vmem %s0, %s238
      %p240 = scmp.lt.s32.totalorder %s18, 1
      %s241 = scalar_select %p240, %s18, 1
      %p242 = scmp.lt.s32.totalorder %s19, 0
      %s243 = scalar_select %p242, %s19, 0
      %s244 = smul.addr %s241, 8
      %s245 = sadd.s32 %s243, %s244
      %s246 = smul.addr %s245, 4
      %s247 = scalar_lea.vmem %s1, %s246
      %p248 = scmp.lt.s32.totalorder %s18, 1
      %s249 = scalar_select %p248, %s18, 1
      %p250 = scmp.lt.s32.totalorder %s19, 0
      %s251 = scalar_select %p250, %s19, 0
      %s252 = smul.addr %s249, 8
      %s253 = sadd.s32 %s251, %s252
      %s254 = smul.addr %s253, 4
      %s255 = scalar_lea.vmem %s2, %s254
      %p256 = scmp.lt.s32.totalorder %s18, 1
      %s257 = scalar_select %p256, %s18, 1
      %p258 = scmp.lt.s32.totalorder %s19, 0
      %s259 = scalar_select %p258, %s19, 0
      %s260 = smul.addr %s257, 8
      %s261 = sadd.s32 %s259, %s260
      %s262 = smul.addr %s261, 4
      %s263 = scalar_lea.vmem %s3, %s262
      %v265 = vld [vmem:[%s239] sm:$0xf]
      %v266 = vld [vmem:[%s239 + $0x4] sm:$0xf]
      %v267 = vld [vmem:[%s239 + $0x8] sm:$0xf]
      %v268 = vld [vmem:[%s239 + $0xc] sm:$0xf]
      %v269 = vld [vmem:[%s239 + $0x10] sm:$0xf]
      %v270 = vld [vmem:[%s239 + $0x14] sm:$0xf]
      %v271 = vld [vmem:[%s239 + $0x18] sm:$0xf]
      %v272 = vld [vmem:[%s239 + $0x1c] sm:$0xf]
      %v273 = vld [vmem:[%s247] sm:$0xf]
      %v274 = vld [vmem:[%s247 + $0x4] sm:$0xf]
      %v275 = vld [vmem:[%s247 + $0x8] sm:$0xf]
      %v276 = vld [vmem:[%s247 + $0xc] sm:$0xf]
      %v277 = vld [vmem:[%s247 + $0x10] sm:$0xf]
      %v278 = vld [vmem:[%s247 + $0x14] sm:$0xf]
      %v279 = vld [vmem:[%s247 + $0x18] sm:$0xf]
      %v280 = vld [vmem:[%s247 + $0x1c] sm:$0xf]
      %v281 = vld [vmem:[%s255] sm:$0xf]
      %v282 = vld [vmem:[%s255 + $0x4] sm:$0xf]
      %v283 = vld [vmem:[%s255 + $0x8] sm:$0xf]
      %v284 = vld [vmem:[%s255 + $0xc] sm:$0xf]
      %v285 = vld [vmem:[%s255 + $0x10] sm:$0xf]
      %v286 = vld [vmem:[%s255 + $0x14] sm:$0xf]
      %v287 = vld [vmem:[%s255 + $0x18] sm:$0xf]
      %v288 = vld [vmem:[%s255 + $0x1c] sm:$0xf]
      %v297 = vunpack.c.l.b16 %v265
      %v298 = vunpack.c.l.b16 %v266
      %v299 = vunpack.c.l.b16 %v267
      %v300 = vunpack.c.l.b16 %v268
      %v301 = vunpack.c.l.b16 %v269
      %v302 = vunpack.c.l.b16 %v270
      %v303 = vunpack.c.l.b16 %v271
      %v304 = vunpack.c.l.b16 %v272
      %v305 = vpack.c.b16 %v298, %v297
      %v306 = vpack.c.b16 %v300, %v299
      %v307 = vpack.c.b16 %v302, %v301
      %v308 = vpack.c.b16 %v304, %v303
      %v317 = vunpack.c.l.b16 %v273
      %v318 = vunpack.c.l.b16 %v274
      %v319 = vunpack.c.l.b16 %v275
      %v320 = vunpack.c.l.b16 %v276
      %v321 = vunpack.c.l.b16 %v277
      %v322 = vunpack.c.l.b16 %v278
      %v323 = vunpack.c.l.b16 %v279
      %v324 = vunpack.c.l.b16 %v280
      %v325 = vpack.c.b16 %v318, %v317
      %v326 = vpack.c.b16 %v320, %v319
      %v327 = vpack.c.b16 %v322, %v321
      %v328 = vpack.c.b16 %v324, %v323
      %vm329 = vcmask 64512
      %v331 = vsel %vm329, %v305, 0
      %v334 = vsel %vm329, %v306, 0
      %v337 = vsel %vm329, %v307, 0
      %v340 = vsel %vm329, %v308, 0
      %v343 = vsel %vm329, %v325, 0
      %v346 = vsel %vm329, %v326, 0
      %v349 = vsel %vm329, %v327, 0
      %v352 = vsel %vm329, %v328, 0
      %354 = vmatprep.subr.bf16.mxu0 0
      %355 = vmatpush1.bf16.xpose.msra.mxu0 0
      %356 = vmatprep.subr.bf16.mxu0 0
      %357 = vmatpush1.bf16.xpose.msra.mxu0 0
      %358 = vmatprep.subr.bf16.mxu0 0
      %359 = vmatpush1.bf16.xpose.msra.mxu0 0
      %360 = vmatprep.subr.bf16.mxu0 0
      %361 = vmatpush1.bf16.xpose.msra.mxu0 0
      %362 = vmatprep.subr.bf16.mxu0 0
      %363 = vmatpush1.bf16.xpose.msra.mxu0 %v352
      %364 = vmatprep.subr.bf16.mxu0 0
      %365 = vmatpush1.bf16.xpose.msra.mxu0 %v349
      %366 = vmatprep.subr.bf16.mxu0 0
      %367 = vmatpush1.bf16.xpose.msra.mxu0 %v346
      %368 = vmatprep.subr.bf16.mxu0 0
      %369 = vmatpush1.bf16.xpose.msra.mxu0 %v343
      %370 = vmatprep.subr.bf16.mxu0 0
      %371 = vmatpush2.bf16.xpose.msra.mxu0 0
      %372 = vmatprep.subr.bf16.mxu0 0
      %373 = vmatpush2.bf16.xpose.msra.mxu0 0
      %374 = vmatprep.subr.bf16.mxu0 0
      %375 = vmatpush2.bf16.xpose.msra.mxu0 0
      %376 = vmatprep.subr.bf16.mxu0 0
      %377 = vmatpush2.bf16.xpose.msra.mxu0 0
      %378 = vmatprep.subr.bf16.mxu0 0
      %379 = vmatpush2.bf16.xpose.msra.mxu0 0
      %380 = vmatprep.subr.bf16.mxu0 0
      %381 = vmatpush2.bf16.xpose.msra.mxu0 0
      %382 = vmatprep.subr.bf16.mxu0 0
      %383 = vmatpush2.bf16.xpose.msra.mxu0 0
      %384 = vmatprep.subr.bf16.mxu0 0
      %385 = vmatpush2.bf16.xpose.msra.mxu0 0
      %386 = vmatprep.mubr.bf16.mxu0 0
      %387 = vmatmul.mubr.bf16.gmra.mxu0 %v331
      %v388 = vpop.f32.mrf.mxu0
      %v389 = vadd.f32 0.0, %v388
      %v390 = vpop.f32.mrf.mxu0
      %v391 = vpop.f32.mrf.mxu0
      %v392 = vadd.f32 0.0, %v391
      %v393 = vpop.f32.mrf.mxu0
      %394 = vmatprep.mubr.bf16.mxu0 0
      %395 = vmatmul.mubr.bf16.gmra.mxu0 %v334
      %v396 = vpop.f32.mrf.mxu0
      %v397 = vadd.f32 0.0, %v396
      %v398 = vpop.f32.mrf.mxu0
      %v399 = vpop.f32.mrf.mxu0
      %v400 = vadd.f32 0.0, %v399
      %v401 = vpop.f32.mrf.mxu0
      %402 = vmatprep.mubr.bf16.mxu0 0
      %403 = vmatmul.mubr.bf16.gmra.mxu0 %v337
      %v404 = vpop.f32.mrf.mxu0
      %v405 = vadd.f32 0.0, %v404
      %v406 = vpop.f32.mrf.mxu0
      %v407 = vpop.f32.mrf.mxu0
      %v408 = vadd.f32 0.0, %v407
      %v409 = vpop.f32.mrf.mxu0
      %410 = vmatprep.mubr.bf16.mxu0 0
      %411 = vmatmul.mubr.bf16.gmra.mxu0 %v340
      %v412 = vpop.f32.mrf.mxu0
      %v413 = vadd.f32 0.0, %v412
      %v414 = vpop.f32.mrf.mxu0
      %v415 = vpop.f32.mrf.mxu0
      %v416 = vadd.f32 0.0, %v415
      %v417 = vpop.f32.mrf.mxu0
      %418 = vdwg.mxu0
      %v419 = vmul.f32 %v389, 0.35355338
      %v420 = vmul.f32 %v392, 0.35355338
      %v421 = vmul.f32 %v397, 0.35355338
      %v422 = vmul.f32 %v400, 0.35355338
      %v423 = vmul.f32 %v405, 0.35355338
      %v424 = vmul.f32 %v408, 0.35355338
      %v425 = vmul.f32 %v413, 0.35355338
      %v426 = vmul.f32 %v416, 0.35355338
      %vm427 = vcmask 523264
      %v428 = vsel %vm427, %v419, -inf
      %429 = vmax.xlane.f32.xlu0 %v428
      %v430 = vpop.xlane.xlu0 %429
      %v431 = vsel %vm427, %v420, -inf
      %432 = vmax.xlane.f32.xlu0 %v431
      %v433 = vpop.xlane.xlu0 %432
      %v434 = vsel %vm427, %v421, -inf
      %435 = vmax.xlane.f32.xlu0 %v434
      %v436 = vpop.xlane.xlu0 %435
      %v437 = vsel %vm427, %v422, -inf
      %438 = vmax.xlane.f32.xlu0 %v437
      %v439 = vpop.xlane.xlu0 %438
      %v440 = vsel %vm427, %v423, -inf
      %441 = vmax.xlane.f32.xlu0 %v440
      %v442 = vpop.xlane.xlu0 %441
      %v443 = vsel %vm427, %v424, -inf
      %444 = vmax.xlane.f32.xlu0 %v443
      %v445 = vpop.xlane.xlu0 %444
      %v446 = vsel %vm427, %v425, -inf
      %447 = vmax.xlane.f32.xlu0 %v446
      %v448 = vpop.xlane.xlu0 %447
      %v449 = vsel %vm427, %v426, -inf
      %450 = vmax.xlane.f32.xlu0 %v449
      %v451 = vpop.xlane.xlu0 %450
      %v452 = vsub.f32 %v419, %v430
      %v453 = vsub.f32 %v420, %v433
      %v454 = vsub.f32 %v421, %v436
      %v455 = vsub.f32 %v422, %v439
      %v456 = vsub.f32 %v423, %v442
      %v457 = vsub.f32 %v424, %v445
      %v458 = vsub.f32 %v425, %v448
      %v459 = vsub.f32 %v426, %v451
      %v460 = vmul.f32 %v452, 1.442695
      %v461 = vpow.pop %v460
      %v462 = vmul.f32 %v453, 1.442695
      %v463 = vpow.pop %v462
      %v464 = vmul.f32 %v454, 1.442695
      %v465 = vpow.pop %v464
      %v466 = vmul.f32 %v455, 1.442695
      %v467 = vpow.pop %v466
      %v468 = vmul.f32 %v456, 1.442695
      %v469 = vpow.pop %v468
      %v470 = vmul.f32 %v457, 1.442695
      %v471 = vpow.pop %v470
      %v472 = vmul.f32 %v458, 1.442695
      %v473 = vpow.pop %v472
      %v474 = vmul.f32 %v459, 1.442695
      %v475 = vpow.pop %v474
      %v476 = vsel %vm427, %v461, 0.0
      %477 = vadd.xlane.f32.xlu0 %v476
      %v478 = vpop.xlane.xlu0 %477
      %v479 = vsel %vm427, %v463, 0.0
      %480 = vadd.xlane.f32.xlu0 %v479
      %v481 = vpop.xlane.xlu0 %480
      %v482 = vsel %vm427, %v465, 0.0
      %483 = vadd.xlane.f32.xlu0 %v482
      %v484 = vpop.xlane.xlu0 %483
      %v485 = vsel %vm427, %v467, 0.0
      %486 = vadd.xlane.f32.xlu0 %v485
      %v487 = vpop.xlane.xlu0 %486
      %v488 = vsel %vm427, %v469, 0.0
      %489 = vadd.xlane.f32.xlu0 %v488
      %v490 = vpop.xlane.xlu0 %489
      %v491 = vsel %vm427, %v471, 0.0
      %492 = vadd.xlane.f32.xlu0 %v491
      %v493 = vpop.xlane.xlu0 %492
      %v494 = vsel %vm427, %v473, 0.0
      %495 = vadd.xlane.f32.xlu0 %v494
      %v496 = vpop.xlane.xlu0 %495
      %v497 = vsel %vm427, %v475, 0.0
      %498 = vadd.xlane.f32.xlu0 %v497
      %v499 = vpop.xlane.xlu0 %498
      %v500 = vrcp.pop %v478
      %v501 = vrcp.pop %v481
      %v502 = vrcp.pop %v484
      %v503 = vrcp.pop %v487
      %v504 = vrcp.pop %v490
      %v505 = vrcp.pop %v493
      %v506 = vrcp.pop %v496
      %v507 = vrcp.pop %v499
      %v508 = vmul.f32 %v461, %v500
      %v509 = vmul.f32 %v463, %v501
      %v510 = vmul.f32 %v465, %v502
      %v511 = vmul.f32 %v467, %v503
      %v512 = vmul.f32 %v469, %v504
      %v513 = vmul.f32 %v471, %v505
      %v514 = vmul.f32 %v473, %v506
      %v515 = vmul.f32 %v475, %v507
      %v516 = vpack.c.bf16 %v509, %v508
      %v517 = vpack.c.bf16 %v511, %v510
      %v518 = vpack.c.bf16 %v513, %v512
      %v519 = vpack.c.bf16 %v515, %v514
      %v528 = vunpack.c.l.b16 %v281
      %v529 = vunpack.c.l.b16 %v282
      %v530 = vunpack.c.l.b16 %v283
      %v531 = vunpack.c.l.b16 %v284
      %v532 = vunpack.c.l.b16 %v285
      %v533 = vunpack.c.l.b16 %v286
      %v534 = vunpack.c.l.b16 %v287
      %v535 = vunpack.c.l.b16 %v288
      %v536 = vpack.c.b16 %v529, %v528
      %v537 = vpack.c.b16 %v531, %v530
      %v538 = vpack.c.b16 %v533, %v532
      %v539 = vpack.c.b16 %v535, %v534
      %v545 = vsel %vm427, %v516, 0
      %v548 = vsel %vm427, %v517, 0
      %v551 = vsel %vm427, %v518, 0
      %v554 = vsel %vm427, %v519, 0
      %556 = vmatprep.subr.bf16.mxu0 0
      %557 = vmatpush1.bf16.msra.mxu0 0
      %558 = vmatprep.subr.bf16.mxu0 0
      %559 = vmatpush1.bf16.msra.mxu0 0
      %560 = vmatprep.subr.bf16.mxu0 0
      %561 = vmatpush1.bf16.msra.mxu0 0
      %562 = vmatprep.subr.bf16.mxu0 0
      %563 = vmatpush1.bf16.msra.mxu0 0
      %564 = vmatprep.subr.bf16.mxu0 0
      %565 = vmatpush1.bf16.msra.mxu0 %v539
      %566 = vmatprep.subr.bf16.mxu0 0
      %567 = vmatpush1.bf16.msra.mxu0 %v538
      %568 = vmatprep.subr.bf16.mxu0 0
      %569 = vmatpush1.bf16.msra.mxu0 %v537
      %570 = vmatprep.subr.bf16.mxu0 0
      %571 = vmatpush1.bf16.msra.mxu0 %v536
      %572 = vmatprep.subr.bf16.mxu0 0
      %573 = vmatpush2.bf16.msra.mxu0 0
      %574 = vmatprep.subr.bf16.mxu0 0
      %575 = vmatpush2.bf16.msra.mxu0 0
      %576 = vmatprep.subr.bf16.mxu0 0
      %577 = vmatpush2.bf16.msra.mxu0 0
      %578 = vmatprep.subr.bf16.mxu0 0
      %579 = vmatpush2.bf16.msra.mxu0 0
      %580 = vmatprep.subr.bf16.mxu0 0
      %581 = vmatpush2.bf16.msra.mxu0 0
      %582 = vmatprep.subr.bf16.mxu0 0
      %583 = vmatpush2.bf16.msra.mxu0 0
      %584 = vmatprep.subr.bf16.mxu0 0
      %585 = vmatpush2.bf16.msra.mxu0 0
      %586 = vmatprep.subr.bf16.mxu0 0
      %587 = vmatpush2.bf16.msra.mxu0 0
      %588 = vmatprep.mubr.bf16.mxu0 0
      %589 = vmatmul.mubr.bf16.gmra.mxu0 %v545
      %v590 = vpop.f32.mrf.mxu0
      %v591 = vadd.f32 0.0, %v590
      %v592 = vpop.f32.mrf.mxu0
      %v593 = vpop.f32.mrf.mxu0
      %v594 = vadd.f32 0.0, %v593
      %v595 = vpop.f32.mrf.mxu0
      %596 = vmatprep.mubr.bf16.mxu0 0
      %597 = vmatmul.mubr.bf16.gmra.mxu0 %v548
      %v598 = vpop.f32.mrf.mxu0
      %v599 = vadd.f32 0.0, %v598
      %v600 = vpop.f32.mrf.mxu0
      %v601 = vpop.f32.mrf.mxu0
      %v602 = vadd.f32 0.0, %v601
      %v603 = vpop.f32.mrf.mxu0
      %604 = vmatprep.mubr.bf16.mxu0 0
      %605 = vmatmul.mubr.bf16.gmra.mxu0 %v551
      %v606 = vpop.f32.mrf.mxu0
      %v607 = vadd.f32 0.0, %v606
      %v608 = vpop.f32.mrf.mxu0
      %v609 = vpop.f32.mrf.mxu0
      %v610 = vadd.f32 0.0, %v609
      %v611 = vpop.f32.mrf.mxu0
      %612 = vmatprep.mubr.bf16.mxu0 0
      %613 = vmatmul.mubr.bf16.gmra.mxu0 %v554
      %v614 = vpop.f32.mrf.mxu0
      %v615 = vadd.f32 0.0, %v614
      %v616 = vpop.f32.mrf.mxu0
      %v617 = vpop.f32.mrf.mxu0
      %v618 = vadd.f32 0.0, %v617
      %v619 = vpop.f32.mrf.mxu0
      %620 = vdwg.mxu0
      %621 = vrot.lane.b32.xlu0 %v305, 120
      %v622 = vpop.permute.xlu0 %621
      %623 = vrot.lane.b32.xlu0 %v306, 120
      %v624 = vpop.permute.xlu0 %623
      %625 = vrot.lane.b32.xlu0 %v307, 120
      %v626 = vpop.permute.xlu0 %625
      %627 = vrot.lane.b32.xlu0 %v308, 120
      %v628 = vpop.permute.xlu0 %627
      %629 = vrot.lane.b32.xlu0 %v325, 120
      %v630 = vpop.permute.xlu0 %629
      %631 = vrot.lane.b32.xlu0 %v326, 120
      %v632 = vpop.permute.xlu0 %631
      %633 = vrot.lane.b32.xlu0 %v327, 120
      %v634 = vpop.permute.xlu0 %633
      %635 = vrot.lane.b32.xlu0 %v328, 120
      %v636 = vpop.permute.xlu0 %635
      %v638 = vsel %vm329, %v622, 0
      %v641 = vsel %vm329, %v624, 0
      %v644 = vsel %vm329, %v626, 0
      %v647 = vsel %vm329, %v628, 0
      %v650 = vsel %vm329, %v630, 0
      %v653 = vsel %vm329, %v632, 0
      %v656 = vsel %vm329, %v634, 0
      %v659 = vsel %vm329, %v636, 0
      %661 = vmatprep.subr.bf16.mxu0 0
      %662 = vmatpush1.bf16.xpose.msra.mxu0 0
      %663 = vmatprep.subr.bf16.mxu0 0
      %664 = vmatpush1.bf16.xpose.msra.mxu0 0
      %665 = vmatprep.subr.bf16.mxu0 0
      %666 = vmatpush1.bf16.xpose.msra.mxu0 0
      %667 = vmatprep.subr.bf16.mxu0 0
      %668 = vmatpush1.bf16.xpose.msra.mxu0 0
      %669 = vmatprep.subr.bf16.mxu0 0
      %670 = vmatpush1.bf16.xpose.msra.mxu0 %v659
      %671 = vmatprep.subr.bf16.mxu0 0
      %672 = vmatpush1.bf16.xpose.msra.mxu0 %v656
      %673 = vmatprep.subr.bf16.mxu0 0
      %674 = vmatpush1.bf16.xpose.msra.mxu0 %v653
      %675 = vmatprep.subr.bf16.mxu0 0
      %676 = vmatpush1.bf16.xpose.msra.mxu0 %v650
      %677 = vmatprep.subr.bf16.mxu0 0
      %678 = vmatpush2.bf16.xpose.msra.mxu0 0
      %679 = vmatprep.subr.bf16.mxu0 0
      %680 = vmatpush2.bf16.xpose.msra.mxu0 0
      %681 = vmatprep.subr.bf16.mxu0 0
      %682 = vmatpush2.bf16.xpose.msra.mxu0 0
      %683 = vmatprep.subr.bf16.mxu0 0
      %684 = vmatpush2.bf16.xpose.msra.mxu0 0
      %685 = vmatprep.subr.bf16.mxu0 0
      %686 = vmatpush2.bf16.xpose.msra.mxu0 0
      %687 = vmatprep.subr.bf16.mxu0 0
      %688 = vmatpush2.bf16.xpose.msra.mxu0 0
      %689 = vmatprep.subr.bf16.mxu0 0
      %690 = vmatpush2.bf16.xpose.msra.mxu0 0
      %691 = vmatprep.subr.bf16.mxu0 0
      %692 = vmatpush2.bf16.xpose.msra.mxu0 0
      %693 = vmatprep.mubr.bf16.mxu0 0
      %694 = vmatmul.mubr.bf16.gmra.mxu0 %v638
      %v695 = vpop.f32.mrf.mxu0
      %v696 = vadd.f32 0.0, %v695
      %v697 = vpop.f32.mrf.mxu0
      %v698 = vpop.f32.mrf.mxu0
      %v699 = vadd.f32 0.0, %v698
      %v700 = vpop.f32.mrf.mxu0
      %701 = vmatprep.mubr.bf16.mxu0 0
      %702 = vmatmul.mubr.bf16.gmra.mxu0 %v641
      %v703 = vpop.f32.mrf.mxu0
      %v704 = vadd.f32 0.0, %v703
      %v705 = vpop.f32.mrf.mxu0
      %v706 = vpop.f32.mrf.mxu0
      %v707 = vadd.f32 0.0, %v706
      %v708 = vpop.f32.mrf.mxu0
      %709 = vmatprep.mubr.bf16.mxu0 0
      %710 = vmatmul.mubr.bf16.gmra.mxu0 %v644
      %v711 = vpop.f32.mrf.mxu0
      %v712 = vadd.f32 0.0, %v711
      %v713 = vpop.f32.mrf.mxu0
      %v714 = vpop.f32.mrf.mxu0
      %v715 = vadd.f32 0.0, %v714
      %v716 = vpop.f32.mrf.mxu0
      %717 = vmatprep.mubr.bf16.mxu0 0
      %718 = vmatmul.mubr.bf16.gmra.mxu0 %v647
      %v719 = vpop.f32.mrf.mxu0
      %v720 = vadd.f32 0.0, %v719
      %v721 = vpop.f32.mrf.mxu0
      %v722 = vpop.f32.mrf.mxu0
      %v723 = vadd.f32 0.0, %v722
      %v724 = vpop.f32.mrf.mxu0
      %725 = vdwg.mxu0
      %v726 = vmul.f32 %v696, 0.35355338
      %v727 = vmul.f32 %v699, 0.35355338
      %v728 = vmul.f32 %v704, 0.35355338
      %v729 = vmul.f32 %v707, 0.35355338
      %v730 = vmul.f32 %v712, 0.35355338
      %v731 = vmul.f32 %v715, 0.35355338
      %v732 = vmul.f32 %v720, 0.35355338
      %v733 = vmul.f32 %v723, 0.35355338
      %v734 = vsel %vm427, %v726, -inf
      %735 = vmax.xlane.f32.xlu0 %v734
      %v736 = vpop.xlane.xlu0 %735
      %v737 = vsel %vm427, %v727, -inf
      %738 = vmax.xlane.f32.xlu0 %v737
      %v739 = vpop.xlane.xlu0 %738
      %v740 = vsel %vm427, %v728, -inf
      %741 = vmax.xlane.f32.xlu0 %v740
      %v742 = vpop.xlane.xlu0 %741
      %v743 = vsel %vm427, %v729, -inf
      %744 = vmax.xlane.f32.xlu0 %v743
      %v745 = vpop.xlane.xlu0 %744
      %v746 = vsel %vm427, %v730, -inf
      %747 = vmax.xlane.f32.xlu0 %v746
      %v748 = vpop.xlane.xlu0 %747
      %v749 = vsel %vm427, %v731, -inf
      %750 = vmax.xlane.f32.xlu0 %v749
      %v751 = vpop.xlane.xlu0 %750
      %v752 = vsel %vm427, %v732, -inf
      %753 = vmax.xlane.f32.xlu0 %v752
      %v754 = vpop.xlane.xlu0 %753
      %v755 = vsel %vm427, %v733, -inf
      %756 = vmax.xlane.f32.xlu0 %v755
      %v757 = vpop.xlane.xlu0 %756
      %v758 = vsub.f32 %v726, %v736
      %v759 = vsub.f32 %v727, %v739
      %v760 = vsub.f32 %v728, %v742
      %v761 = vsub.f32 %v729, %v745
      %v762 = vsub.f32 %v730, %v748
      %v763 = vsub.f32 %v731, %v751
      %v764 = vsub.f32 %v732, %v754
      %v765 = vsub.f32 %v733, %v757
      %v766 = vmul.f32 %v758, 1.442695
      %v767 = vpow.pop %v766
      %v768 = vmul.f32 %v759, 1.442695
      %v769 = vpow.pop %v768
      %v770 = vmul.f32 %v760, 1.442695
      %v771 = vpow.pop %v770
      %v772 = vmul.f32 %v761, 1.442695
      %v773 = vpow.pop %v772
      %v774 = vmul.f32 %v762, 1.442695
      %v775 = vpow.pop %v774
      %v776 = vmul.f32 %v763, 1.442695
      %v777 = vpow.pop %v776
      %v778 = vmul.f32 %v764, 1.442695
      %v779 = vpow.pop %v778
      %v780 = vmul.f32 %v765, 1.442695
      %v781 = vpow.pop %v780
      %v782 = vsel %vm427, %v767, 0.0
      %783 = vadd.xlane.f32.xlu0 %v782
      %v784 = vpop.xlane.xlu0 %783
      %v785 = vsel %vm427, %v769, 0.0
      %786 = vadd.xlane.f32.xlu0 %v785
      %v787 = vpop.xlane.xlu0 %786
      %v788 = vsel %vm427, %v771, 0.0
      %789 = vadd.xlane.f32.xlu0 %v788
      %v790 = vpop.xlane.xlu0 %789
      %v791 = vsel %vm427, %v773, 0.0
      %792 = vadd.xlane.f32.xlu0 %v791
      %v793 = vpop.xlane.xlu0 %792
      %v794 = vsel %vm427, %v775, 0.0
      %795 = vadd.xlane.f32.xlu0 %v794
      %v796 = vpop.xlane.xlu0 %795
      %v797 = vsel %vm427, %v777, 0.0
      %798 = vadd.xlane.f32.xlu0 %v797
      %v799 = vpop.xlane.xlu0 %798
      %v800 = vsel %vm427, %v779, 0.0
      %801 = vadd.xlane.f32.xlu0 %v800
      %v802 = vpop.xlane.xlu0 %801
      %v803 = vsel %vm427, %v781, 0.0
      %804 = vadd.xlane.f32.xlu0 %v803
      %v805 = vpop.xlane.xlu0 %804
      %v806 = vrcp.pop %v784
      %v807 = vrcp.pop %v787
      %v808 = vrcp.pop %v790
      %v809 = vrcp.pop %v793
      %v810 = vrcp.pop %v796
      %v811 = vrcp.pop %v799
      %v812 = vrcp.pop %v802
      %v813 = vrcp.pop %v805
      %v814 = vmul.f32 %v767, %v806
      %v815 = vmul.f32 %v769, %v807
      %v816 = vmul.f32 %v771, %v808
      %v817 = vmul.f32 %v773, %v809
      %v818 = vmul.f32 %v775, %v810
      %v819 = vmul.f32 %v777, %v811
      %v820 = vmul.f32 %v779, %v812
      %v821 = vmul.f32 %v781, %v813
      %v822 = vpack.c.bf16 %v815, %v814
      %v823 = vpack.c.bf16 %v817, %v816
      %v824 = vpack.c.bf16 %v819, %v818
      %v825 = vpack.c.bf16 %v821, %v820
      %826 = vrot.lane.b32.xlu0 %v536, 120
      %v827 = vpop.permute.xlu0 %826
      %828 = vrot.lane.b32.xlu0 %v537, 120
      %v829 = vpop.permute.xlu0 %828
      %830 = vrot.lane.b32.xlu0 %v538, 120
      %v831 = vpop.permute.xlu0 %830
      %832 = vrot.lane.b32.xlu0 %v539, 120
      %v833 = vpop.permute.xlu0 %832
      %v839 = vsel %vm427, %v822, 0
      %v842 = vsel %vm427, %v823, 0
      %v845 = vsel %vm427, %v824, 0
      %v848 = vsel %vm427, %v825, 0
      %850 = vmatprep.subr.bf16.mxu0 0
      %851 = vmatpush1.bf16.msra.mxu0 0
      %852 = vmatprep.subr.bf16.mxu0 0
      %853 = vmatpush1.bf16.msra.mxu0 0
      %854 = vmatprep.subr.bf16.mxu0 0
      %855 = vmatpush1.bf16.msra.mxu0 0
      %856 = vmatprep.subr.bf16.mxu0 0
      %857 = vmatpush1.bf16.msra.mxu0 0
      %858 = vmatprep.subr.bf16.mxu0 0
      %859 = vmatpush1.bf16.msra.mxu0 %v833
      %860 = vmatprep.subr.bf16.mxu0 0
      %861 = vmatpush1.bf16.msra.mxu0 %v831
      %862 = vmatprep.subr.bf16.mxu0 0
      %863 = vmatpush1.bf16.msra.mxu0 %v829
      %864 = vmatprep.subr.bf16.mxu0 0
      %865 = vmatpush1.bf16.msra.mxu0 %v827
      %866 = vmatprep.subr.bf16.mxu0 0
      %867 = vmatpush2.bf16.msra.mxu0 0
      %868 = vmatprep.subr.bf16.mxu0 0
      %869 = vmatpush2.bf16.msra.mxu0 0
      %870 = vmatprep.subr.bf16.mxu0 0
      %871 = vmatpush2.bf16.msra.mxu0 0
      %872 = vmatprep.subr.bf16.mxu0 0
      %873 = vmatpush2.bf16.msra.mxu0 0
      %874 = vmatprep.subr.bf16.mxu0 0
      %875 = vmatpush2.bf16.msra.mxu0 0
      %876 = vmatprep.subr.bf16.mxu0 0
      %877 = vmatpush2.bf16.msra.mxu0 0
      %878 = vmatprep.subr.bf16.mxu0 0
      %879 = vmatpush2.bf16.msra.mxu0 0
      %880 = vmatprep.subr.bf16.mxu0 0
      %881 = vmatpush2.bf16.msra.mxu0 0
      %882 = vmatprep.mubr.bf16.mxu0 0
      %883 = vmatmul.mubr.bf16.gmra.mxu0 %v839
      %v884 = vpop.f32.mrf.mxu0
      %v885 = vadd.f32 0.0, %v884
      %v886 = vpop.f32.mrf.mxu0
      %v887 = vpop.f32.mrf.mxu0
      %v888 = vadd.f32 0.0, %v887
      %v889 = vpop.f32.mrf.mxu0
      %890 = vmatprep.mubr.bf16.mxu0 0
      %891 = vmatmul.mubr.bf16.gmra.mxu0 %v842
      %v892 = vpop.f32.mrf.mxu0
      %v893 = vadd.f32 0.0, %v892
      %v894 = vpop.f32.mrf.mxu0
      %v895 = vpop.f32.mrf.mxu0
      %v896 = vadd.f32 0.0, %v895
      %v897 = vpop.f32.mrf.mxu0
      %898 = vmatprep.mubr.bf16.mxu0 0
      %899 = vmatmul.mubr.bf16.gmra.mxu0 %v845
      %v900 = vpop.f32.mrf.mxu0
      %v901 = vadd.f32 0.0, %v900
      %v902 = vpop.f32.mrf.mxu0
      %v903 = vpop.f32.mrf.mxu0
      %v904 = vadd.f32 0.0, %v903
      %v905 = vpop.f32.mrf.mxu0
      %906 = vmatprep.mubr.bf16.mxu0 0
      %907 = vmatmul.mubr.bf16.gmra.mxu0 %v848
      %v908 = vpop.f32.mrf.mxu0
      %v909 = vadd.f32 0.0, %v908
      %v910 = vpop.f32.mrf.mxu0
      %v911 = vpop.f32.mrf.mxu0
      %v912 = vadd.f32 0.0, %v911
      %v913 = vpop.f32.mrf.mxu0
      %914 = vdwg.mxu0
      %915 = vrot.lane.b32.xlu0 %v305, 112
      %v916 = vpop.permute.xlu0 %915
      %917 = vrot.lane.b32.xlu0 %v306, 112
      %v918 = vpop.permute.xlu0 %917
      %919 = vrot.lane.b32.xlu0 %v307, 112
      %v920 = vpop.permute.xlu0 %919
      %921 = vrot.lane.b32.xlu0 %v308, 112
      %v922 = vpop.permute.xlu0 %921
      %923 = vrot.lane.b32.xlu0 %v325, 112
      %v924 = vpop.permute.xlu0 %923
      %925 = vrot.lane.b32.xlu0 %v326, 112
      %v926 = vpop.permute.xlu0 %925
      %927 = vrot.lane.b32.xlu0 %v327, 112
      %v928 = vpop.permute.xlu0 %927
      %929 = vrot.lane.b32.xlu0 %v328, 112
      %v930 = vpop.permute.xlu0 %929
      %v932 = vsel %vm329, %v916, 0
      %v935 = vsel %vm329, %v918, 0
      %v938 = vsel %vm329, %v920, 0
      %v941 = vsel %vm329, %v922, 0
      %v944 = vsel %vm329, %v924, 0
      %v947 = vsel %vm329, %v926, 0
      %v950 = vsel %vm329, %v928, 0
      %v953 = vsel %vm329, %v930, 0
      %955 = vmatprep.subr.bf16.mxu0 0
      %956 = vmatpush1.bf16.xpose.msra.mxu0 0
      %957 = vmatprep.subr.bf16.mxu0 0
      %958 = vmatpush1.bf16.xpose.msra.mxu0 0
      %959 = vmatprep.subr.bf16.mxu0 0
      %960 = vmatpush1.bf16.xpose.msra.mxu0 0
      %961 = vmatprep.subr.bf16.mxu0 0
      %962 = vmatpush1.bf16.xpose.msra.mxu0 0
      %963 = vmatprep.subr.bf16.mxu0 0
      %964 = vmatpush1.bf16.xpose.msra.mxu0 %v953
      %965 = vmatprep.subr.bf16.mxu0 0
      %966 = vmatpush1.bf16.xpose.msra.mxu0 %v950
      %967 = vmatprep.subr.bf16.mxu0 0
      %968 = vmatpush1.bf16.xpose.msra.mxu0 %v947
      %969 = vmatprep.subr.bf16.mxu0 0
      %970 = vmatpush1.bf16.xpose.msra.mxu0 %v944
      %971 = vmatprep.subr.bf16.mxu0 0
      %972 = vmatpush2.bf16.xpose.msra.mxu0 0
      %973 = vmatprep.subr.bf16.mxu0 0
      %974 = vmatpush2.bf16.xpose.msra.mxu0 0
      %975 = vmatprep.subr.bf16.mxu0 0
      %976 = vmatpush2.bf16.xpose.msra.mxu0 0
      %977 = vmatprep.subr.bf16.mxu0 0
      %978 = vmatpush2.bf16.xpose.msra.mxu0 0
      %979 = vmatprep.subr.bf16.mxu0 0
      %980 = vmatpush2.bf16.xpose.msra.mxu0 0
      %981 = vmatprep.subr.bf16.mxu0 0
      %982 = vmatpush2.bf16.xpose.msra.mxu0 0
      %983 = vmatprep.subr.bf16.mxu0 0
      %984 = vmatpush2.bf16.xpose.msra.mxu0 0
      %985 = vmatprep.subr.bf16.mxu0 0
      %986 = vmatpush2.bf16.xpose.msra.mxu0 0
      %987 = vmatprep.mubr.bf16.mxu0 0
      %988 = vmatmul.mubr.bf16.gmra.mxu0 %v932
      %v989 = vpop.f32.mrf.mxu0
      %v990 = vadd.f32 0.0, %v989
      %v991 = vpop.f32.mrf.mxu0
      %v992 = vpop.f32.mrf.mxu0
      %v993 = vadd.f32 0.0, %v992
      %v994 = vpop.f32.mrf.mxu0
      %995 = vmatprep.mubr.bf16.mxu0 0
      %996 = vmatmul.mubr.bf16.gmra.mxu0 %v935
      %v997 = vpop.f32.mrf.mxu0
      %v998 = vadd.f32 0.0, %v997
      %v999 = vpop.f32.mrf.mxu0
      %v1000 = vpop.f32.mrf.mxu0
      %v1001 = vadd.f32 0.0, %v1000
      %v1002 = vpop.f32.mrf.mxu0
      %1003 = vmatprep.mubr.bf16.mxu0 0
      %1004 = vmatmul.mubr.bf16.gmra.mxu0 %v938
      %v1005 = vpop.f32.mrf.mxu0
      %v1006 = vadd.f32 0.0, %v1005
      %v1007 = vpop.f32.mrf.mxu0
      %v1008 = vpop.f32.mrf.mxu0
      %v1009 = vadd.f32 0.0, %v1008
      %v1010 = vpop.f32.mrf.mxu0
      %1011 = vmatprep.mubr.bf16.mxu0 0
      %1012 = vmatmul.mubr.bf16.gmra.mxu0 %v941
      %v1013 = vpop.f32.mrf.mxu0
      %v1014 = vadd.f32 0.0, %v1013
      %v1015 = vpop.f32.mrf.mxu0
      %v1016 = vpop.f32.mrf.mxu0
      %v1017 = vadd.f32 0.0, %v1016
      %v1018 = vpop.f32.mrf.mxu0
      %1019 = vdwg.mxu0
      %v1020 = vmul.f32 %v990, 0.35355338
      %v1021 = vmul.f32 %v993, 0.35355338
      %v1022 = vmul.f32 %v998, 0.35355338
      %v1023 = vmul.f32 %v1001, 0.35355338
      %v1024 = vmul.f32 %v1006, 0.35355338
      %v1025 = vmul.f32 %v1009, 0.35355338
      %v1026 = vmul.f32 %v1014, 0.35355338
      %v1027 = vmul.f32 %v1017, 0.35355338
      %v1028 = vsel %vm427, %v1020, -inf
      %1029 = vmax.xlane.f32.xlu0 %v1028
      %v1030 = vpop.xlane.xlu0 %1029
      %v1031 = vsel %vm427, %v1021, -inf
      %1032 = vmax.xlane.f32.xlu0 %v1031
      %v1033 = vpop.xlane.xlu0 %1032
      %v1034 = vsel %vm427, %v1022, -inf
      %1035 = vmax.xlane.f32.xlu0 %v1034
      %v1036 = vpop.xlane.xlu0 %1035
      %v1037 = vsel %vm427, %v1023, -inf
      %1038 = vmax.xlane.f32.xlu0 %v1037
      %v1039 = vpop.xlane.xlu0 %1038
      %v1040 = vsel %vm427, %v1024, -inf
      %1041 = vmax.xlane.f32.xlu0 %v1040
      %v1042 = vpop.xlane.xlu0 %1041
      %v1043 = vsel %vm427, %v1025, -inf
      %1044 = vmax.xlane.f32.xlu0 %v1043
      %v1045 = vpop.xlane.xlu0 %1044
      %v1046 = vsel %vm427, %v1026, -inf
      %1047 = vmax.xlane.f32.xlu0 %v1046
      %v1048 = vpop.xlane.xlu0 %1047
      %v1049 = vsel %vm427, %v1027, -inf
      %1050 = vmax.xlane.f32.xlu0 %v1049
      %v1051 = vpop.xlane.xlu0 %1050
      %v1052 = vsub.f32 %v1020, %v1030
      %v1053 = vsub.f32 %v1021, %v1033
      %v1054 = vsub.f32 %v1022, %v1036
      %v1055 = vsub.f32 %v1023, %v1039
      %v1056 = vsub.f32 %v1024, %v1042
      %v1057 = vsub.f32 %v1025, %v1045
      %v1058 = vsub.f32 %v1026, %v1048
      %v1059 = vsub.f32 %v1027, %v1051
      %v1060 = vmul.f32 %v1052, 1.442695
      %v1061 = vpow.pop %v1060
      %v1062 = vmul.f32 %v1053, 1.442695
      %v1063 = vpow.pop %v1062
      %v1064 = vmul.f32 %v1054, 1.442695
      %v1065 = vpow.pop %v1064
      %v1066 = vmul.f32 %v1055, 1.442695
      %v1067 = vpow.pop %v1066
      %v1068 = vmul.f32 %v1056, 1.442695
      %v1069 = vpow.pop %v1068
      %v1070 = vmul.f32 %v1057, 1.442695
      %v1071 = vpow.pop %v1070
      %v1072 = vmul.f32 %v1058, 1.442695
      %v1073 = vpow.pop %v1072
      %v1074 = vmul.f32 %v1059, 1.442695
      %v1075 = vpow.pop %v1074
      %v1076 = vsel %vm427, %v1061, 0.0
      %1077 = vadd.xlane.f32.xlu0 %v1076
      %v1078 = vpop.xlane.xlu0 %1077
      %v1079 = vsel %vm427, %v1063, 0.0
      %1080 = vadd.xlane.f32.xlu0 %v1079
      %v1081 = vpop.xlane.xlu0 %1080
      %v1082 = vsel %vm427, %v1065, 0.0
      %1083 = vadd.xlane.f32.xlu0 %v1082
      %v1084 = vpop.xlane.xlu0 %1083
      %v1085 = vsel %vm427, %v1067, 0.0
      %1086 = vadd.xlane.f32.xlu0 %v1085
      %v1087 = vpop.xlane.xlu0 %1086
      %v1088 = vsel %vm427, %v1069, 0.0
      %1089 = vadd.xlane.f32.xlu0 %v1088
      %v1090 = vpop.xlane.xlu0 %1089
      %v1091 = vsel %vm427, %v1071, 0.0
      %1092 = vadd.xlane.f32.xlu0 %v1091
      %v1093 = vpop.xlane.xlu0 %1092
      %v1094 = vsel %vm427, %v1073, 0.0
      %1095 = vadd.xlane.f32.xlu0 %v1094
      %v1096 = vpop.xlane.xlu0 %1095
      %v1097 = vsel %vm427, %v1075, 0.0
      %1098 = vadd.xlane.f32.xlu0 %v1097
      %v1099 = vpop.xlane.xlu0 %1098
      %v1100 = vrcp.pop %v1078
      %v1101 = vrcp.pop %v1081
      %v1102 = vrcp.pop %v1084
      %v1103 = vrcp.pop %v1087
      %v1104 = vrcp.pop %v1090
      %v1105 = vrcp.pop %v1093
      %v1106 = vrcp.pop %v1096
      %v1107 = vrcp.pop %v1099
      %v1108 = vmul.f32 %v1061, %v1100
      %v1109 = vmul.f32 %v1063, %v1101
      %v1110 = vmul.f32 %v1065, %v1102
      %v1111 = vmul.f32 %v1067, %v1103
      %v1112 = vmul.f32 %v1069, %v1104
      %v1113 = vmul.f32 %v1071, %v1105
      %v1114 = vmul.f32 %v1073, %v1106
      %v1115 = vmul.f32 %v1075, %v1107
      %v1116 = vpack.c.bf16 %v1109, %v1108
      %v1117 = vpack.c.bf16 %v1111, %v1110
      %v1118 = vpack.c.bf16 %v1113, %v1112
      %v1119 = vpack.c.bf16 %v1115, %v1114
      %1120 = vrot.lane.b32.xlu0 %v536, 112
      %v1121 = vpop.permute.xlu0 %1120
      %1122 = vrot.lane.b32.xlu0 %v537, 112
      %v1123 = vpop.permute.xlu0 %1122
      %1124 = vrot.lane.b32.xlu0 %v538, 112
      %v1125 = vpop.permute.xlu0 %1124
      %1126 = vrot.lane.b32.xlu0 %v539, 112
      %v1127 = vpop.permute.xlu0 %1126
      %v1133 = vsel %vm427, %v1116, 0
      %v1136 = vsel %vm427, %v1117, 0
      %v1139 = vsel %vm427, %v1118, 0
      %v1142 = vsel %vm427, %v1119, 0
      %1144 = vmatprep.subr.bf16.mxu0 0
      %1145 = vmatpush1.bf16.msra.mxu0 0
      %1146 = vmatprep.subr.bf16.mxu0 0
      %1147 = vmatpush1.bf16.msra.mxu0 0
      %1148 = vmatprep.subr.bf16.mxu0 0
      %1149 = vmatpush1.bf16.msra.mxu0 0
      %1150 = vmatprep.subr.bf16.mxu0 0
      %1151 = vmatpush1.bf16.msra.mxu0 0
      %1152 = vmatprep.subr.bf16.mxu0 0
      %1153 = vmatpush1.bf16.msra.mxu0 %v1127
      %1154 = vmatprep.subr.bf16.mxu0 0
      %1155 = vmatpush1.bf16.msra.mxu0 %v1125
      %1156 = vmatprep.subr.bf16.mxu0 0
      %1157 = vmatpush1.bf16.msra.mxu0 %v1123
      %1158 = vmatprep.subr.bf16.mxu0 0
      %1159 = vmatpush1.bf16.msra.mxu0 %v1121
      %1160 = vmatprep.subr.bf16.mxu0 0
      %1161 = vmatpush2.bf16.msra.mxu0 0
      %1162 = vmatprep.subr.bf16.mxu0 0
      %1163 = vmatpush2.bf16.msra.mxu0 0
      %1164 = vmatprep.subr.bf16.mxu0 0
      %1165 = vmatpush2.bf16.msra.mxu0 0
      %1166 = vmatprep.subr.bf16.mxu0 0
      %1167 = vmatpush2.bf16.msra.mxu0 0
      %1168 = vmatprep.subr.bf16.mxu0 0
      %1169 = vmatpush2.bf16.msra.mxu0 0
      %1170 = vmatprep.subr.bf16.mxu0 0
      %1171 = vmatpush2.bf16.msra.mxu0 0
      %1172 = vmatprep.subr.bf16.mxu0 0
      %1173 = vmatpush2.bf16.msra.mxu0 0
      %1174 = vmatprep.subr.bf16.mxu0 0
      %1175 = vmatpush2.bf16.msra.mxu0 0
      %1176 = vmatprep.mubr.bf16.mxu0 0
      %1177 = vmatmul.mubr.bf16.gmra.mxu0 %v1133
      %v1178 = vpop.f32.mrf.mxu0
      %v1179 = vadd.f32 0.0, %v1178
      %v1180 = vpop.f32.mrf.mxu0
      %v1181 = vpop.f32.mrf.mxu0
      %v1182 = vadd.f32 0.0, %v1181
      %v1183 = vpop.f32.mrf.mxu0
      %1184 = vmatprep.mubr.bf16.mxu0 0
      %1185 = vmatmul.mubr.bf16.gmra.mxu0 %v1136
      %v1186 = vpop.f32.mrf.mxu0
      %v1187 = vadd.f32 0.0, %v1186
      %v1188 = vpop.f32.mrf.mxu0
      %v1189 = vpop.f32.mrf.mxu0
      %v1190 = vadd.f32 0.0, %v1189
      %v1191 = vpop.f32.mrf.mxu0
      %1192 = vmatprep.mubr.bf16.mxu0 0
      %1193 = vmatmul.mubr.bf16.gmra.mxu0 %v1139
      %v1194 = vpop.f32.mrf.mxu0
      %v1195 = vadd.f32 0.0, %v1194
      %v1196 = vpop.f32.mrf.mxu0
      %v1197 = vpop.f32.mrf.mxu0
      %v1198 = vadd.f32 0.0, %v1197
      %v1199 = vpop.f32.mrf.mxu0
      %1200 = vmatprep.mubr.bf16.mxu0 0
      %1201 = vmatmul.mubr.bf16.gmra.mxu0 %v1142
      %v1202 = vpop.f32.mrf.mxu0
      %v1203 = vadd.f32 0.0, %v1202
      %v1204 = vpop.f32.mrf.mxu0
      %v1205 = vpop.f32.mrf.mxu0
      %v1206 = vadd.f32 0.0, %v1205
      %v1207 = vpop.f32.mrf.mxu0
      %1208 = vdwg.mxu0
      %1209 = vrot.lane.b32.xlu0 %v305, 104
      %v1210 = vpop.permute.xlu0 %1209
      %1211 = vrot.lane.b32.xlu0 %v306, 104
      %v1212 = vpop.permute.xlu0 %1211
      %1213 = vrot.lane.b32.xlu0 %v307, 104
      %v1214 = vpop.permute.xlu0 %1213
      %1215 = vrot.lane.b32.xlu0 %v308, 104
      %v1216 = vpop.permute.xlu0 %1215
      %1217 = vrot.lane.b32.xlu0 %v325, 104
      %v1218 = vpop.permute.xlu0 %1217
      %1219 = vrot.lane.b32.xlu0 %v326, 104
      %v1220 = vpop.permute.xlu0 %1219
      %1221 = vrot.lane.b32.xlu0 %v327, 104
      %v1222 = vpop.permute.xlu0 %1221
      %1223 = vrot.lane.b32.xlu0 %v328, 104
      %v1224 = vpop.permute.xlu0 %1223
      %v1226 = vsel %vm329, %v1210, 0
      %v1229 = vsel %vm329, %v1212, 0
      %v1232 = vsel %vm329, %v1214, 0
      %v1235 = vsel %vm329, %v1216, 0
      %v1238 = vsel %vm329, %v1218, 0
      %v1241 = vsel %vm329, %v1220, 0
      %v1244 = vsel %vm329, %v1222, 0
      %v1247 = vsel %vm329, %v1224, 0
      %1249 = vmatprep.subr.bf16.mxu0 0
      %1250 = vmatpush1.bf16.xpose.msra.mxu0 0
      %1251 = vmatprep.subr.bf16.mxu0 0
      %1252 = vmatpush1.bf16.xpose.msra.mxu0 0
      %1253 = vmatprep.subr.bf16.mxu0 0
      %1254 = vmatpush1.bf16.xpose.msra.mxu0 0
      %1255 = vmatprep.subr.bf16.mxu0 0
      %1256 = vmatpush1.bf16.xpose.msra.mxu0 0
      %1257 = vmatprep.subr.bf16.mxu0 0
      %1258 = vmatpush1.bf16.xpose.msra.mxu0 %v1247
      %1259 = vmatprep.subr.bf16.mxu0 0
      %1260 = vmatpush1.bf16.xpose.msra.mxu0 %v1244
      %1261 = vmatprep.subr.bf16.mxu0 0
      %1262 = vmatpush1.bf16.xpose.msra.mxu0 %v1241
      %1263 = vmatprep.subr.bf16.mxu0 0
      %1264 = vmatpush1.bf16.xpose.msra.mxu0 %v1238
      %1265 = vmatprep.subr.bf16.mxu0 0
      %1266 = vmatpush2.bf16.xpose.msra.mxu0 0
      %1267 = vmatprep.subr.bf16.mxu0 0
      %1268 = vmatpush2.bf16.xpose.msra.mxu0 0
      %1269 = vmatprep.subr.bf16.mxu0 0
      %1270 = vmatpush2.bf16.xpose.msra.mxu0 0
      %1271 = vmatprep.subr.bf16.mxu0 0
      %1272 = vmatpush2.bf16.xpose.msra.mxu0 0
      %1273 = vmatprep.subr.bf16.mxu0 0
      %1274 = vmatpush2.bf16.xpose.msra.mxu0 0
      %1275 = vmatprep.subr.bf16.mxu0 0
      %1276 = vmatpush2.bf16.xpose.msra.mxu0 0
      %1277 = vmatprep.subr.bf16.mxu0 0
      %1278 = vmatpush2.bf16.xpose.msra.mxu0 0
      %1279 = vmatprep.subr.bf16.mxu0 0
      %1280 = vmatpush2.bf16.xpose.msra.mxu0 0
      %1281 = vmatprep.mubr.bf16.mxu0 0
      %1282 = vmatmul.mubr.bf16.gmra.mxu0 %v1226
      %v1283 = vpop.f32.mrf.mxu0
      %v1284 = vadd.f32 0.0, %v1283
      %v1285 = vpop.f32.mrf.mxu0
      %v1286 = vpop.f32.mrf.mxu0
      %v1287 = vadd.f32 0.0, %v1286
      %v1288 = vpop.f32.mrf.mxu0
      %1289 = vmatprep.mubr.bf16.mxu0 0
      %1290 = vmatmul.mubr.bf16.gmra.mxu0 %v1229
      %v1291 = vpop.f32.mrf.mxu0
      %v1292 = vadd.f32 0.0, %v1291
      %v1293 = vpop.f32.mrf.mxu0
      %v1294 = vpop.f32.mrf.mxu0
      %v1295 = vadd.f32 0.0, %v1294
      %v1296 = vpop.f32.mrf.mxu0
      %1297 = vmatprep.mubr.bf16.mxu0 0
      %1298 = vmatmul.mubr.bf16.gmra.mxu0 %v1232
      %v1299 = vpop.f32.mrf.mxu0
      %v1300 = vadd.f32 0.0, %v1299
      %v1301 = vpop.f32.mrf.mxu0
      %v1302 = vpop.f32.mrf.mxu0
      %v1303 = vadd.f32 0.0, %v1302
      %v1304 = vpop.f32.mrf.mxu0
      %1305 = vmatprep.mubr.bf16.mxu0 0
      %1306 = vmatmul.mubr.bf16.gmra.mxu0 %v1235
      %v1307 = vpop.f32.mrf.mxu0
      %v1308 = vadd.f32 0.0, %v1307
      %v1309 = vpop.f32.mrf.mxu0
      %v1310 = vpop.f32.mrf.mxu0
      %v1311 = vadd.f32 0.0, %v1310
      %v1312 = vpop.f32.mrf.mxu0
      %1313 = vdwg.mxu0
      %v1314 = vmul.f32 %v1284, 0.35355338
      %v1315 = vmul.f32 %v1287, 0.35355338
      %v1316 = vmul.f32 %v1292, 0.35355338
      %v1317 = vmul.f32 %v1295, 0.35355338
      %v1318 = vmul.f32 %v1300, 0.35355338
      %v1319 = vmul.f32 %v1303, 0.35355338
      %v1320 = vmul.f32 %v1308, 0.35355338
      %v1321 = vmul.f32 %v1311, 0.35355338
      %v1322 = vsel %vm427, %v1314, -inf
      %1323 = vmax.xlane.f32.xlu0 %v1322
      %v1324 = vpop.xlane.xlu0 %1323
      %v1325 = vsel %vm427, %v1315, -inf
      %1326 = vmax.xlane.f32.xlu0 %v1325
      %v1327 = vpop.xlane.xlu0 %1326
      %v1328 = vsel %vm427, %v1316, -inf
      %1329 = vmax.xlane.f32.xlu0 %v1328
      %v1330 = vpop.xlane.xlu0 %1329
      %v1331 = vsel %vm427, %v1317, -inf
      %1332 = vmax.xlane.f32.xlu0 %v1331
      %v1333 = vpop.xlane.xlu0 %1332
      %v1334 = vsel %vm427, %v1318, -inf
      %1335 = vmax.xlane.f32.xlu0 %v1334
      %v1336 = vpop.xlane.xlu0 %1335
      %v1337 = vsel %vm427, %v1319, -inf
      %1338 = vmax.xlane.f32.xlu0 %v1337
      %v1339 = vpop.xlane.xlu0 %1338
      %v1340 = vsel %vm427, %v1320, -inf
      %1341 = vmax.xlane.f32.xlu0 %v1340
      %v1342 = vpop.xlane.xlu0 %1341
      %v1343 = vsel %vm427, %v1321, -inf
      %1344 = vmax.xlane.f32.xlu0 %v1343
      %v1345 = vpop.xlane.xlu0 %1344
      %v1346 = vsub.f32 %v1314, %v1324
      %v1347 = vsub.f32 %v1315, %v1327
      %v1348 = vsub.f32 %v1316, %v1330
      %v1349 = vsub.f32 %v1317, %v1333
      %v1350 = vsub.f32 %v1318, %v1336
      %v1351 = vsub.f32 %v1319, %v1339
      %v1352 = vsub.f32 %v1320, %v1342
      %v1353 = vsub.f32 %v1321, %v1345
      %v1354 = vmul.f32 %v1346, 1.442695
      %v1355 = vpow.pop %v1354
      %v1356 = vmul.f32 %v1347, 1.442695
      %v1357 = vpow.pop %v1356
      %v1358 = vmul.f32 %v1348, 1.442695
      %v1359 = vpow.pop %v1358
      %v1360 = vmul.f32 %v1349, 1.442695
      %v1361 = vpow.pop %v1360
      %v1362 = vmul.f32 %v1350, 1.442695
      %v1363 = vpow.pop %v1362
      %v1364 = vmul.f32 %v1351, 1.442695
      %v1365 = vpow.pop %v1364
      %v1366 = vmul.f32 %v1352, 1.442695
      %v1367 = vpow.pop %v1366
      %v1368 = vmul.f32 %v1353, 1.442695
      %v1369 = vpow.pop %v1368
      %v1370 = vsel %vm427, %v1355, 0.0
      %1371 = vadd.xlane.f32.xlu0 %v1370
      %v1372 = vpop.xlane.xlu0 %1371
      %v1373 = vsel %vm427, %v1357, 0.0
      %1374 = vadd.xlane.f32.xlu0 %v1373
      %v1375 = vpop.xlane.xlu0 %1374
      %v1376 = vsel %vm427, %v1359, 0.0
      %1377 = vadd.xlane.f32.xlu0 %v1376
      %v1378 = vpop.xlane.xlu0 %1377
      %v1379 = vsel %vm427, %v1361, 0.0
      %1380 = vadd.xlane.f32.xlu0 %v1379
      %v1381 = vpop.xlane.xlu0 %1380
      %v1382 = vsel %vm427, %v1363, 0.0
      %1383 = vadd.xlane.f32.xlu0 %v1382
      %v1384 = vpop.xlane.xlu0 %1383
      %v1385 = vsel %vm427, %v1365, 0.0
      %1386 = vadd.xlane.f32.xlu0 %v1385
      %v1387 = vpop.xlane.xlu0 %1386
      %v1388 = vsel %vm427, %v1367, 0.0
      %1389 = vadd.xlane.f32.xlu0 %v1388
      %v1390 = vpop.xlane.xlu0 %1389
      %v1391 = vsel %vm427, %v1369, 0.0
      %1392 = vadd.xlane.f32.xlu0 %v1391
      %v1393 = vpop.xlane.xlu0 %1392
      %v1394 = vrcp.pop %v1372
      %v1395 = vrcp.pop %v1375
      %v1396 = vrcp.pop %v1378
      %v1397 = vrcp.pop %v1381
      %v1398 = vrcp.pop %v1384
      %v1399 = vrcp.pop %v1387
      %v1400 = vrcp.pop %v1390
      %v1401 = vrcp.pop %v1393
      %v1402 = vmul.f32 %v1355, %v1394
      %v1403 = vmul.f32 %v1357, %v1395
      %v1404 = vmul.f32 %v1359, %v1396
      %v1405 = vmul.f32 %v1361, %v1397
      %v1406 = vmul.f32 %v1363, %v1398
      %v1407 = vmul.f32 %v1365, %v1399
      %v1408 = vmul.f32 %v1367, %v1400
      %v1409 = vmul.f32 %v1369, %v1401
      %v1410 = vpack.c.bf16 %v1403, %v1402
      %v1411 = vpack.c.bf16 %v1405, %v1404
      %v1412 = vpack.c.bf16 %v1407, %v1406
      %v1413 = vpack.c.bf16 %v1409, %v1408
      %1414 = vrot.lane.b32.xlu0 %v536, 104
      %v1415 = vpop.permute.xlu0 %1414
      %1416 = vrot.lane.b32.xlu0 %v537, 104
      %v1417 = vpop.permute.xlu0 %1416
      %1418 = vrot.lane.b32.xlu0 %v538, 104
      %v1419 = vpop.permute.xlu0 %1418
      %1420 = vrot.lane.b32.xlu0 %v539, 104
      %v1421 = vpop.permute.xlu0 %1420
      %v1427 = vsel %vm427, %v1410, 0
      %v1430 = vsel %vm427, %v1411, 0
      %v1433 = vsel %vm427, %v1412, 0
      %v1436 = vsel %vm427, %v1413, 0
      %1438 = vmatprep.subr.bf16.mxu0 0
      %1439 = vmatpush1.bf16.msra.mxu0 0
      %1440 = vmatprep.subr.bf16.mxu0 0
      %1441 = vmatpush1.bf16.msra.mxu0 0
      %1442 = vmatprep.subr.bf16.mxu0 0
      %1443 = vmatpush1.bf16.msra.mxu0 0
      %1444 = vmatprep.subr.bf16.mxu0 0
      %1445 = vmatpush1.bf16.msra.mxu0 0
      %1446 = vmatprep.subr.bf16.mxu0 0
      %1447 = vmatpush1.bf16.msra.mxu0 %v1421
      %1448 = vmatprep.subr.bf16.mxu0 0
      %1449 = vmatpush1.bf16.msra.mxu0 %v1419
      %1450 = vmatprep.subr.bf16.mxu0 0
      %1451 = vmatpush1.bf16.msra.mxu0 %v1417
      %1452 = vmatprep.subr.bf16.mxu0 0
      %1453 = vmatpush1.bf16.msra.mxu0 %v1415
      %1454 = vmatprep.subr.bf16.mxu0 0
      %1455 = vmatpush2.bf16.msra.mxu0 0
      %1456 = vmatprep.subr.bf16.mxu0 0
      %1457 = vmatpush2.bf16.msra.mxu0 0
      %1458 = vmatprep.subr.bf16.mxu0 0
      %1459 = vmatpush2.bf16.msra.mxu0 0
      %1460 = vmatprep.subr.bf16.mxu0 0
      %1461 = vmatpush2.bf16.msra.mxu0 0
      %1462 = vmatprep.subr.bf16.mxu0 0
      %1463 = vmatpush2.bf16.msra.mxu0 0
      %1464 = vmatprep.subr.bf16.mxu0 0
      %1465 = vmatpush2.bf16.msra.mxu0 0
      %1466 = vmatprep.subr.bf16.mxu0 0
      %1467 = vmatpush2.bf16.msra.mxu0 0
      %1468 = vmatprep.subr.bf16.mxu0 0
      %1469 = vmatpush2.bf16.msra.mxu0 0
      %1470 = vmatprep.mubr.bf16.mxu0 0
      %1471 = vmatmul.mubr.bf16.gmra.mxu0 %v1427
      %v1472 = vpop.f32.mrf.mxu0
      %v1473 = vadd.f32 0.0, %v1472
      %v1474 = vpop.f32.mrf.mxu0
      %v1475 = vpop.f32.mrf.mxu0
      %v1476 = vadd.f32 0.0, %v1475
      %v1477 = vpop.f32.mrf.mxu0
      %1478 = vmatprep.mubr.bf16.mxu0 0
      %1479 = vmatmul.mubr.bf16.gmra.mxu0 %v1430
      %v1480 = vpop.f32.mrf.mxu0
      %v1481 = vadd.f32 0.0, %v1480
      %v1482 = vpop.f32.mrf.mxu0
      %v1483 = vpop.f32.mrf.mxu0
      %v1484 = vadd.f32 0.0, %v1483
      %v1485 = vpop.f32.mrf.mxu0
      %1486 = vmatprep.mubr.bf16.mxu0 0
      %1487 = vmatmul.mubr.bf16.gmra.mxu0 %v1433
      %v1488 = vpop.f32.mrf.mxu0
      %v1489 = vadd.f32 0.0, %v1488
      %v1490 = vpop.f32.mrf.mxu0
      %v1491 = vpop.f32.mrf.mxu0
      %v1492 = vadd.f32 0.0, %v1491
      %v1493 = vpop.f32.mrf.mxu0
      %1494 = vmatprep.mubr.bf16.mxu0 0
      %1495 = vmatmul.mubr.bf16.gmra.mxu0 %v1436
      %v1496 = vpop.f32.mrf.mxu0
      %v1497 = vadd.f32 0.0, %v1496
      %v1498 = vpop.f32.mrf.mxu0
      %v1499 = vpop.f32.mrf.mxu0
      %v1500 = vadd.f32 0.0, %v1499
      %v1501 = vpop.f32.mrf.mxu0
      %1502 = vdwg.mxu0
      %1511 = vrot.lane.b32.xlu0 %v885, 8
      %v1512 = vpop.permute.xlu0 %1511
      %1513 = vrot.lane.b32.xlu0 %v888, 8
      %v1514 = vpop.permute.xlu0 %1513
      %1515 = vrot.lane.b32.xlu0 %v893, 8
      %v1516 = vpop.permute.xlu0 %1515
      %1517 = vrot.lane.b32.xlu0 %v896, 8
      %v1518 = vpop.permute.xlu0 %1517
      %1519 = vrot.lane.b32.xlu0 %v901, 8
      %v1520 = vpop.permute.xlu0 %1519
      %1521 = vrot.lane.b32.xlu0 %v904, 8
      %v1522 = vpop.permute.xlu0 %1521
      %1523 = vrot.lane.b32.xlu0 %v909, 8
      %v1524 = vpop.permute.xlu0 %1523
      %1525 = vrot.lane.b32.xlu0 %v912, 8
      %v1526 = vpop.permute.xlu0 %1525
      %1543 = vrot.lane.b32.xlu0 %v1179, 16
      %v1544 = vpop.permute.xlu0 %1543
      %1545 = vrot.lane.b32.xlu0 %v1182, 16
      %v1546 = vpop.permute.xlu0 %1545
      %1547 = vrot.lane.b32.xlu0 %v1187, 16
      %v1548 = vpop.permute.xlu0 %1547
      %1549 = vrot.lane.b32.xlu0 %v1190, 16
      %v1550 = vpop.permute.xlu0 %1549
      %1551 = vrot.lane.b32.xlu0 %v1195, 16
      %v1552 = vpop.permute.xlu0 %1551
      %1553 = vrot.lane.b32.xlu0 %v1198, 16
      %v1554 = vpop.permute.xlu0 %1553
      %1555 = vrot.lane.b32.xlu0 %v1203, 16
      %v1556 = vpop.permute.xlu0 %1555
      %1557 = vrot.lane.b32.xlu0 %v1206, 16
      %v1558 = vpop.permute.xlu0 %1557
      %1575 = vrot.lane.b32.xlu0 %v1473, 24
      %v1576 = vpop.permute.xlu0 %1575
      %1577 = vrot.lane.b32.xlu0 %v1476, 24
      %v1578 = vpop.permute.xlu0 %1577
      %1579 = vrot.lane.b32.xlu0 %v1481, 24
      %v1580 = vpop.permute.xlu0 %1579
      %1581 = vrot.lane.b32.xlu0 %v1484, 24
      %v1582 = vpop.permute.xlu0 %1581
      %1583 = vrot.lane.b32.xlu0 %v1489, 24
      %v1584 = vpop.permute.xlu0 %1583
      %1585 = vrot.lane.b32.xlu0 %v1492, 24
      %v1586 = vpop.permute.xlu0 %1585
      %1587 = vrot.lane.b32.xlu0 %v1497, 24
      %v1588 = vpop.permute.xlu0 %1587
      %1589 = vrot.lane.b32.xlu0 %v1500, 24
      %v1590 = vpop.permute.xlu0 %1589
      %v1599 = vsel %vm329, %v591, %v1512
      %v1600 = vsel %vm329, %v594, %v1514
      %v1601 = vsel %vm329, %v599, %v1516
      %v1602 = vsel %vm329, %v602, %v1518
      %v1603 = vsel %vm329, %v607, %v1520
      %v1604 = vsel %vm329, %v610, %v1522
      %v1605 = vsel %vm329, %v615, %v1524
      %v1606 = vsel %vm329, %v618, %v1526
      %vm1607 = vcmask 130048
      %v1608 = vsel %vm1607, %v1599, %v1544
      %v1609 = vsel %vm1607, %v1600, %v1546
      %v1610 = vsel %vm1607, %v1601, %v1548
      %v1611 = vsel %vm1607, %v1602, %v1550
      %v1612 = vsel %vm1607, %v1603, %v1552
      %v1613 = vsel %vm1607, %v1604, %v1554
      %v1614 = vsel %vm1607, %v1605, %v1556
      %v1615 = vsel %vm1607, %v1606, %v1558
      %vm1616 = vcmask 195584
      %v1617 = vsel %vm1616, %v1608, %v1576
      %v1618 = vsel %vm1616, %v1609, %v1578
      %v1619 = vsel %vm1616, %v1610, %v1580
      %v1620 = vsel %vm1616, %v1611, %v1582
      %v1621 = vsel %vm1616, %v1612, %v1584
      %v1622 = vsel %vm1616, %v1613, %v1586
      %v1623 = vsel %vm1616, %v1614, %v1588
      %v1624 = vsel %vm1616, %v1615, %v1590
      %v1625 = vpack.c.bf16 %v1618, %v1617
      %v1626 = vpack.c.bf16 %v1620, %v1619
      %v1627 = vpack.c.bf16 %v1622, %v1621
      %v1628 = vpack.c.bf16 %v1624, %v1623
      %v1633 = vunpack.c.l.b16 %v1625
      %v1634 = vunpack.c.h.b16 %v1625
      %v1635 = vunpack.c.l.b16 %v1626
      %v1636 = vunpack.c.h.b16 %v1626
      %v1637 = vunpack.c.l.b16 %v1627
      %v1638 = vunpack.c.h.b16 %v1627
      %v1639 = vunpack.c.l.b16 %v1628
      %v1640 = vunpack.c.h.b16 %v1628
      %v1641 = vpack.c.b16 %v1633, %v1633
      %v1642 = vpack.c.b16 %v1634, %v1634
      %v1643 = vpack.c.b16 %v1635, %v1635
      %v1644 = vpack.c.b16 %v1636, %v1636
      %v1645 = vpack.c.b16 %v1637, %v1637
      %v1646 = vpack.c.b16 %v1638, %v1638
      %v1647 = vpack.c.b16 %v1639, %v1639
      %v1648 = vpack.c.b16 %v1640, %v1640
      %vm1657 = vcmask 257024
      %1658 = vst.msk [vmem:[%s263] sm:$0xf] %vm1657, %v1641
      %1659 = vst.msk [vmem:[%s263 + $0x4] sm:$0xf] %vm1657, %v1642
      %1660 = vst.msk [vmem:[%s263 + $0x8] sm:$0xf] %vm1657, %v1643
      %1661 = vst.msk [vmem:[%s263 + $0xc] sm:$0xf] %vm1657, %v1644
      %1662 = vst.msk [vmem:[%s263 + $0x10] sm:$0xf] %vm1657, %v1645
      %1663 = vst.msk [vmem:[%s263 + $0x14] sm:$0xf] %vm1657, %v1646
      %1664 = vst.msk [vmem:[%s263 + $0x18] sm:$0xf] %vm1657, %v1647
      %1665 = vst.msk [vmem:[%s263 + $0x1c] sm:$0xf] %vm1657, %v1648
      %p1666 = scmp.lt.s32.totalorder %s18, 1
      %s1667 = scalar_select %p1666, %s18, 1
      %p1668 = scmp.lt.s32.totalorder %s19, 0
      %s1669 = scalar_select %p1668, %s19, 0
      %s1670 = smul.addr %s1667, 8
      %s1671 = sadd.s32 %s1669, %s1670
      %s1672 = smul.addr %s1671, 4
      %s1673 = scalar_lea.vmem %s3, %s1672
      // Predicated region
      $region33: #{block_forward.4} parent=31 // pred_check
        %p1674 = pneg %p130
      $region34: #{block_forward.4} parent=31 // pred_check_branch
        %1676 = sbr.rel (%p1674) target = $region36
      $region35: #{block_forward.4} parent=31 // pred_region
        _
      $region36: #{block_forward.4} parent=31 // pred_fallthru
        _
    $region32: #{block_forward.4} parent=5 // pred_fallthru
      _
    %p1677 = scmp.le.s32.totalorder 2, %s9
    // Predicated region
    $region37: #{block_forward.4} parent=5 // pred_check
      %p1678 = pneg %p1677
    $region38: #{block_forward.4} parent=5 // pred_check_branch
      %1680 = sbr.rel (%p1678) target = $region40
    $region39: #{block_forward.4} parent=5 // pred_region
      %s1681 = ssub.s32 %s9, 2
      // Predicated region
      $region41: #{block_forward.4} parent=39 // pred_check
        %p1682 = pneg %p136
      $region42: #{block_forward.4} parent=39 // pred_check_branch
        %1684 = sbr.rel (%p1682) target = $region44
      $region43: #{block_forward.4} parent=39 // pred_region
        %p1685 = scmp.lt.s32.totalorder %s20, 1
        %s1686 = scalar_select %p1685, %s20, 1
        %p1687 = scmp.lt.s32.totalorder %s21, 0
        %s1688 = scalar_select %p1687, %s21, 0
        %s1689 = smul.addr %s1686, 8
        %s1690 = sadd.s32 %s1688, %s1689
        %s1691 = smul.addr %s1690, 4
        %s1692 = scalar_lea.vmem %s3, %s1691
      $region44: #{block_forward.4} parent=39 // pred_fallthru
        _
    $region40: #{block_forward.4} parent=5 // pred_fallthru
      _
  $region6: #{block_forward.4} parent=0 // loop_footer
    %s13 = sadd.s32 1, %s9
  $region7: #{block_forward.4} parent=0 // loop_footer_branch
    %8 = sbr.rel target = $region3
  $region8: #{block_forward.4} parent=0 // loop_exit
    _

// kernel: block_forward.5
$region0: #{block_forward.5}
  #allocation0 [shape = 'u32[]', space=smem, size = 0x4, offset = 0x4, fixed_abs, tag = 'smem constant byte address 0x4 - core index']
  #allocation1 [shape = 'u32[144,128]{1,0:T(1,128)}', space=vmem, size = 0x12000, scoped, tag = 'internal scratch']
  %s0 = inlined_call_operand.vmem [shape: bf16[2,64,32], index: 0, kind: input, shape index: {}]
  %s1 = inlined_call_operand.vmem [shape: f32[2,64,32], index: 1, kind: input, shape index: {}]
  %s2 = inlined_call_operand.vmem [shape: bf16[32,32], index: 2, kind: input, shape index: {}]
  %s3 = inlined_call_operand.vmem [shape: f32[1,32], index: 3, kind: input, shape index: {}]
  %s4 = inlined_call_operand.vmem [shape: f32[1,32], index: 4, kind: input, shape index: {}]
  %s5 = inlined_call_operand.vmem [shape: f32[1,32], index: 5, kind: input, shape index: {}]
  %s6 = inlined_call_operand.vmem [shape: bf16[32,128], index: 6, kind: input, shape index: {}]
  %s7 = inlined_call_operand.vmem [shape: f32[1,128], index: 7, kind: input, shape index: {}]
  %s8 = inlined_call_operand.vmem [shape: bf16[128,32], index: 8, kind: input, shape index: {}]
  %s9 = inlined_call_operand.vmem [shape: f32[1,32], index: 9, kind: input, shape index: {}]
  %s10 = inlined_call_operand.hbm [shape: f32[2,64,32], index: 10, kind: output, shape index: {}]
  %s11 = sld [smem:[#allocation0]]
  $region73: #{block_forward.5} parent=0
    _
  %s13 = ssub.s32 1, %s11
  %s14 = scalar_select 0, %s13, %s11
  $region1: #{block_forward.5} parent=0
    #allocation2 [shape = 'u8[65536]{0}', space=vmem, size = 0x10000, scoped, tag = 'output window, operand 0']
    #allocation3 [shape = 's32[2]{0}', space=sflag, size = 0x8, scoped, tag = 'scoped memory for block_forward.5']
    %15 = vsyncpa [#allocation3], 0
    %s16 = scalar_lea.sflag [#allocation3], 1
    %17 = vsyncpa %s16, 0
    loop: start=0, step=1, limit=4
    $region2: #{block_forward.5} parent=1 // loop_pre_header
      _
    $region3: #{block_forward.5} parent=1 // loop_header
      %s19 = sphi 0, %s23
      %p20 = scmp.ge.s32.totalorder %s19, 4
      %s26 = sphi 0, %s38
      %s27 = sphi 0, %s34
      %s28 = sphi 0, %s26
      %s29 = sphi 0, %s27
      %s30 = sphi 0, %s28
      %s31 = sphi 0, %s29
      %s43 = sphi 0, %s45
      %s46 = sphi 0, %s43
      %s47 = sphi 0, %s46
      %s63 = sphi 0, %s47
      %s71 = sphi 0, %s73
      %s74 = sphi 0, %s71
      %s75 = sphi 0, %s74
      %s91 = sphi 0, %s75
      %s95 = sphi 0, %s95
      %s97 = sphi 0, %s95
      %s98 = sphi 0, %s97
      %s112 = sphi 0, %s98
      %s116 = sphi 0, %s116
      %s118 = sphi 0, %s116
      %s119 = sphi 0, %s118
      %s133 = sphi 0, %s119
      %s137 = sphi 0, %s137
      %s139 = sphi 0, %s137
      %s140 = sphi 0, %s139
      %s154 = sphi 0, %s140
      %s158 = sphi 0, %s158
      %s160 = sphi 0, %s158
      %s161 = sphi 0, %s160
      %s175 = sphi 0, %s161
      %s179 = sphi 0, %s179
      %s181 = sphi 0, %s179
      %s182 = sphi 0, %s181
      %s196 = sphi 0, %s182
      %s200 = sphi 0, %s200
      %s202 = sphi 0, %s200
      %s203 = sphi 0, %s202
      %s217 = sphi 0, %s203
      %s221 = sphi 0, %s221
      %s223 = sphi 0, %s221
      %s224 = sphi 0, %s223
      %s238 = sphi 0, %s224
      %s242 = sphi 0, %s242
      %s244 = sphi 0, %s242
      %s245 = sphi 0, %s244
      %s259 = sphi 0, %s245
      %s267 = sphi 0, %s269
      %s270 = sphi 0, %s267
      %s271 = sphi 0, %s270
      %s287 = sphi 0, %s271
    $region4: #{block_forward.5} parent=1 // loop_header_branch
      %22 = sbr.rel (%p20) target = $region8
    $region5: #{block_forward.5} parent=1 // loop_body
      %s24 = ssub.s32 %s19, 1
      %s25 = ssub.s32 %s19, 2
      %s32 = sadd.s32 1, %s27
      %p33 = scmp.ge.s32.totalorder %s32, 1
      %s34 = scalar_select %p33, 0, %s32
      %s35 = sadd.s32 1, %s26
      %s36 = scalar_select %p33, %s35, %s26
      %p37 = scmp.ge.s32.totalorder %s36, 2
      %s38 = scalar_select %p37, 0, %s36
      %s39 = ssub.s32 %s26, %s38
      %s40 = ssub.s32 %s27, %s34
      %s41 = sor.u32 %s39, %s40
      %p42 = scmp.eq.s32.totalorder %s41, 0
      %s44 = sadd.s32 %s43, 1
      %s45 = scalar_select %p42, %s43, %s44
      %p48 = pneg %p42
      %p49 = scmp.eq.s32.totalorder %s19, 1
      %p50 = por %p48, %p49
      %p51 = scmp.ne.s32.totalorder %s43, %s46
      %p52 = scmp.eq.s32.totalorder %s19, 0
      %p53 = por %p51, %p52
      %p54 = scmp.ne.s32.totalorder %s43, %s46
      %p55 = scmp.eq.s32.totalorder %s24, 1
      %p56 = por %p54, %p55
      %p57 = scmp.ne.s32.totalorder %s46, %s47
      %p58 = scmp.eq.s32.totalorder %s24, 0
      %p59 = por %p57, %p58
      %p60 = scmp.ne.s32.totalorder %s46, %s47
      %p61 = scmp.eq.s32.totalorder %s25, 1
      %p62 = por %p60, %p61
      %p64 = scmp.ne.s32.totalorder %s47, %s63
      %p65 = scmp.eq.s32.totalorder %s25, 0
      %p66 = por %p64, %p65
      %s67 = ssub.s32 %s26, %s38
      %s68 = ssub.s32 %s27, %s34
      %s69 = sor.u32 %s67, %s68
      %p70 = scmp.eq.s32.totalorder %s69, 0
      %s72 = sadd.s32 %s71, 1
      %s73 = scalar_select %p70, %s71, %s72
      %p76 = pneg %p70
      %p77 = scmp.eq.s32.totalorder %s19, 1
      %p78 = por %p76, %p77
      %p79 = scmp.ne.s32.totalorder %s71, %s74
      %p80 = scmp.eq.s32.totalorder %s19, 0
      %p81 = por %p79, %p80
      %p82 = scmp.ne.s32.totalorder %s71, %s74
      %p83 = scmp.eq.s32.totalorder %s24, 1
      %p84 = por %p82, %p83
      %p85 = scmp.ne.s32.totalorder %s74, %s75
      %p86 = scmp.eq.s32.totalorder %s24, 0
      %p87 = por %p85, %p86
      %p88 = scmp.ne.s32.totalorder %s74, %s75
      %p89 = scmp.eq.s32.totalorder %s25, 1
      %p90 = por %p88, %p89
      %p92 = scmp.ne.s32.totalorder %s75, %s91
      %p93 = scmp.eq.s32.totalorder %s25, 0
      %p94 = por %p92, %p93
      %s96 = sadd.s32 %s95, 1
      %p99 = scmp.eq.s32.totalorder %s19, 1
      %p100 = scmp.ne.s32.totalorder %s95, %s97
      %p101 = scmp.eq.s32.totalorder %s19, 0
      %p102 = por %p100, %p101
      %p103 = scmp.ne.s32.totalorder %s95, %s97
      %p104 = scmp.eq.s32.totalorder %s24, 1
      %p105 = por %p103, %p104
      %p106 = scmp.ne.s32.totalorder %s97, %s98
      %p107 = scmp.eq.s32.totalorder %s24, 0
      %p108 = por %p106, %p107
      %p109 = scmp.ne.s32.totalorder %s97, %s98
      %p110 = scmp.eq.s32.totalorder %s25, 1
      %p111 = por %p109, %p110
      %p113 = scmp.ne.s32.totalorder %s98, %s112
      %p114 = scmp.eq.s32.totalorder %s25, 0
      %p115 = por %p113, %p114
      %s117 = sadd.s32 %s116, 1
      %p120 = scmp.eq.s32.totalorder %s19, 1
      %p121 = scmp.ne.s32.totalorder %s116, %s118
      %p122 = scmp.eq.s32.totalorder %s19, 0
      %p123 = por %p121, %p122
      %p124 = scmp.ne.s32.totalorder %s116, %s118
      %p125 = scmp.eq.s32.totalorder %s24, 1
      %p126 = por %p124, %p125
      %p127 = scmp.ne.s32.totalorder %s118, %s119
      %p128 = scmp.eq.s32.totalorder %s24, 0
      %p129 = por %p127, %p128
      %p130 = scmp.ne.s32.totalorder %s118, %s119
      %p131 = scmp.eq.s32.totalorder %s25, 1
      %p132 = por %p130, %p131
      %p134 = scmp.ne.s32.totalorder %s119, %s133
      %p135 = scmp.eq.s32.totalorder %s25, 0
      %p136 = por %p134, %p135
      %s138 = sadd.s32 %s137, 1
      %p141 = scmp.eq.s32.totalorder %s19, 1
      %p142 = scmp.ne.s32.totalorder %s137, %s139
      %p143 = scmp.eq.s32.totalorder %s19, 0
      %p144 = por %p142, %p143
      %p145 = scmp.ne.s32.totalorder %s137, %s139
      %p146 = scmp.eq.s32.totalorder %s24, 1
      %p147 = por %p145, %p146
      %p148 = scmp.ne.s32.totalorder %s139, %s140
      %p149 = scmp.eq.s32.totalorder %s24, 0
      %p150 = por %p148, %p149
      %p151 = scmp.ne.s32.totalorder %s139, %s140
      %p152 = scmp.eq.s32.totalorder %s25, 1
      %p153 = por %p151, %p152
      %p155 = scmp.ne.s32.totalorder %s140, %s154
      %p156 = scmp.eq.s32.totalorder %s25, 0
      %p157 = por %p155, %p156
      %s159 = sadd.s32 %s158, 1
      %p162 = scmp.eq.s32.totalorder %s19, 1
      %p163 = scmp.ne.s32.totalorder %s158, %s160
      %p164 = scmp.eq.s32.totalorder %s19, 0
      %p165 = por %p163, %p164
      %p166 = scmp.ne.s32.totalorder %s158, %s160
      %p167 = scmp.eq.s32.totalorder %s24, 1
      %p168 = por %p166, %p167
      %p169 = scmp.ne.s32.totalorder %s160, %s161
      %p170 = scmp.eq.s32.totalorder %s24, 0
      %p171 = por %p169, %p170
      %p172 = scmp.ne.s32.totalorder %s160, %s161
      %p173 = scmp.eq.s32.totalorder %s25, 1
      %p174 = por %p172, %p173
      %p176 = scmp.ne.s32.totalorder %s161, %s175
      %p177 = scmp.eq.s32.totalorder %s25, 0
      %p178 = por %p176, %p177
      %s180 = sadd.s32 %s179, 1
      %p183 = scmp.eq.s32.totalorder %s19, 1
      %p184 = scmp.ne.s32.totalorder %s179, %s181
      %p185 = scmp.eq.s32.totalorder %s19, 0
      %p186 = por %p184, %p185
      %p187 = scmp.ne.s32.totalorder %s179, %s181
      %p188 = scmp.eq.s32.totalorder %s24, 1
      %p189 = por %p187, %p188
      %p190 = scmp.ne.s32.totalorder %s181, %s182
      %p191 = scmp.eq.s32.totalorder %s24, 0
      %p192 = por %p190, %p191
      %p193 = scmp.ne.s32.totalorder %s181, %s182
      %p194 = scmp.eq.s32.totalorder %s25, 1
      %p195 = por %p193, %p194
      %p197 = scmp.ne.s32.totalorder %s182, %s196
      %p198 = scmp.eq.s32.totalorder %s25, 0
      %p199 = por %p197, %p198
      %s201 = sadd.s32 %s200, 1
      %p204 = scmp.eq.s32.totalorder %s19, 1
      %p205 = scmp.ne.s32.totalorder %s200, %s202
      %p206 = scmp.eq.s32.totalorder %s19, 0
      %p207 = por %p205, %p206
      %p208 = scmp.ne.s32.totalorder %s200, %s202
      %p209 = scmp.eq.s32.totalorder %s24, 1
      %p210 = por %p208, %p209
      %p211 = scmp.ne.s32.totalorder %s202, %s203
      %p212 = scmp.eq.s32.totalorder %s24, 0
      %p213 = por %p211, %p212
      %p214 = scmp.ne.s32.totalorder %s202, %s203
      %p215 = scmp.eq.s32.totalorder %s25, 1
      %p216 = por %p214, %p215
      %p218 = scmp.ne.s32.totalorder %s203, %s217
      %p219 = scmp.eq.s32.totalorder %s25, 0
      %p220 = por %p218, %p219
      %s222 = sadd.s32 %s221, 1
      %p225 = scmp.eq.s32.totalorder %s19, 1
      %p226 = scmp.ne.s32.totalorder %s221, %s223
      %p227 = scmp.eq.s32.totalorder %s19, 0
      %p228 = por %p226, %p227
      %p229 = scmp.ne.s32.totalorder %s221, %s223
      %p230 = scmp.eq.s32.totalorder %s24, 1
      %p231 = por %p229, %p230
      %p232 = scmp.ne.s32.totalorder %s223, %s224
      %p233 = scmp.eq.s32.totalorder %s24, 0
      %p234 = por %p232, %p233
      %p235 = scmp.ne.s32.totalorder %s223, %s224
      %p236 = scmp.eq.s32.totalorder %s25, 1
      %p237 = por %p235, %p236
      %p239 = scmp.ne.s32.totalorder %s224, %s238
      %p240 = scmp.eq.s32.totalorder %s25, 0
      %p241 = por %p239, %p240
      %s243 = sadd.s32 %s242, 1
      %p246 = scmp.eq.s32.totalorder %s19, 1
      %p247 = scmp.ne.s32.totalorder %s242, %s244
      %p248 = scmp.eq.s32.totalorder %s19, 0
      %p249 = por %p247, %p248
      %p250 = scmp.ne.s32.totalorder %s242, %s244
      %p251 = scmp.eq.s32.totalorder %s24, 1
      %p252 = por %p250, %p251
      %p253 = scmp.ne.s32.totalorder %s244, %s245
      %p254 = scmp.eq.s32.totalorder %s24, 0
      %p255 = por %p253, %p254
      %p256 = scmp.ne.s32.totalorder %s244, %s245
      %p257 = scmp.eq.s32.totalorder %s25, 1
      %p258 = por %p256, %p257
      %p260 = scmp.ne.s32.totalorder %s245, %s259
      %p261 = scmp.eq.s32.totalorder %s25, 0
      %p262 = por %p260, %p261
      %s263 = ssub.s32 %s26, %s38
      %s264 = ssub.s32 %s27, %s34
      %s265 = sor.u32 %s263, %s264
      %p266 = scmp.eq.s32.totalorder %s265, 0
      %s268 = sadd.s32 %s267, 1
      %s269 = scalar_select %p266, %s267, %s268
      %p272 = pneg %p266
      %p273 = scmp.eq.s32.totalorder %s19, 1
      %p274 = por %p272, %p273
      %p275 = scmp.ne.s32.totalorder %s267, %s270
      %p276 = scmp.eq.s32.totalorder %s19, 0
      %p277 = por %p275, %p276
      %p278 = scmp.ne.s32.totalorder %s267, %s270
      %p279 = scmp.eq.s32.totalorder %s24, 1
      %p280 = por %p278, %p279
      %p281 = scmp.ne.s32.totalorder %s270, %s271
      %p282 = scmp.eq.s32.totalorder %s24, 0
      %p283 = por %p281, %p282
      %p284 = scmp.ne.s32.totalorder %s270, %s271
      %p285 = scmp.eq.s32.totalorder %s25, 1
      %p286 = por %p284, %p285
      %p288 = scmp.ne.s32.totalorder %s271, %s287
      %p289 = scmp.eq.s32.totalorder %s25, 0
      %p290 = por %p288, %p289
      %p291 = scmp.le.s32.totalorder 1, %s19
      %p292 = scmp.lt.s32.totalorder %s19, 3
      %p293 = pnand %p291, %p292
      %p294 = pneg %p293
      // Predicated region
      $region9: #{block_forward.5} parent=5 // pred_check
        _
      $region10: #{block_forward.5} parent=5 // pred_check_branch
        %296 = sbr.rel (%p293) target = $region12
      $region11: #{block_forward.5} parent=5 // pred_region
        %s297 = ssub.s32 %s19, 1
        // Predicated region
        $region13: #{block_forward.5} parent=11 // pred_check
          %p298 = pneg %p108
        $region14: #{block_forward.5} parent=11 // pred_check_branch
          %300 = sbr.rel (%p298) target = $region16
        $region15: #{block_forward.5} parent=11 // pred_region
          _
        $region16: #{block_forward.5} parent=11 // pred_fallthru
          _
        // Predicated region
        $region17: #{block_forward.5} parent=11 // pred_check
          %p301 = pneg %p129
        $region18: #{block_forward.5} parent=11 // pred_check_branch
          %303 = sbr.rel (%p301) target = $region20
        $region19: #{block_forward.5} parent=11 // pred_region
          _
        $region20: #{block_forward.5} parent=11 // pred_fallthru
          _
        // Predicated region
        $region21: #{block_forward.5} parent=11 // pred_check
          %p304 = pneg %p150
        $region22: #{block_forward.5} parent=11 // pred_check_branch
          %306 = sbr.rel (%p304) target = $region24
        $region23: #{block_forward.5} parent=11 // pred_region
          _
        $region24: #{block_forward.5} parent=11 // pred_fallthru
          _
        // Predicated region
        $region25: #{block_forward.5} parent=11 // pred_check
          %p307 = pneg %p171
        $region26: #{block_forward.5} parent=11 // pred_check_branch
          %309 = sbr.rel (%p307) target = $region28
        $region27: #{block_forward.5} parent=11 // pred_region
          _
        $region28: #{block_forward.5} parent=11 // pred_fallthru
          _
        // Predicated region
        $region29: #{block_forward.5} parent=11 // pred_check
          %p310 = pneg %p192
        $region30: #{block_forward.5} parent=11 // pred_check_branch
          %312 = sbr.rel (%p310) target = $region32
        $region31: #{block_forward.5} parent=11 // pred_region
          _
        $region32: #{block_forward.5} parent=11 // pred_fallthru
          _
        // Predicated region
        $region33: #{block_forward.5} parent=11 // pred_check
          %p313 = pneg %p213
        $region34: #{block_forward.5} parent=11 // pred_check_branch
          %315 = sbr.rel (%p313) target = $region36
        $region35: #{block_forward.5} parent=11 // pred_region
          _
        $region36: #{block_forward.5} parent=11 // pred_fallthru
          _
        // Predicated region
        $region37: #{block_forward.5} parent=11 // pred_check
          %p316 = pneg %p234
        $region38: #{block_forward.5} parent=11 // pred_check_branch
          %318 = sbr.rel (%p316) target = $region40
        $region39: #{block_forward.5} parent=11 // pred_region
          _
        $region40: #{block_forward.5} parent=11 // pred_fallthru
          _
        // Predicated region
        $region41: #{block_forward.5} parent=11 // pred_check
          %p319 = pneg %p255
        $region42: #{block_forward.5} parent=11 // pred_check_branch
          %321 = sbr.rel (%p319) target = $region44
        $region43: #{block_forward.5} parent=11 // pred_region
          _
        $region44: #{block_forward.5} parent=11 // pred_fallthru
          _
      $region12: #{block_forward.5} parent=5 // pred_fallthru
        _
      %p322 = scmp.lt.s32.totalorder %s19, 2
      // Predicated region
      $region45: #{block_forward.5} parent=5 // pred_check
        %p323 = pneg %p322
      $region46: #{block_forward.5} parent=5 // pred_check_branch
        %325 = sbr.rel (%p323) target = $region48
      $region47: #{block_forward.5} parent=5 // pred_region
        // Predicated region
        $region49: #{block_forward.5} parent=47 // pred_check
          %p326 = pneg %p53
        $region50: #{block_forward.5} parent=47 // pred_check_branch
          %328 = sbr.rel (%p326) target = $region52
        $region51: #{block_forward.5} parent=47 // pred_region
          %s329 = smul.u32 8, %s27
          %p330 = scmp.lt.s32.totalorder %s26, 1
          %s331 = scalar_select %p330, %s26, 1
          %p332 = scmp.lt.s32.totalorder %s329, 7
          %s333 = scalar_select %p332, %s329, 7
          %s334 = smul.addr %s331, 8
          %s335 = sadd.s32 %s333, %s334
          %s336 = smul.addr %s335, 4
          %s337 = scalar_lea.vmem %s0, %s336
          %s338 = smul.u32 8, %s27
        $region52: #{block_forward.5} parent=47 // pred_fallthru
          _
        // Predicated region
        $region53: #{block_forward.5} parent=47 // pred_check
          %p339 = pneg %p81
        $region54: #{block_forward.5} parent=47 // pred_check_branch
          %341 = sbr.rel (%p339) target = $region56
        $region55: #{block_forward.5} parent=47 // pred_region
          %s342 = smul.u32 8, %s27
          %p343 = scmp.lt.s32.totalorder %s26, 1
          %s344 = scalar_select %p343, %s26, 1
          %p345 = scmp.lt.s32.totalorder %s342, 7
          %s346 = scalar_select %p345, %s342, 7
          %s347 = smul.addr %s344, 8
          %s348 = sadd.s32 %s346, %s347
          %s349 = smul.addr %s348, 8
          %s350 = scalar_lea.vmem %s1, %s349
          %s351 = smul.u32 8, %s27
        $region56: #{block_forward.5} parent=47 // pred_fallthru
          _
      $region48: #{block_forward.5} parent=5 // pred_fallthru
        _
      %p352 = scmp.le.s32.totalorder 1, %s19
      %p353 = scmp.lt.s32.totalorder %s19, 3
      %p354 = pnand %p352, %p353
      %p355 = pneg %p354
      // Predicated region
      $region57: #{block_forward.5} parent=5 // pred_check
        _
      $region58: #{block_forward.5} parent=5 // pred_check_branch
        %357 = sbr.rel (%p354) target = $region60
      $region59: #{block_forward.5} parent=5 // pred_region
        %s358 = ssub.s32 %s19, 1
        %s359 = smul.u32 8, %s29
        %p360 = scmp.lt.s32.totalorder %s28, 1
        %s361 = scalar_select %p360, %s28, 1
        %p362 = scmp.lt.s32.totalorder %s359, 7
        %s363 = scalar_select %p362, %s359, 7
        %s364 = smul.addr %s361, 8
        %s365 = sadd.s32 %s363, %s364
        %s366 = smul.addr %s365, 4
        %s367 = scalar_lea.vmem %s0, %s366
        %p368 = pneg %p59
        %p369 = pneg %p56
        %s370 = smul.u32 8, %s29
        %p371 = scmp.lt.s32.totalorder %s28, 1
        %s372 = scalar_select %p371, %s28, 1
        %p373 = scmp.lt.s32.totalorder %s370, 7
        %s374 = scalar_select %p373, %s370, 7
        %s375 = smul.addr %s372, 8
        %s376 = sadd.s32 %s374, %s375
        %s377 = smul.addr %s376, 8
        %s378 = scalar_lea.vmem %s1, %s377
        %p379 = pneg %p87
        %p380 = pneg %p84
        %p381 = pneg %p108
        %p382 = pneg %p105
        %p383 = pneg %p129
        %p384 = pneg %p126
        %p385 = pneg %p150
        %p386 = pneg %p147
        %p387 = pneg %p171
        %p388 = pneg %p168
        %p389 = pneg %p192
        %p390 = pneg %p189
        %p391 = pneg %p213
        %p392 = pneg %p210
        %p393 = pneg %p234
        %p394 = pneg %p231
        %p395 = pneg %p255
        %p396 = pneg %p252
        %p397 = pneg %p283
        %p398 = pneg %p280
        %s399 = sand.u32 %s270, 1
        %s400 = scalar_lea.sflag [#allocation3], %s399
        %s401 = sand.u32 %s270, 1
        %s402 = smul.addr %s401, 64
        %s403 = scalar_lea.vmem [#allocation2], %s402
        %s404 = smul.u32 8, %s29
        %p405 = scmp.lt.s32.totalorder %s28, 1
        %s406 = scalar_select %p405, %s28, 1
        %p407 = scmp.lt.s32.totalorder %s404, 7
        %s408 = scalar_select %p407, %s404, 7
        %s409 = smul.addr %s406, 8
        %s410 = sadd.s32 %s408, %s409
        %s411 = smul.addr %s410, 4
        %s412 = scalar_lea.vmem %s0, %s411
        %s413 = smul.u32 8, %s29
        %s414 = smul.u32 8, %s29
        %p415 = scmp.lt.s32.totalorder %s28, 1
        %s416 = scalar_select %p415, %s28, 1
        %p417 = scmp.lt.s32.totalorder %s414, 7
        %s418 = scalar_select %p417, %s414, 7
        %s419 = smul.addr %s416, 8
        %s420 = sadd.s32 %s418, %s419
        %s421 = smul.addr %s420, 8
        %s422 = scalar_lea.vmem %s1, %s421
        %s423 = smul.u32 8, %s29
        %s424 = smul.u32 8, %s29
        %v426 = vld [vmem:[%s412] sm:$0xf]
        %v427 = vld [vmem:[%s412 + $0x4] sm:$0xf]
        %v428 = vld [vmem:[%s412 + $0x8] sm:$0xf]
        %v429 = vld [vmem:[%s412 + $0xc] sm:$0xf]
        %v430 = vld [vmem:[%s412 + $0x10] sm:$0xf]
        %v431 = vld [vmem:[%s412 + $0x14] sm:$0xf]
        %v432 = vld [vmem:[%s412 + $0x18] sm:$0xf]
        %v433 = vld [vmem:[%s412 + $0x1c] sm:$0xf]
        %v434 = vld [vmem:[%s2] sm:$0xf]
        %v435 = vld [vmem:[%s2 + $0x4] sm:$0xf]
        %v436 = vld [vmem:[%s2 + $0x8] sm:$0xf]
        %v437 = vld [vmem:[%s2 + $0xc] sm:$0xf]
        %v438 = vld [vmem:[%s3] sm:$0x1]
        %v440 = vlaneseq
        %v441 = vshrl.u32 %v440, 7
        %v442 = vsub.s32 0, %v441
        %v443 = vrot.slane %v438, %v442
        %v453 = vunpack.c.l.b16 %v426
        %v454 = vunpack.c.l.b16 %v427
        %v455 = vunpack.c.l.b16 %v428
        %v456 = vunpack.c.l.b16 %v429
        %v457 = vunpack.c.l.b16 %v430
        %v458 = vunpack.c.l.b16 %v431
        %v459 = vunpack.c.l.b16 %v432
        %v460 = vunpack.c.l.b16 %v433
        %v461 = vpack.c.b16 %v454, %v453
        %v462 = vpack.c.b16 %v456, %v455
        %v463 = vpack.c.b16 %v458, %v457
        %v464 = vpack.c.b16 %v460, %v459
        %v469 = vunpack.c.l.b16 %v434
        %v470 = vunpack.c.l.b16 %v435
        %v471 = vunpack.c.l.b16 %v436
        %v472 = vunpack.c.l.b16 %v437
        %v473 = vpack.c.b16 %v470, %v469
        %v474 = vpack.c.b16 %v472, %v471
        %vm477 = vcmask 261120
        %v479 = vsel %vm477, %v461, 0
        %v482 = vsel %vm477, %v462, 0
        %v485 = vsel %vm477, %v463, 0
        %v488 = vsel %vm477, %v464, 0
        %490 = vmatprep.subr.bf16.mxu0 0
        %491 = vmatpush1.bf16.msra.mxu0 0
        %492 = vmatprep.subr.bf16.mxu0 0
        %493 = vmatpush1.bf16.msra.mxu0 0
        %494 = vmatprep.subr.bf16.mxu0 0
        %495 = vmatpush1.bf16.msra.mxu0 0
        %496 = vmatprep.subr.bf16.mxu0 0
        %497 = vmatpush1.bf16.msra.mxu0 0
        %498 = vmatprep.subr.bf16.mxu0 0
        %499 = vmatpush1.bf16.msra.mxu0 0
        %500 = vmatprep.subr.bf16.mxu0 0
        %501 = vmatpush1.bf16.msra.mxu0 0
        %502 = vmatprep.subr.bf16.mxu0 0
        %503 = vmatpush1.bf16.msra.mxu0 %v474
        %504 = vmatprep.subr.bf16.mxu0 0
        %505 = vmatpush1.bf16.msra.mxu0 %v473
        %506 = vmatprep.subr.bf16.mxu0 0
        %507 = vmatpush2.bf16.msra.mxu0 0
        %508 = vmatprep.subr.bf16.mxu0 0
        %509 = vmatpush2.bf16.msra.mxu0 0
        %510 = vmatprep.subr.bf16.mxu0 0
        %511 = vmatpush2.bf16.msra.mxu0 0
        %512 = vmatprep.subr.bf16.mxu0 0
        %513 = vmatpush2.bf16.msra.mxu0 0
        %514 = vmatprep.subr.bf16.mxu0 0
        %515 = vmatpush2.bf16.msra.mxu0 0
        %516 = vmatprep.subr.bf16.mxu0 0
        %517 = vmatpush2.bf16.msra.mxu0 0
        %518 = vmatprep.subr.bf16.mxu0 0
        %519 = vmatpush2.bf16.msra.mxu0 0
        %520 = vmatprep.subr.bf16.mxu0 0
        %521 = vmatpush2.bf16.msra.mxu0 0
        %522 = vmatprep.mubr.bf16.mxu0 0
        %523 = vmatmul.mubr.bf16.gmra.mxu0 %v479
        %v524 = vpop.f32.mrf.mxu0
        %v525 = vadd.f32 %v443, %v524
        %v526 = vpop.f32.mrf.mxu0
        %v527 = vpop.f32.mrf.mxu0
        %v528 = vadd.f32 %v443, %v527
        %v529 = vpop.f32.mrf.mxu0
        %530 = vmatprep.mubr.bf16.mxu0 0
        %531 = vmatmul.mubr.bf16.gmra.mxu0 %v482
        %v532 = vpop.f32.mrf.mxu0
        %v533 = vadd.f32 %v443, %v532
        %v534 = vpop.f32.mrf.mxu0
        %v535 = vpop.f32.mrf.mxu0
        %v536 = vadd.f32 %v443, %v535
        %v537 = vpop.f32.mrf.mxu0
        %538 = vmatprep.mubr.bf16.mxu0 0
        %539 = vmatmul.mubr.bf16.gmra.mxu0 %v485
        %v540 = vpop.f32.mrf.mxu0
        %v541 = vadd.f32 %v443, %v540
        %v542 = vpop.f32.mrf.mxu0
        %v543 = vpop.f32.mrf.mxu0
        %v544 = vadd.f32 %v443, %v543
        %v545 = vpop.f32.mrf.mxu0
        %546 = vmatprep.mubr.bf16.mxu0 0
        %547 = vmatmul.mubr.bf16.gmra.mxu0 %v488
        %v548 = vpop.f32.mrf.mxu0
        %v549 = vadd.f32 %v443, %v548
        %v550 = vpop.f32.mrf.mxu0
        %v551 = vpop.f32.mrf.mxu0
        %v552 = vadd.f32 %v443, %v551
        %v553 = vpop.f32.mrf.mxu0
        %554 = vdwg.mxu0
        %v555 = vld [vmem:[%s422] sm:$0xff]
        %v556 = vld [vmem:[%s422 + $0x8] sm:$0xff]
        %v557 = vld [vmem:[%s422 + $0x10] sm:$0xff]
        %v558 = vld [vmem:[%s422 + $0x18] sm:$0xff]
        %v559 = vld [vmem:[%s422 + $0x20] sm:$0xff]
        %v560 = vld [vmem:[%s422 + $0x28] sm:$0xff]
        %v561 = vld [vmem:[%s422 + $0x30] sm:$0xff]
        %v562 = vld [vmem:[%s422 + $0x38] sm:$0xff]
        %v563 = vadd.f32 %v525, %v555
        %v564 = vadd.f32 %v528, %v556
        %v565 = vadd.f32 %v533, %v557
        %v566 = vadd.f32 %v536, %v558
        %v567 = vadd.f32 %v541, %v559
        %v568 = vadd.f32 %v544, %v560
        %v569 = vadd.f32 %v549, %v561
        %v570 = vadd.f32 %v552, %v562
        %v571 = vld [vmem:[%s4] sm:$0x1]
        %v572 = vld [vmem:[%s5] sm:$0x1]
        %v573 = vsel %vm477, %v563, 0.0
        %574 = vadd.xlane.f32.xlu0 %v573
        %v575 = vpop.xlane.xlu0 %574
        %v576 = vsel %vm477, %v564, 0.0
        %577 = vadd.xlane.f32.xlu0 %v576
        %v578 = vpop.xlane.xlu0 %577
        %v579 = vsel %vm477, %v565, 0.0
        %580 = vadd.xlane.f32.xlu0 %v579
        %v581 = vpop.xlane.xlu0 %580
        %v582 = vsel %vm477, %v566, 0.0
        %583 = vadd.xlane.f32.xlu0 %v582
        %v584 = vpop.xlane.xlu0 %583
        %v585 = vsel %vm477, %v567, 0.0
        %586 = vadd.xlane.f32.xlu0 %v585
        %v587 = vpop.xlane.xlu0 %586
        %v588 = vsel %vm477, %v568, 0.0
        %589 = vadd.xlane.f32.xlu0 %v588
        %v590 = vpop.xlane.xlu0 %589
        %v591 = vsel %vm477, %v569, 0.0
        %592 = vadd.xlane.f32.xlu0 %v591
        %v593 = vpop.xlane.xlu0 %592
        %v594 = vsel %vm477, %v570, 0.0
        %595 = vadd.xlane.f32.xlu0 %v594
        %v596 = vpop.xlane.xlu0 %595
        %v597 = vrcp.pop 32.0
        %v598 = vmul.f32 %v575, %v597
        %v599 = vmul.f32 %v578, %v597
        %v600 = vmul.f32 %v581, %v597
        %v601 = vmul.f32 %v584, %v597
        %v602 = vmul.f32 %v587, %v597
        %v603 = vmul.f32 %v590, %v597
        %v604 = vmul.f32 %v593, %v597
        %v605 = vmul.f32 %v596, %v597
        %v606 = vsub.f32 %v563, %v598
        %v607 = vsub.f32 %v564, %v599
        %v608 = vsub.f32 %v565, %v600
        %v609 = vsub.f32 %v566, %v601
        %v610 = vsub.f32 %v567, %v602
        %v611 = vsub.f32 %v568, %v603
        %v612 = vsub.f32 %v569, %v604
        %v613 = vsub.f32 %v570, %v605
        %v614 = vmul.f32 %v606, %v606
        %v615 = vmul.f32 %v607, %v607
        %v616 = vmul.f32 %v608, %v608
        %v617 = vmul.f32 %v609, %v609
        %v618 = vmul.f32 %v610, %v610
        %v619 = vmul.f32 %v611, %v611
        %v620 = vmul.f32 %v612, %v612
        %v621 = vmul.f32 %v613, %v613
        %v622 = vsel %vm477, %v614, 0.0
        %623 = vadd.xlane.f32.xlu0 %v622
        %v624 = vpop.xlane.xlu0 %623
        %v625 = vsel %vm477, %v615, 0.0
        %626 = vadd.xlane.f32.xlu0 %v625
        %v627 = vpop.xlane.xlu0 %626
        %v628 = vsel %vm477, %v616, 0.0
        %629 = vadd.xlane.f32.xlu0 %v628
        %v630 = vpop.xlane.xlu0 %629
        %v631 = vsel %vm477, %v617, 0.0
        %632 = vadd.xlane.f32.xlu0 %v631
        %v633 = vpop.xlane.xlu0 %632
        %v634 = vsel %vm477, %v618, 0.0
        %635 = vadd.xlane.f32.xlu0 %v634
        %v636 = vpop.xlane.xlu0 %635
        %v637 = vsel %vm477, %v619, 0.0
        %638 = vadd.xlane.f32.xlu0 %v637
        %v639 = vpop.xlane.xlu0 %638
        %v640 = vsel %vm477, %v620, 0.0
        %641 = vadd.xlane.f32.xlu0 %v640
        %v642 = vpop.xlane.xlu0 %641
        %v643 = vsel %vm477, %v621, 0.0
        %644 = vadd.xlane.f32.xlu0 %v643
        %v645 = vpop.xlane.xlu0 %644
        %v646 = vmul.f32 %v624, %v597
        %v647 = vmul.f32 %v627, %v597
        %v648 = vmul.f32 %v630, %v597
        %v649 = vmul.f32 %v633, %v597
        %v650 = vmul.f32 %v636, %v597
        %v651 = vmul.f32 %v639, %v597
        %v652 = vmul.f32 %v642, %v597
        %v653 = vmul.f32 %v645, %v597
        %v654 = vadd.f32 %v646, 1e-05
        %v655 = vadd.f32 %v647, 1e-05
        %v656 = vadd.f32 %v648, 1e-05
        %v657 = vadd.f32 %v649, 1e-05
        %v658 = vadd.f32 %v650, 1e-05
        %v659 = vadd.f32 %v651, 1e-05
        %v660 = vadd.f32 %v652, 1e-05
        %v661 = vadd.f32 %v653, 1e-05
        %v662 = vrsqrt.pop %v654
        %v663 = vrsqrt.pop %v655
        %v664 = vrsqrt.pop %v656
        %v665 = vrsqrt.pop %v657
        %v666 = vrsqrt.pop %v658
        %v667 = vrsqrt.pop %v659
        %v668 = vrsqrt.pop %v660
        %v669 = vrsqrt.pop %v661
        %v670 = vmul.f32 %v606, %v662
        %v671 = vmul.f32 %v607, %v663
        %v672 = vmul.f32 %v608, %v664
        %v673 = vmul.f32 %v609, %v665
        %v674 = vmul.f32 %v610, %v666
        %v675 = vmul.f32 %v611, %v667
        %v676 = vmul.f32 %v612, %v668
        %v677 = vmul.f32 %v613, %v669
        %v679 = vlaneseq
        %v680 = vshrl.u32 %v679, 7
        %v681 = vsub.s32 0, %v680
        %v682 = vrot.slane %v571, %v681
        %v684 = vmul.f32 %v670, %v682
        %v685 = vmul.f32 %v671, %v682
        %v686 = vmul.f32 %v672, %v682
        %v687 = vmul.f32 %v673, %v682
        %v688 = vmul.f32 %v674, %v682
        %v689 = vmul.f32 %v675, %v682
        %v690 = vmul.f32 %v676, %v682
        %v691 = vmul.f32 %v677, %v682
        %v693 = vlaneseq
        %v694 = vshrl.u32 %v693, 7
        %v695 = vsub.s32 0, %v694
        %v696 = vrot.slane %v572, %v695
        %v698 = vadd.f32 %v684, %v696
        %v699 = vadd.f32 %v685, %v696
        %v700 = vadd.f32 %v686, %v696
        %v701 = vadd.f32 %v687, %v696
        %v702 = vadd.f32 %v688, %v696
        %v703 = vadd.f32 %v689, %v696
        %v704 = vadd.f32 %v690, %v696
        %v705 = vadd.f32 %v691, %v696
        %v706 = vpack.c.bf16 %v699, %v698
        %v707 = vpack.c.bf16 %v701, %v700
        %v708 = vpack.c.bf16 %v703, %v702
        %v709 = vpack.c.bf16 %v705, %v704
        %v710 = vld [vmem:[%s6] sm:$0xf]
        %v711 = vld [vmem:[%s6 + $0x4] sm:$0xf]
        %v712 = vld [vmem:[%s6 + $0x8] sm:$0xf]
        %v713 = vld [vmem:[%s6 + $0xc] sm:$0xf]
        %v714 = vld [vmem:[%s7] sm:$0x1]
        %v716 = vlaneseq
        %v717 = vshrl.u32 %v716, 7
        %v718 = vsub.s32 0, %v717
        %v719 = vrot.slane %v714, %v718
        %v725 = vunpack.c.l.b16 %v710
        %v726 = vunpack.c.l.b16 %v711
        %v727 = vunpack.c.l.b16 %v712
        %v728 = vunpack.c.l.b16 %v713
        %v729 = vpack.c.b16 %v726, %v725
        %v730 = vpack.c.b16 %v728, %v727
        %v734 = vsel %vm477, %v706, 0
        %v737 = vsel %vm477, %v707, 0
        %v740 = vsel %vm477, %v708, 0
        %v743 = vsel %vm477, %v709, 0
        %745 = vmatprep.subr.bf16.mxu0 0
        %746 = vmatpush1.bf16.msra.mxu0 0
        %747 = vmatprep.subr.bf16.mxu0 0
        %748 = vmatpush1.bf16.msra.mxu0 0
        %749 = vmatprep.subr.bf16.mxu0 0
        %750 = vmatpush1.bf16.msra.mxu0 0
        %751 = vmatprep.subr.bf16.mxu0 0
        %752 = vmatpush1.bf16.msra.mxu0 0
        %753 = vmatprep.subr.bf16.mxu0 0
        %754 = vmatpush1.bf16.msra.mxu0 0
        %755 = vmatprep.subr.bf16.mxu0 0
        %756 = vmatpush1.bf16.msra.mxu0 0
        %757 = vmatprep.subr.bf16.mxu0 0
        %758 = vmatpush1.bf16.msra.mxu0 %v730
        %759 = vmatprep.subr.bf16.mxu0 0
        %760 = vmatpush1.bf16.msra.mxu0 %v729
        %761 = vmatprep.subr.bf16.mxu0 0
        %762 = vmatpush2.bf16.msra.mxu0 0
        %763 = vmatprep.subr.bf16.mxu0 0
        %764 = vmatpush2.bf16.msra.mxu0 0
        %765 = vmatprep.subr.bf16.mxu0 0
        %766 = vmatpush2.bf16.msra.mxu0 0
        %767 = vmatprep.subr.bf16.mxu0 0
        %768 = vmatpush2.bf16.msra.mxu0 0
        %769 = vmatprep.subr.bf16.mxu0 0
        %770 = vmatpush2.bf16.msra.mxu0 0
        %771 = vmatprep.subr.bf16.mxu0 0
        %772 = vmatpush2.bf16.msra.mxu0 0
        %773 = vmatprep.subr.bf16.mxu0 0
        %774 = vmatpush2.bf16.msra.mxu0 0
        %775 = vmatprep.subr.bf16.mxu0 0
        %776 = vmatpush2.bf16.msra.mxu0 0
        %777 = vmatprep.mubr.bf16.mxu0 0
        %778 = vmatmul.mubr.bf16.gmra.mxu0 %v734
        %v779 = vpop.f32.mrf.mxu0
        %v780 = vadd.f32 %v719, %v779
        %v781 = vpop.f32.mrf.mxu0
        %v782 = vpop.f32.mrf.mxu0
        %v783 = vadd.f32 %v719, %v782
        %v784 = vpop.f32.mrf.mxu0
        %785 = vmatprep.mubr.bf16.mxu0 0
        %786 = vmatmul.mubr.bf16.gmra.mxu0 %v737
        %v787 = vpop.f32.mrf.mxu0
        %v788 = vadd.f32 %v719, %v787
        %v789 = vpop.f32.mrf.mxu0
        %v790 = vpop.f32.mrf.mxu0
        %v791 = vadd.f32 %v719, %v790
        %v792 = vpop.f32.mrf.mxu0
        %793 = vmatprep.mubr.bf16.mxu0 0
        %794 = vmatmul.mubr.bf16.gmra.mxu0 %v740
        %v795 = vpop.f32.mrf.mxu0
        %v796 = vadd.f32 %v719, %v795
        %v797 = vpop.f32.mrf.mxu0
        %v798 = vpop.f32.mrf.mxu0
        %v799 = vadd.f32 %v719, %v798
        %v800 = vpop.f32.mrf.mxu0
        %801 = vmatprep.mubr.bf16.mxu0 0
        %802 = vmatmul.mubr.bf16.gmra.mxu0 %v743
        %v803 = vpop.f32.mrf.mxu0
        %v804 = vadd.f32 %v719, %v803
        %v805 = vpop.f32.mrf.mxu0
        %v806 = vpop.f32.mrf.mxu0
        %v807 = vadd.f32 %v719, %v806
        %v808 = vpop.f32.mrf.mxu0
        %809 = vdwg.mxu0
        %v810 = vmul.f32 %v780, 0.5
        %v811 = vmul.f32 %v783, 0.5
        %v812 = vmul.f32 %v788, 0.5
        %v813 = vmul.f32 %v791, 0.5
        %v814 = vmul.f32 %v796, 0.5
        %v815 = vmul.f32 %v799, 0.5
        %v816 = vmul.f32 %v804, 0.5
        %v817 = vmul.f32 %v807, 0.5
        %v818 = vmul.f32 %v780, 0.044715
        %v819 = vmul.f32 %v783, 0.044715
        %v820 = vmul.f32 %v788, 0.044715
        %v821 = vmul.f32 %v791, 0.044715
        %v822 = vmul.f32 %v796, 0.044715
        %v823 = vmul.f32 %v799, 0.044715
        %v824 = vmul.f32 %v804, 0.044715
        %v825 = vmul.f32 %v807, 0.044715
        %v826 = vmul.f32 %v818, %v780
        %v827 = vmul.f32 %v819, %v783
        %v828 = vmul.f32 %v820, %v788
        %v829 = vmul.f32 %v821, %v791
        %v830 = vmul.f32 %v822, %v796
        %v831 = vmul.f32 %v823, %v799
        %v832 = vmul.f32 %v824, %v804
        %v833 = vmul.f32 %v825, %v807
        %v834 = vmul.f32 %v826, %v780
        %v835 = vmul.f32 %v827, %v783
        %v836 = vmul.f32 %v828, %v788
        %v837 = vmul.f32 %v829, %v791
        %v838 = vmul.f32 %v830, %v796
        %v839 = vmul.f32 %v831, %v799
        %v840 = vmul.f32 %v832, %v804
        %v841 = vmul.f32 %v833, %v807
        %v842 = vadd.f32 %v780, %v834
        %v843 = vadd.f32 %v783, %v835
        %v844 = vadd.f32 %v788, %v836
        %v845 = vadd.f32 %v791, %v837
        %v846 = vadd.f32 %v796, %v838
        %v847 = vadd.f32 %v799, %v839
        %v848 = vadd.f32 %v804, %v840
        %v849 = vadd.f32 %v807, %v841
        %v850 = vmul.f32 %v842, 0.7978846
        %v851 = vmul.f32 %v843, 0.7978846
        %v852 = vmul.f32 %v844, 0.7978846
        %v853 = vmul.f32 %v845, 0.7978846
        %v854 = vmul.f32 %v846, 0.7978846
        %v855 = vmul.f32 %v847, 0.7978846
        %v856 = vmul.f32 %v848, 0.7978846
        %v857 = vmul.f32 %v849, 0.7978846
        %v858 = vtanh.pop %v850
        %v859 = vtanh.pop %v851
        %v860 = vtanh.pop %v852
        %v861 = vtanh.pop %v853
        %v862 = vtanh.pop %v854
        %v863 = vtanh.pop %v855
        %v864 = vtanh.pop %v856
        %v865 = vtanh.pop %v857
        %v866 = vadd.f32 %v858, 1.0
        %v867 = vadd.f32 %v859, 1.0
        %v868 = vadd.f32 %v860, 1.0
        %v869 = vadd.f32 %v861, 1.0
        %v870 = vadd.f32 %v862, 1.0
        %v871 = vadd.f32 %v863, 1.0
        %v872 = vadd.f32 %v864, 1.0
        %v873 = vadd.f32 %v865, 1.0
        %v874 = vmul.f32 %v810, %v866
        %v875 = vmul.f32 %v811, %v867
        %v876 = vmul.f32 %v812, %v868
        %v877 = vmul.f32 %v813, %v869
        %v878 = vmul.f32 %v814, %v870
        %v879 = vmul.f32 %v815, %v871
        %v880 = vmul.f32 %v816, %v872
        %v881 = vmul.f32 %v817, %v873
        %v882 = vpack.c.bf16 %v875, %v874
        %v883 = vpack.c.bf16 %v877, %v876
        %v884 = vpack.c.bf16 %v879, %v878
        %v885 = vpack.c.bf16 %v881, %v880
        %v886 = vld [vmem:[%s8] sm:$0xf]
        %v887 = vld [vmem:[%s8 + $0x4] sm:$0xf]
        %v888 = vld [vmem:[%s8 + $0x8] sm:$0xf]
        %v889 = vld [vmem:[%s8 + $0xc] sm:$0xf]
        %v890 = vld [vmem:[%s8 + $0x10] sm:$0xf]
        %v891 = vld [vmem:[%s8 + $0x14] sm:$0xf]
        %v892 = vld [vmem:[%s8 + $0x18] sm:$0xf]
        %v893 = vld [vmem:[%s8 + $0x1c] sm:$0xf]
        %v894 = vld [vmem:[%s8 + $0x20] sm:$0xf]
        %v895 = vld [vmem:[%s8 + $0x24] sm:$0xf]
        %v896 = vld [vmem:[%s8 + $0x28] sm:$0xf]
        %v897 = vld [vmem:[%s8 + $0x2c] sm:$0xf]
        %v898 = vld [vmem:[%s8 + $0x30] sm:$0xf]
        %v899 = vld [vmem:[%s8 + $0x34] sm:$0xf]
        %v900 = vld [vmem:[%s8 + $0x38] sm:$0xf]
        %v901 = vld [vmem:[%s8 + $0x3c] sm:$0xf]
        %v902 = vld [vmem:[%s9] sm:$0x1]
        %v904 = vlaneseq
        %v905 = vshrl.u32 %v904, 7
        %v906 = vsub.s32 0, %v905
        %v907 = vrot.slane %v902, %v906
        %v925 = vunpack.c.l.b16 %v886
        %v926 = vunpack.c.l.b16 %v887
        %v927 = vunpack.c.l.b16 %v888
        %v928 = vunpack.c.l.b16 %v889
        %v929 = vunpack.c.l.b16 %v890
        %v930 = vunpack.c.l.b16 %v891
        %v931 = vunpack.c.l.b16 %v892
        %v932 = vunpack.c.l.b16 %v893
        %v933 = vunpack.c.l.b16 %v894
        %v934 = vunpack.c.l.b16 %v895
        %v935 = vunpack.c.l.b16 %v896
        %v936 = vunpack.c.l.b16 %v897
        %v937 = vunpack.c.l.b16 %v898
        %v938 = vunpack.c.l.b16 %v899
        %v939 = vunpack.c.l.b16 %v900
        %v940 = vunpack.c.l.b16 %v901
        %v941 = vpack.c.b16 %v926, %v925
        %v942 = vpack.c.b16 %v928, %v927
        %v943 = vpack.c.b16 %v930, %v929
        %v944 = vpack.c.b16 %v932, %v931
        %v945 = vpack.c.b16 %v934, %v933
        %v946 = vpack.c.b16 %v936, %v935
        %v947 = vpack.c.b16 %v938, %v937
        %v948 = vpack.c.b16 %v940, %v939
        %957 = vmatprep.subr.bf16.mxu0 0
        %958 = vmatpush1.bf16.msra.mxu0 %v948
        %959 = vmatprep.subr.bf16.mxu0 0
        %960 = vmatpush1.bf16.msra.mxu0 %v947
        %961 = vmatprep.subr.bf16.mxu0 0
        %962 = vmatpush1.bf16.msra.mxu0 %v946
        %963 = vmatprep.subr.bf16.mxu0 0
        %964 = vmatpush1.bf16.msra.mxu0 %v945
        %965 = vmatprep.subr.bf16.mxu0 0
        %966 = vmatpush1.bf16.msra.mxu0 %v944
        %967 = vmatprep.subr.bf16.mxu0 0
        %968 = vmatpush1.bf16.msra.mxu0 %v943
        %969 = vmatprep.subr.bf16.mxu0 0
        %970 = vmatpush1.bf16.msra.mxu0 %v942
        %971 = vmatprep.subr.bf16.mxu0 0
        %972 = vmatpush1.bf16.msra.mxu0 %v941
        %973 = vmatprep.subr.bf16.mxu0 0
        %974 = vmatpush2.bf16.msra.mxu0 0
        %975 = vmatprep.subr.bf16.mxu0 0
        %976 = vmatpush2.bf16.msra.mxu0 0
        %977 = vmatprep.subr.bf16.mxu0 0
        %978 = vmatpush2.bf16.msra.mxu0 0
        %979 = vmatprep.subr.bf16.mxu0 0
        %980 = vmatpush2.bf16.msra.mxu0 0
        %981 = vmatprep.subr.bf16.mxu0 0
        %982 = vmatpush2.bf16.msra.mxu0 0
        %983 = vmatprep.subr.bf16.mxu0 0
        %984 = vmatpush2.bf16.msra.mxu0 0
        %985 = vmatprep.subr.bf16.mxu0 0
        %986 = vmatpush2.bf16.msra.mxu0 0
        %987 = vmatprep.subr.bf16.mxu0 0
        %988 = vmatpush2.bf16.msra.mxu0 0
        %989 = vmatprep.mubr.bf16.mxu0 0
        %990 = vmatmul.mubr.bf16.gmra.mxu0 %v882
        %v991 = vpop.f32.mrf.mxu0
        %v992 = vadd.f32 %v907, %v991
        %v993 = vpop.f32.mrf.mxu0
        %v994 = vpop.f32.mrf.mxu0
        %v995 = vadd.f32 %v907, %v994
        %v996 = vpop.f32.mrf.mxu0
        %997 = vmatprep.mubr.bf16.mxu0 0
        %998 = vmatmul.mubr.bf16.gmra.mxu0 %v883
        %v999 = vpop.f32.mrf.mxu0
        %v1000 = vadd.f32 %v907, %v999
        %v1001 = vpop.f32.mrf.mxu0
        %v1002 = vpop.f32.mrf.mxu0
        %v1003 = vadd.f32 %v907, %v1002
        %v1004 = vpop.f32.mrf.mxu0
        %1005 = vmatprep.mubr.bf16.mxu0 0
        %1006 = vmatmul.mubr.bf16.gmra.mxu0 %v884
        %v1007 = vpop.f32.mrf.mxu0
        %v1008 = vadd.f32 %v907, %v1007
        %v1009 = vpop.f32.mrf.mxu0
        %v1010 = vpop.f32.mrf.mxu0
        %v1011 = vadd.f32 %v907, %v1010
        %v1012 = vpop.f32.mrf.mxu0
        %1013 = vmatprep.mubr.bf16.mxu0 0
        %1014 = vmatmul.mubr.bf16.gmra.mxu0 %v885
        %v1015 = vpop.f32.mrf.mxu0
        %v1016 = vadd.f32 %v907, %v1015
        %v1017 = vpop.f32.mrf.mxu0
        %v1018 = vpop.f32.mrf.mxu0
        %v1019 = vadd.f32 %v907, %v1018
        %v1020 = vpop.f32.mrf.mxu0
        %1021 = vdwg.mxu0
        %v1022 = vadd.f32 %v563, %v992
        %v1023 = vadd.f32 %v564, %v995
        %v1024 = vadd.f32 %v565, %v1000
        %v1025 = vadd.f32 %v566, %v1003
        %v1026 = vadd.f32 %v567, %v1008
        %v1027 = vadd.f32 %v568, %v1011
        %v1028 = vadd.f32 %v569, %v1016
        %v1029 = vadd.f32 %v570, %v1019
        %1030 = vst.msk [vmem:[%s403] sm:$0xff] %vm477, %v1022
        %1031 = vst.msk [vmem:[%s403 + $0x8] sm:$0xff] %vm477, %v1023
        %1032 = vst.msk [vmem:[%s403 + $0x10] sm:$0xff] %vm477, %v1024
        %1033 = vst.msk [vmem:[%s403 + $0x18] sm:$0xff] %vm477, %v1025
        %1034 = vst.msk [vmem:[%s403 + $0x20] sm:$0xff] %vm477, %v1026
        %1035 = vst.msk [vmem:[%s403 + $0x28] sm:$0xff] %vm477, %v1027
        %1036 = vst.msk [vmem:[%s403 + $0x30] sm:$0xff] %vm477, %v1028
        %1037 = vst.msk [vmem:[%s403 + $0x38] sm:$0xff] %vm477, %v1029
        %s1038 = sand.u32 %s270, 1
        %s1039 = scalar_lea.sflag [#allocation3], %s1038
        %s1040 = sand.u32 %s270, 1
        %s1041 = smul.addr %s1040, 64
        %s1042 = scalar_lea.vmem [#allocation2], %s1041
        // Predicated region
        $region61: #{block_forward.5} parent=59 // pred_check
          %p1043 = pneg %p280
        $region62: #{block_forward.5} parent=59 // pred_check_branch
          %1045 = sbr.rel (%p1043) target = $region64
        $region63: #{block_forward.5} parent=59 // pred_region
          %s1046 = smul.u32 8, %s29
          %s1048 = ssub.s32 1024, 1024
          %1049 = vsyncadd %s1039, %s1048
          %s1050 = smul.addr %s28, 8
          %s1051 = sadd.s32 %s1046, %s1050
          %s1052 = smul.addr %s1051, 128
          %s1053 = scalar_lea.hbm %s10, %s1052
          %s1054 = sshll.u32 %s1042, 4
          %s1055 = int_to_ptr.vmem [resolvable:$true] %s1054
          %1060 = dma.vmem_to_hbm [thread:$0]  %s1055, 1024, %s1053, %s1039, 128, 128, 8
        $region64: #{block_forward.5} parent=59 // pred_fallthru
          _
      $region60: #{block_forward.5} parent=5 // pred_fallthru
        _
      %p1061 = scmp.le.s32.totalorder 2, %s19
      // Predicated region
      $region65: #{block_forward.5} parent=5 // pred_check
        %p1062 = pneg %p1061
      $region66: #{block_forward.5} parent=5 // pred_check_branch
        %1064 = sbr.rel (%p1062) target = $region68
      $region67: #{block_forward.5} parent=5 // pred_region
        %s1065 = ssub.s32 %s19, 2
        // Predicated region
        $region69: #{block_forward.5} parent=67 // pred_check
          %p1066 = pneg %p286
        $region70: #{block_forward.5} parent=67 // pred_check_branch
          %1068 = sbr.rel (%p1066) target = $region72
        $region71: #{block_forward.5} parent=67 // pred_region
          %s1069 = sand.u32 %s271, 1
          %s1070 = scalar_lea.sflag [#allocation3], %s1069
          %s1071 = sand.u32 %s271, 1
          %s1072 = smul.addr %s1071, 64
          %s1073 = scalar_lea.vmem [#allocation2], %s1072
          %1074 = dma.done %s1070, 1024
        $region72: #{block_forward.5} parent=67 // pred_fallthru
          _
      $region68: #{block_forward.5} parent=5 // pred_fallthru
        _
    $region6: #{block_forward.5} parent=1 // loop_footer
      %s23 = sadd.s32 1, %s19
    $region7: #{block_forward.5} parent=1 // loop_footer_branch
      %18 = sbr.rel target = $region3
    $region8: #{block_forward.5} parent=1 // loop_exit
      _
    %1075 = vsyncpa [#allocation3], 1
    %s1076 = scalar_lea.sflag [#allocation3], 1
    %1077 = vsyncpa %s1076, 1

</llo_original>
